<compile_context>
chip_gen: v5e
topology: v5e:2x2
jax: 0.10.0
libtpu: 0.0.40
codegen_flags: <defaults>
</compile_context>

<pallas_src>
import functools

import jax
import jax.numpy as jnp
from jax.experimental import pallas as pl
from jax.experimental.pallas import tpu as pltpu


# ----------------------------------------------------------------------------
# Pallas kernel: fused dense-connection 3x3 conv (+ bias, LeakyReLU, residuals)
# ----------------------------------------------------------------------------
def _dense_conv_kernel(*refs, n_in, n_res, negative_slope, res_scale):
    """Fused 3x3 'same' conv over n_in channel-concatenated inputs.

    refs layout (as delivered by pallas_call):
      x_0 .. x_{n_in-1} : (1, H, W, C_i)      unpadded NHWC input tiles
      w_ref             : (9, Cin_total, Cout) 3x3 taps flattened (dy*3+dx)
      b_ref             : (1, Cout)            bias (f32)
      res_0 .. res_{n_res-1} : (1, H, W, Cout) fused residual operands
      o_ref             : (1, H, W, Cout)      output tile
      pad_0 .. pad_{n_in-1}  : (H+2, W+2, C_i) VMEM zero-halo scratches
      acc_ref           : (H*W, Cout) f32      VMEM accumulator scratch
    """
    x_refs = refs[:n_in]
    w_ref = refs[n_in]
    b_ref = refs[n_in + 1]
    res_refs = refs[n_in + 2:n_in + 2 + n_res]
    o_ref = refs[n_in + 2 + n_res]
    pad_refs = refs[n_in + 3 + n_res:n_in + 3 + n_res + n_in]
    acc_ref = refs[n_in + 3 + n_res + n_in]

    _, H, W, Cout = o_ref.shape

    # Stage each dense-connection input into its own zero-haloed VMEM scratch.
    # Only the 1-wide border needs zeroing; the interior is fully overwritten.
    for x_ref, pad in zip(x_refs, pad_refs):
        c = pad.shape[-1]
        z_row = jnp.zeros((1, W + 2, c), pad.dtype)
        z_col = jnp.zeros((H + 2, 1, c), pad.dtype)
        pad[0:1, :, :] = z_row
        pad[H + 1:H + 2, :, :] = z_row
        pad[:, 0:1, :] = z_col
        pad[:, W + 1:W + 2, :] = z_col
        pad[1:H + 1, 1:W + 1, :] = x_ref[0]

    # Channel offsets of each input inside the (virtually concatenated) Cin.
    c_offs, off = [], 0
    for pad in pad_refs:
        c_offs.append(off)
        off += pad.shape[-1]

    # 3x3 conv: for each tap, accumulate every input's (H*W, C_i) x (C_i, Cout)
    # product into the shared f32 VMEM accumulator (split-K over the concat).
    acc_ref[...] = jnp.zeros_like(acc_ref)
    for dy in range(3):
        for dx in range(3):
            w_tap = w_ref[dy * 3 + dx]                       # (Cin_total, Cout)
            for pad, coff in zip(pad_refs, c_offs):
                c = pad.shape[-1]
                patch = pad[dy:dy + H, dx:dx + W, :].reshape(H * W, c)
                acc_ref[...] += jnp.dot(patch, w_tap[coff:coff + c, :],
                                        preferred_element_type=jnp.float32)

    out = acc_ref[...] + b_ref[...]                          # bias, f32
    if negative_slope is not None:
        out = jnp.where(out >= 0.0, out, negative_slope * out)
    out = out.reshape(1, H, W, Cout)
    for r_ref in res_refs:                                   # fused residual(s)
        out = out * res_scale + r_ref[...].astype(jnp.float32)
    o_ref[...] = out.astype(o_ref.dtype)


# ----------------------------------------------------------------------------
# Wrapper: pallas_call plumbing for one fused dense-connection conv
# ----------------------------------------------------------------------------
def dense_conv(inputs, w, b, *, lrelu, residuals=(), res_scale=0.2):
    """3x3 'same' conv over channel-concat of `inputs` (each NHWC, same N/H/W).

    w: (3, 3, Cin_total, Cout), b: (Cout,).
    residuals: sequence of NHWC (N,H,W,Cout) tensors fused as
               out = (...((conv)*s + r0)*s + r1 ...)   with s = res_scale.
    """
    N, H, W, _ = inputs[0].shape
    cs = [int(a.shape[-1]) for a in inputs]
    Cin = sum(cs)
    Cout = int(w.shape[-1])
    dtype = inputs[0].dtype

    w9 = w.reshape(9, Cin, Cout)                    # tap index = dy*3 + dx
    b2 = b.reshape(1, Cout).astype(jnp.float32)

    in_specs = [pl.BlockSpec((1, H, W, c), lambda n: (n, 0, 0, 0)) for c in cs]
    in_specs += [
        pl.BlockSpec((9, Cin, Cout), lambda n: (0, 0, 0)),
        pl.BlockSpec((1, Cout), lambda n: (0, 0)),
    ]
    in_specs += [pl.BlockSpec((1, H, W, Cout), lambda n: (n, 0, 0, 0))
                 for _ in residuals]

    scratch_shapes = [pltpu.VMEM((H + 2, W + 2, c), dtype) for c in cs]
    scratch_shapes.append(pltpu.VMEM((H * W, Cout), jnp.float32))

    kernel = functools.partial(
        _dense_conv_kernel,
        n_in=len(inputs), n_res=len(residuals),
        negative_slope=0.2 if lrelu else None, res_scale=res_scale)

    itemsize = jnp.dtype(dtype).itemsize
    cost = pl.CostEstimate(
        flops=2 * N * H * W * 9 * Cin * Cout,
        transcendentals=0,
        bytes_accessed=(N * H * W * (Cin + (1 + len(residuals)) * Cout) * itemsize
                        + 9 * Cin * Cout * itemsize + Cout * 4))

    return pl.pallas_call(
        kernel,
        out_shape=jax.ShapeDtypeStruct((N, H, W, Cout), dtype),
        grid=(N,),
        in_specs=in_specs,
        out_specs=pl.BlockSpec((1, H, W, Cout), lambda n: (n, 0, 0, 0)),
        scratch_shapes=scratch_shapes,
        compiler_params=pltpu.CompilerParams(
            dimension_semantics=("parallel",),
            vmem_limit_bytes=32 * 1024 * 1024),
        cost_estimate=cost,
    )(*inputs, w9, b2, *residuals)


# ----------------------------------------------------------------------------
# Module-level forward: ResidualDenseBlock_5C x3 + fused RRDB residual tail
# ----------------------------------------------------------------------------
def rdb_forward(x, block_params, extra_residual=None):
    """ResidualDenseBlock_5C.  block_params: 5 (w, b) pairs.

    If extra_residual is given, the RRDB tail (*0.2 + extra_residual) is fused
    into the final conv of this block.
    """
    (w1, b1), (w2, b2), (w3, b3), (w4, b4), (w5, b5) = block_params
    x1 = dense_conv([x], w1, b1, lrelu=True)
    x2 = dense_conv([x, x1], w2, b2, lrelu=True)
    x3 = dense_conv([x, x1, x2], w3, b3, lrelu=True)
    x4 = dense_conv([x, x1, x2, x3], w4, b4, lrelu=True)
    res = (x,) if extra_residual is None else (x, extra_residual)
    # conv5 fused with: x5*0.2 + x   (and, for RDB3, a further *0.2 + rrdb_in)
    return dense_conv([x, x1, x2, x3, x4], w5, b5, lrelu=False, residuals=res)


def rrdb_forward(x_nchw, params, stride=1, compute_dtype=None):
    """RRDB forward. x_nchw: (N, nf, H, W) NCHW. Returns NCHW.

    compute_dtype=jnp.bfloat16 runs activations/weights in bf16 with f32
    accumulation (recommended on v6e/v7x); default keeps the input dtype.
    """
    # nn.MaxPool2d(stride) with stride=1 => kernel_size=1, stride=1 => identity.
    assert stride == 1  # TODO(synk): add a max-pool reduction kernel for stride > 1.
    out_dtype = x_nchw.dtype
    if compute_dtype is None:
        compute_dtype = out_dtype

    x = jnp.transpose(x_nchw, (0, 2, 3, 1)).astype(compute_dtype)   # NCHW -> NHWC
    params = [[(w.astype(compute_dtype), b) for (w, b) in blk] for blk in params]

    out = x
    last = len(params) - 1
    for i, blk in enumerate(params):
        # The RRDB tail (out*0.2 + x) is fused into the last RDB's final conv.
        out = rdb_forward(out, blk, extra_residual=x if i == last else None)

    return jnp.transpose(out, (0, 3, 1, 2)).astype(out_dtype)        # NHWC -> NCHW


# ----------------------------------------------------------------------------
# Deterministic parameter init (shapes from RRDB(nf, gc) __init__)
# ----------------------------------------------------------------------------
def init_rrdb_params(key, nf, gc):
    params = []
    conv_dims = [(nf, gc), (nf + gc, gc), (nf + 2 * gc, gc),
                 (nf + 3 * gc, gc), (nf + 4 * gc, nf)]
    for _ in range(3):                                # RDB1, RDB2, RDB3
        block = []
        for cin, cout in conv_dims:
            key, kw, kb = jax.random.split(key, 3)
            w = jax.random.normal(kw, (3, 3, cin, cout), jnp.float32) * 0.05
            b = jax.random.normal(kb, (cout,), jnp.float32) * 0.01
            block.append((w, b))
        params.append(block)
    return params


if __name__ == "__main__":
    nf, gc = 8, 8
    N, H, W = 2, 16, 16

    key = jax.random.PRNGKey(0)
    kx, kp = jax.random.split(key)
    x = jax.random.normal(kx, (N, nf, H, W), jnp.float32)   # NCHW like PyTorch
    params = init_rrdb_params(kp, nf, gc)

    out = rrdb_forward(x, params, stride=1)
    out = jax.block_until_ready(out)
    assert out.shape == (N, nf, H, W)
    assert out.dtype == jnp.float32
    assert bool(jnp.all(jnp.isfinite(out)))
    print("KERNEL_OK")
</pallas_src>

<mosaic_0001>
module attributes {stable_mosaic.version = 11 : i64} {
  func.func @_dense_conv_kernel(%arg0: i32, %arg1: memref<1x16x16x8xf32, #tpu.memory_space<vmem>>, %arg2: memref<9x8x8xf32, #tpu.memory_space<vmem>>, %arg3: memref<1x8xf32, #tpu.memory_space<vmem>>, %arg4: memref<1x16x16x8xf32, #tpu.memory_space<vmem>>, %arg5: memref<18x18x8xf32, #tpu.memory_space<vmem>>, %arg6: memref<256x8xf32, #tpu.memory_space<vmem>>) attributes {dimension_semantics = [#tpu.dimension_semantics<parallel>], iteration_bounds = array<i64: 2>, scalar_prefetch = 0 : i64, scratch_operands = 2 : i64, tpu.core_type = #tpu.core_type<tc>, window_params = [{transform_indices = @transform_0, window_bounds = array<i64: 1, 16, 16, 8>}, {pipeline_mode = #tpu.pipeline_mode<synchronous>, transform_indices = @transform_1, window_bounds = array<i64: 9, 8, 8>}, {pipeline_mode = #tpu.pipeline_mode<synchronous>, transform_indices = @transform_2, window_bounds = array<i64: 1, 8>}, {transform_indices = @transform_3, window_bounds = array<i64: 1, 16, 16, 8>}]} {
    %cst = arith.constant 0.000000e+00 : f32
    %0 = vector.broadcast %cst : f32 to vector<1x18x8xf32>
    %cst_0 = arith.constant 0.000000e+00 : f32
    %1 = vector.broadcast %cst_0 : f32 to vector<18x1x8xf32>
    %c0 = arith.constant 0 : index
    %c0_1 = arith.constant 0 : index
    %c0_2 = arith.constant 0 : index
    %2 = vector.load %arg5[%c0, %c0_1, %c0_2] : memref<18x18x8xf32, #tpu.memory_space<vmem>>, vector<1x18x8xf32>
    tpu.vector_store %arg5[%c0, %c0_1, %c0_2], %0 {strides = array<i32>} : memref<18x18x8xf32, #tpu.memory_space<vmem>>, vector<1x18x8xf32>,
    %c17 = arith.constant 17 : index
    %c0_3 = arith.constant 0 : index
    %c0_4 = arith.constant 0 : index
    %3 = vector.load %arg5[%c17, %c0_3, %c0_4] : memref<18x18x8xf32, #tpu.memory_space<vmem>>, vector<1x18x8xf32>
    tpu.vector_store %arg5[%c17, %c0_3, %c0_4], %0 {strides = array<i32>} : memref<18x18x8xf32, #tpu.memory_space<vmem>>, vector<1x18x8xf32>,
    %c0_5 = arith.constant 0 : index
    %c0_6 = arith.constant 0 : index
    %c0_7 = arith.constant 0 : index
    %4 = vector.load %arg5[%c0_5, %c0_6, %c0_7] : memref<18x18x8xf32, #tpu.memory_space<vmem>>, vector<18x1x8xf32>
    tpu.vector_store %arg5[%c0_5, %c0_6, %c0_7], %1 {strides = array<i32>} : memref<18x18x8xf32, #tpu.memory_space<vmem>>, vector<18x1x8xf32>,
    %c0_8 = arith.constant 0 : index
    %c17_9 = arith.constant 17 : index
    %c0_10 = arith.constant 0 : index
    %5 = vector.load %arg5[%c0_8, %c17_9, %c0_10] : memref<18x18x8xf32, #tpu.memory_space<vmem>>, vector<18x1x8xf32>
    tpu.vector_store %arg5[%c0_8, %c17_9, %c0_10], %1 {strides = array<i32>} : memref<18x18x8xf32, #tpu.memory_space<vmem>>, vector<18x1x8xf32>,
    %c0_11 = arith.constant 0 : index
    %c0_12 = arith.constant 0 : index
    %c0_13 = arith.constant 0 : index
    %c0_14 = arith.constant 0 : index
    %6 = vector.load %arg1[%c0_11, %c0_12, %c0_13, %c0_14] : memref<1x16x16x8xf32, #tpu.memory_space<vmem>>, vector<1x16x16x8xf32>
    %7 = vector.shape_cast %6 : vector<1x16x16x8xf32> to vector<16x16x8xf32>
    %c1 = arith.constant 1 : index
    %c1_15 = arith.constant 1 : index
    %c0_16 = arith.constant 0 : index
    %8 = vector.load %arg5[%c1, %c1_15, %c0_16] : memref<18x18x8xf32, #tpu.memory_space<vmem>>, vector<16x16x8xf32>
    tpu.vector_store %arg5[%c1, %c1_15, %c0_16], %7 {strides = array<i32>} : memref<18x18x8xf32, #tpu.memory_space<vmem>>, vector<16x16x8xf32>,
    %cst_17 = arith.constant 0.000000e+00 : f32
    %9 = vector.broadcast %cst_17 : f32 to vector<256x8xf32>
    %c0_18 = arith.constant 0 : index
    %c0_19 = arith.constant 0 : index
    %10 = vector.load %arg6[%c0_18, %c0_19] : memref<256x8xf32, #tpu.memory_space<vmem>>, vector<256x8xf32>
    tpu.vector_store %arg6[%c0_18, %c0_19], %9 {strides = array<i32>} : memref<256x8xf32, #tpu.memory_space<vmem>>, vector<256x8xf32>,
    %c0_20 = arith.constant 0 : index
    %c0_21 = arith.constant 0 : index
    %c0_22 = arith.constant 0 : index
    %11 = vector.load %arg2[%c0_20, %c0_21, %c0_22] : memref<9x8x8xf32, #tpu.memory_space<vmem>>, vector<1x8x8xf32>
    %12 = vector.shape_cast %11 : vector<1x8x8xf32> to vector<8x8xf32>
    %c0_23 = arith.constant 0 : index
    %c0_24 = arith.constant 0 : index
    %c0_25 = arith.constant 0 : index
    %13 = vector.load %arg5[%c0_23, %c0_24, %c0_25] : memref<18x18x8xf32, #tpu.memory_space<vmem>>, vector<16x16x8xf32>
    %14 = vector.shape_cast %13 : vector<16x16x8xf32> to vector<256x8xf32>
    %c0_26 = arith.constant 0 : index
    %c0_27 = arith.constant 0 : index
    %15 = vector.load %arg6[%c0_26, %c0_27] : memref<256x8xf32, #tpu.memory_space<vmem>>, vector<256x8xf32>
    %cst_28 = arith.constant dense<0.000000e+00> : vector<256x8xf32>
    %16 = tpu.matmul %14, %12, %cst_28 {dimension_numbers = #tpu.dot_dimension_numbers<[1], [0], [0], [1], [0, 0, 1, 1], [], []>} : vector<256x8xf32>, vector<8x8xf32>, vector<256x8xf32> -> vector<256x8xf32>
    %17 = arith.addf %15, %16 : vector<256x8xf32>
    %c0_29 = arith.constant 0 : index
    %c0_30 = arith.constant 0 : index
    %18 = vector.load %arg6[%c0_29, %c0_30] : memref<256x8xf32, #tpu.memory_space<vmem>>, vector<256x8xf32>
    tpu.vector_store %arg6[%c0_29, %c0_30], %17 {strides = array<i32>} : memref<256x8xf32, #tpu.memory_space<vmem>>, vector<256x8xf32>,
    %c1_31 = arith.constant 1 : index
    %c0_32 = arith.constant 0 : index
    %c0_33 = arith.constant 0 : index
    %19 = vector.load %arg2[%c1_31, %c0_32, %c0_33] : memref<9x8x8xf32, #tpu.memory_space<vmem>>, vector<1x8x8xf32>
    %20 = vector.shape_cast %19 : vector<1x8x8xf32> to vector<8x8xf32>
    %c0_34 = arith.constant 0 : index
    %c1_35 = arith.constant 1 : index
    %c0_36 = arith.constant 0 : index
    %21 = vector.load %arg5[%c0_34, %c1_35, %c0_36] : memref<18x18x8xf32, #tpu.memory_space<vmem>>, vector<16x16x8xf32>
    %22 = vector.shape_cast %21 : vector<16x16x8xf32> to vector<256x8xf32>
    %c0_37 = arith.constant 0 : index
    %c0_38 = arith.constant 0 : index
    %23 = vector.load %arg6[%c0_37, %c0_38] : memref<256x8xf32, #tpu.memory_space<vmem>>, vector<256x8xf32>
    %cst_39 = arith.constant dense<0.000000e+00> : vector<256x8xf32>
    %24 = tpu.matmul %22, %20, %cst_39 {dimension_numbers = #tpu.dot_dimension_numbers<[1], [0], [0], [1], [0, 0, 1, 1], [], []>} : vector<256x8xf32>, vector<8x8xf32>, vector<256x8xf32> -> vector<256x8xf32>
    %25 = arith.addf %23, %24 : vector<256x8xf32>
    %c0_40 = arith.constant 0 : index
    %c0_41 = arith.constant 0 : index
    %26 = vector.load %arg6[%c0_40, %c0_41] : memref<256x8xf32, #tpu.memory_space<vmem>>, vector<256x8xf32>
    tpu.vector_store %arg6[%c0_40, %c0_41], %25 {strides = array<i32>} : memref<256x8xf32, #tpu.memory_space<vmem>>, vector<256x8xf32>,
    %c2 = arith.constant 2 : index
    %c0_42 = arith.constant 0 : index
    %c0_43 = arith.constant 0 : index
    %27 = vector.load %arg2[%c2, %c0_42, %c0_43] : memref<9x8x8xf32, #tpu.memory_space<vmem>>, vector<1x8x8xf32>
    %28 = vector.shape_cast %27 : vector<1x8x8xf32> to vector<8x8xf32>
    %c0_44 = arith.constant 0 : index
    %c2_45 = arith.constant 2 : index
    %c0_46 = arith.constant 0 : index
    %29 = vector.load %arg5[%c0_44, %c2_45, %c0_46] : memref<18x18x8xf32, #tpu.memory_space<vmem>>, vector<16x16x8xf32>
    %30 = vector.shape_cast %29 : vector<16x16x8xf32> to vector<256x8xf32>
    %c0_47 = arith.constant 0 : index
    %c0_48 = arith.constant 0 : index
    %31 = vector.load %arg6[%c0_47, %c0_48] : memref<256x8xf32, #tpu.memory_space<vmem>>, vector<256x8xf32>
    %cst_49 = arith.constant dense<0.000000e+00> : vector<256x8xf32>
    %32 = tpu.matmul %30, %28, %cst_49 {dimension_numbers = #tpu.dot_dimension_numbers<[1], [0], [0], [1], [0, 0, 1, 1], [], []>} : vector<256x8xf32>, vector<8x8xf32>, vector<256x8xf32> -> vector<256x8xf32>
    %33 = arith.addf %31, %32 : vector<256x8xf32>
    %c0_50 = arith.constant 0 : index
    %c0_51 = arith.constant 0 : index
    %34 = vector.load %arg6[%c0_50, %c0_51] : memref<256x8xf32, #tpu.memory_space<vmem>>, vector<256x8xf32>
    tpu.vector_store %arg6[%c0_50, %c0_51], %33 {strides = array<i32>} : memref<256x8xf32, #tpu.memory_space<vmem>>, vector<256x8xf32>,
    %c3 = arith.constant 3 : index
    %c0_52 = arith.constant 0 : index
    %c0_53 = arith.constant 0 : index
    %35 = vector.load %arg2[%c3, %c0_52, %c0_53] : memref<9x8x8xf32, #tpu.memory_space<vmem>>, vector<1x8x8xf32>
    %36 = vector.shape_cast %35 : vector<1x8x8xf32> to vector<8x8xf32>
    %c1_54 = arith.constant 1 : index
    %c0_55 = arith.constant 0 : index
    %c0_56 = arith.constant 0 : index
    %37 = vector.load %arg5[%c1_54, %c0_55, %c0_56] : memref<18x18x8xf32, #tpu.memory_space<vmem>>, vector<16x16x8xf32>
    %38 = vector.shape_cast %37 : vector<16x16x8xf32> to vector<256x8xf32>
    %c0_57 = arith.constant 0 : index
    %c0_58 = arith.constant 0 : index
    %39 = vector.load %arg6[%c0_57, %c0_58] : memref<256x8xf32, #tpu.memory_space<vmem>>, vector<256x8xf32>
    %cst_59 = arith.constant dense<0.000000e+00> : vector<256x8xf32>
    %40 = tpu.matmul %38, %36, %cst_59 {dimension_numbers = #tpu.dot_dimension_numbers<[1], [0], [0], [1], [0, 0, 1, 1], [], []>} : vector<256x8xf32>, vector<8x8xf32>, vector<256x8xf32> -> vector<256x8xf32>
    %41 = arith.addf %39, %40 : vector<256x8xf32>
    %c0_60 = arith.constant 0 : index
    %c0_61 = arith.constant 0 : index
    %42 = vector.load %arg6[%c0_60, %c0_61] : memref<256x8xf32, #tpu.memory_space<vmem>>, vector<256x8xf32>
    tpu.vector_store %arg6[%c0_60, %c0_61], %41 {strides = array<i32>} : memref<256x8xf32, #tpu.memory_space<vmem>>, vector<256x8xf32>,
    %c4 = arith.constant 4 : index
    %c0_62 = arith.constant 0 : index
    %c0_63 = arith.constant 0 : index
    %43 = vector.load %arg2[%c4, %c0_62, %c0_63] : memref<9x8x8xf32, #tpu.memory_space<vmem>>, vector<1x8x8xf32>
    %44 = vector.shape_cast %43 : vector<1x8x8xf32> to vector<8x8xf32>
    %c1_64 = arith.constant 1 : index
    %c1_65 = arith.constant 1 : index
    %c0_66 = arith.constant 0 : index
    %45 = vector.load %arg5[%c1_64, %c1_65, %c0_66] : memref<18x18x8xf32, #tpu.memory_space<vmem>>, vector<16x16x8xf32>
    %46 = vector.shape_cast %45 : vector<16x16x8xf32> to vector<256x8xf32>
    %c0_67 = arith.constant 0 : index
    %c0_68 = arith.constant 0 : index
    %47 = vector.load %arg6[%c0_67, %c0_68] : memref<256x8xf32, #tpu.memory_space<vmem>>, vector<256x8xf32>
    %cst_69 = arith.constant dense<0.000000e+00> : vector<256x8xf32>
    %48 = tpu.matmul %46, %44, %cst_69 {dimension_numbers = #tpu.dot_dimension_numbers<[1], [0], [0], [1], [0, 0, 1, 1], [], []>} : vector<256x8xf32>, vector<8x8xf32>, vector<256x8xf32> -> vector<256x8xf32>
    %49 = arith.addf %47, %48 : vector<256x8xf32>
    %c0_70 = arith.constant 0 : index
    %c0_71 = arith.constant 0 : index
    %50 = vector.load %arg6[%c0_70, %c0_71] : memref<256x8xf32, #tpu.memory_space<vmem>>, vector<256x8xf32>
    tpu.vector_store %arg6[%c0_70, %c0_71], %49 {strides = array<i32>} : memref<256x8xf32, #tpu.memory_space<vmem>>, vector<256x8xf32>,
    %c5 = arith.constant 5 : index
    %c0_72 = arith.constant 0 : index
    %c0_73 = arith.constant 0 : index
    %51 = vector.load %arg2[%c5, %c0_72, %c0_73] : memref<9x8x8xf32, #tpu.memory_space<vmem>>, vector<1x8x8xf32>
    %52 = vector.shape_cast %51 : vector<1x8x8xf32> to vector<8x8xf32>
    %c1_74 = arith.constant 1 : index
    %c2_75 = arith.constant 2 : index
    %c0_76 = arith.constant 0 : index
    %53 = vector.load %arg5[%c1_74, %c2_75, %c0_76] : memref<18x18x8xf32, #tpu.memory_space<vmem>>, vector<16x16x8xf32>
    %54 = vector.shape_cast %53 : vector<16x16x8xf32> to vector<256x8xf32>
    %c0_77 = arith.constant 0 : index
    %c0_78 = arith.constant 0 : index
    %55 = vector.load %arg6[%c0_77, %c0_78] : memref<256x8xf32, #tpu.memory_space<vmem>>, vector<256x8xf32>
    %cst_79 = arith.constant dense<0.000000e+00> : vector<256x8xf32>
    %56 = tpu.matmul %54, %52, %cst_79 {dimension_numbers = #tpu.dot_dimension_numbers<[1], [0], [0], [1], [0, 0, 1, 1], [], []>} : vector<256x8xf32>, vector<8x8xf32>, vector<256x8xf32> -> vector<256x8xf32>
    %57 = arith.addf %55, %56 : vector<256x8xf32>
    %c0_80 = arith.constant 0 : index
    %c0_81 = arith.constant 0 : index
    %58 = vector.load %arg6[%c0_80, %c0_81] : memref<256x8xf32, #tpu.memory_space<vmem>>, vector<256x8xf32>
    tpu.vector_store %arg6[%c0_80, %c0_81], %57 {strides = array<i32>} : memref<256x8xf32, #tpu.memory_space<vmem>>, vector<256x8xf32>,
    %c6 = arith.constant 6 : index
    %c0_82 = arith.constant 0 : index
    %c0_83 = arith.constant 0 : index
    %59 = vector.load %arg2[%c6, %c0_82, %c0_83] : memref<9x8x8xf32, #tpu.memory_space<vmem>>, vector<1x8x8xf32>
    %60 = vector.shape_cast %59 : vector<1x8x8xf32> to vector<8x8xf32>
    %c2_84 = arith.constant 2 : index
    %c0_85 = arith.constant 0 : index
    %c0_86 = arith.constant 0 : index
    %61 = vector.load %arg5[%c2_84, %c0_85, %c0_86] : memref<18x18x8xf32, #tpu.memory_space<vmem>>, vector<16x16x8xf32>
    %62 = vector.shape_cast %61 : vector<16x16x8xf32> to vector<256x8xf32>
    %c0_87 = arith.constant 0 : index
    %c0_88 = arith.constant 0 : index
    %63 = vector.load %arg6[%c0_87, %c0_88] : memref<256x8xf32, #tpu.memory_space<vmem>>, vector<256x8xf32>
    %cst_89 = arith.constant dense<0.000000e+00> : vector<256x8xf32>
    %64 = tpu.matmul %62, %60, %cst_89 {dimension_numbers = #tpu.dot_dimension_numbers<[1], [0], [0], [1], [0, 0, 1, 1], [], []>} : vector<256x8xf32>, vector<8x8xf32>, vector<256x8xf32> -> vector<256x8xf32>
    %65 = arith.addf %63, %64 : vector<256x8xf32>
    %c0_90 = arith.constant 0 : index
    %c0_91 = arith.constant 0 : index
    %66 = vector.load %arg6[%c0_90, %c0_91] : memref<256x8xf32, #tpu.memory_space<vmem>>, vector<256x8xf32>
    tpu.vector_store %arg6[%c0_90, %c0_91], %65 {strides = array<i32>} : memref<256x8xf32, #tpu.memory_space<vmem>>, vector<256x8xf32>,
    %c7 = arith.constant 7 : index
    %c0_92 = arith.constant 0 : index
    %c0_93 = arith.constant 0 : index
    %67 = vector.load %arg2[%c7, %c0_92, %c0_93] : memref<9x8x8xf32, #tpu.memory_space<vmem>>, vector<1x8x8xf32>
    %68 = vector.shape_cast %67 : vector<1x8x8xf32> to vector<8x8xf32>
    %c2_94 = arith.constant 2 : index
    %c1_95 = arith.constant 1 : index
    %c0_96 = arith.constant 0 : index
    %69 = vector.load %arg5[%c2_94, %c1_95, %c0_96] : memref<18x18x8xf32, #tpu.memory_space<vmem>>, vector<16x16x8xf32>
    %70 = vector.shape_cast %69 : vector<16x16x8xf32> to vector<256x8xf32>
    %c0_97 = arith.constant 0 : index
    %c0_98 = arith.constant 0 : index
    %71 = vector.load %arg6[%c0_97, %c0_98] : memref<256x8xf32, #tpu.memory_space<vmem>>, vector<256x8xf32>
    %cst_99 = arith.constant dense<0.000000e+00> : vector<256x8xf32>
    %72 = tpu.matmul %70, %68, %cst_99 {dimension_numbers = #tpu.dot_dimension_numbers<[1], [0], [0], [1], [0, 0, 1, 1], [], []>} : vector<256x8xf32>, vector<8x8xf32>, vector<256x8xf32> -> vector<256x8xf32>
    %73 = arith.addf %71, %72 : vector<256x8xf32>
    %c0_100 = arith.constant 0 : index
    %c0_101 = arith.constant 0 : index
    %74 = vector.load %arg6[%c0_100, %c0_101] : memref<256x8xf32, #tpu.memory_space<vmem>>, vector<256x8xf32>
    tpu.vector_store %arg6[%c0_100, %c0_101], %73 {strides = array<i32>} : memref<256x8xf32, #tpu.memory_space<vmem>>, vector<256x8xf32>,
    %c8 = arith.constant 8 : index
    %c0_102 = arith.constant 0 : index
    %c0_103 = arith.constant 0 : index
    %75 = vector.load %arg2[%c8, %c0_102, %c0_103] : memref<9x8x8xf32, #tpu.memory_space<vmem>>, vector<1x8x8xf32>
    %76 = vector.shape_cast %75 : vector<1x8x8xf32> to vector<8x8xf32>
    %c2_104 = arith.constant 2 : index
    %c2_105 = arith.constant 2 : index
    %c0_106 = arith.constant 0 : index
    %77 = vector.load %arg5[%c2_104, %c2_105, %c0_106] : memref<18x18x8xf32, #tpu.memory_space<vmem>>, vector<16x16x8xf32>
    %78 = vector.shape_cast %77 : vector<16x16x8xf32> to vector<256x8xf32>
    %c0_107 = arith.constant 0 : index
    %c0_108 = arith.constant 0 : index
    %79 = vector.load %arg6[%c0_107, %c0_108] : memref<256x8xf32, #tpu.memory_space<vmem>>, vector<256x8xf32>
    %cst_109 = arith.constant dense<0.000000e+00> : vector<256x8xf32>
    %80 = tpu.matmul %78, %76, %cst_109 {dimension_numbers = #tpu.dot_dimension_numbers<[1], [0], [0], [1], [0, 0, 1, 1], [], []>} : vector<256x8xf32>, vector<8x8xf32>, vector<256x8xf32> -> vector<256x8xf32>
    %81 = arith.addf %79, %80 : vector<256x8xf32>
    %c0_110 = arith.constant 0 : index
    %c0_111 = arith.constant 0 : index
    %82 = vector.load %arg6[%c0_110, %c0_111] : memref<256x8xf32, #tpu.memory_space<vmem>>, vector<256x8xf32>
    tpu.vector_store %arg6[%c0_110, %c0_111], %81 {strides = array<i32>} : memref<256x8xf32, #tpu.memory_space<vmem>>, vector<256x8xf32>,
    %c0_112 = arith.constant 0 : index
    %c0_113 = arith.constant 0 : index
    %83 = vector.load %arg6[%c0_112, %c0_113] : memref<256x8xf32, #tpu.memory_space<vmem>>, vector<256x8xf32>
    %c0_114 = arith.constant 0 : index
    %c0_115 = arith.constant 0 : index
    %84 = vector.load %arg3[%c0_114, %c0_115] : memref<1x8xf32, #tpu.memory_space<vmem>>, vector<1x8xf32>
    %85 = vector.broadcast %84 : vector<1x8xf32> to vector<256x8xf32>
    %86 = arith.addf %83, %85 : vector<256x8xf32>
    %cst_116 = arith.constant 0.000000e+00 : f32
    %87 = vector.broadcast %cst_116 : f32 to vector<256x8xf32>
    %88 = arith.cmpf oge, %86, %87 : vector<256x8xf32>
    %cst_117 = arith.constant 2.000000e-01 : f32
    %89 = vector.broadcast %cst_117 : f32 to vector<256x8xf32>
    %90 = arith.mulf %89, %86 : vector<256x8xf32>
    %91 = arith.select %88, %86, %90 : vector<256x8xi1>, vector<256x8xf32>
    %92 = vector.shape_cast %91 : vector<256x8xf32> to vector<1x16x16x8xf32>
    %c0_118 = arith.constant 0 : index
    %c0_119 = arith.constant 0 : index
    %c0_120 = arith.constant 0 : index
    %c0_121 = arith.constant 0 : index
    %93 = vector.load %arg4[%c0_118, %c0_119, %c0_120, %c0_121] : memref<1x16x16x8xf32, #tpu.memory_space<vmem>>, vector<1x16x16x8xf32>
    tpu.vector_store %arg4[%c0_118, %c0_119, %c0_120, %c0_121], %92 {strides = array<i32>} : memref<1x16x16x8xf32, #tpu.memory_space<vmem>>, vector<1x16x16x8xf32>,
    return
  }
  func.func @transform_0(%arg0: i32) -> (i32, i32, i32, i32) {
    %c0_i32 = arith.constant 0 : i32
    %c0_i32_0 = arith.constant 0 : i32
    %c0_i32_1 = arith.constant 0 : i32
    %c0_i32_2 = arith.constant 0 : i32
    return %arg0, %c0_i32, %c0_i32_0, %c0_i32_1 : i32, i32, i32, i32
  }
  func.func @transform_1(%arg0: i32) -> (i32, i32, i32) {
    %c0_i32 = arith.constant 0 : i32
    %c0_i32_0 = arith.constant 0 : i32
    %c0_i32_1 = arith.constant 0 : i32
    %c0_i32_2 = arith.constant 0 : i32
    return %c0_i32, %c0_i32_0, %c0_i32_1 : i32, i32, i32
  }
  func.func @transform_2(%arg0: i32) -> (i32, i32) {
    %c0_i32 = arith.constant 0 : i32
    %c0_i32_0 = arith.constant 0 : i32
    %c0_i32_1 = arith.constant 0 : i32
    return %c0_i32, %c0_i32_0 : i32, i32
  }
  func.func @transform_3(%arg0: i32) -> (i32, i32, i32, i32) {
    %c0_i32 = arith.constant 0 : i32
    %c0_i32_0 = arith.constant 0 : i32
    %c0_i32_1 = arith.constant 0 : i32
    %c0_i32_2 = arith.constant 0 : i32
    return %arg0, %c0_i32, %c0_i32_0, %c0_i32_1 : i32, i32, i32, i32
  }
}

</mosaic_0001>

<llo_original>
// kernel: tpu_custom_call.1
$region0: #{tpu_custom_call.1}
  #allocation0 [shape = 'u32[]', space=smem, size = 0x4, offset = 0x4, fixed_abs, tag = 'smem constant byte address 0x4 - core index']
  #allocation1 [shape = 'u32[72,128]{1,0:T(1,128)}', space=vmem, size = 0x9000, scoped, tag = 'internal scratch']
  #allocation2 [shape = 'f32[18,18,8]{2,1,0:T(8,128)}', space=vmem, size = 0x36000, scoped, tag = 'scratch operand']
  #allocation3 [shape = 'f32[256,8]{1,0:T(8,128)}', space=vmem, size = 0x20000, scoped, tag = 'scratch operand']
  %s0 = inlined_call_operand.vmem [shape: f32[2,16,16,8], index: 0, kind: input, shape index: {}]
  %s1 = inlined_call_operand.vmem [shape: f32[9,8,8], index: 1, kind: input, shape index: {}]
  %s2 = inlined_call_operand.vmem [shape: f32[1,8], index: 2, kind: input, shape index: {}]
  %s3 = inlined_call_operand.vmem [shape: f32[2,16,16,8], index: 3, kind: output, shape index: {}]
  %s4 = sld [smem:[#allocation0]]
  $region45: #{tpu_custom_call.1} parent=0
    _
  %s6 = ssub.s32 1, %s4
  %s7 = scalar_select 0, %s6, %s4
  loop: start=0, step=1, limit=4
  $region2: #{tpu_custom_call.1} parent=0 // loop_pre_header
    _
  $region3: #{tpu_custom_call.1} parent=0 // loop_header
    %s9 = sphi 0, %s13
    %p10 = scmp.ge.s32.totalorder %s9, 4
    %s19 = sphi 0, %s21
    %s22 = sphi 0, %s19
    %s23 = sphi 0, %s22
    %s39 = sphi 0, %s23
    %s43 = sphi 0, %s43
    %s45 = sphi 0, %s43
    %s46 = sphi 0, %s45
    %s60 = sphi 0, %s46
    %s64 = sphi 0, %s64
    %s66 = sphi 0, %s64
    %s67 = sphi 0, %s66
    %s81 = sphi 0, %s67
    %s87 = sphi 0, %s89
    %s90 = sphi 0, %s87
    %s91 = sphi 0, %s90
    %s107 = sphi 0, %s91
  $region4: #{tpu_custom_call.1} parent=0 // loop_header_branch
    %12 = sbr.rel (%p10) target = $region8
  $region5: #{tpu_custom_call.1} parent=0 // loop_body
    %s14 = ssub.s32 %s9, 1
    %s15 = ssub.s32 %s9, 2
    %s16 = sadd.s32 %s9, 1
    %s17 = ssub.s32 %s9, %s16
    %p18 = scmp.eq.s32.totalorder %s17, 0
    %s20 = sadd.s32 %s19, 1
    %s21 = scalar_select %p18, %s19, %s20
    %p24 = pneg %p18
    %p25 = scmp.eq.s32.totalorder %s9, 1
    %p26 = por %p24, %p25
    %p27 = scmp.ne.s32.totalorder %s19, %s22
    %p28 = scmp.eq.s32.totalorder %s9, 0
    %p29 = por %p27, %p28
    %p30 = scmp.ne.s32.totalorder %s19, %s22
    %p31 = scmp.eq.s32.totalorder %s14, 1
    %p32 = por %p30, %p31
    %p33 = scmp.ne.s32.totalorder %s22, %s23
    %p34 = scmp.eq.s32.totalorder %s14, 0
    %p35 = por %p33, %p34
    %p36 = scmp.ne.s32.totalorder %s22, %s23
    %p37 = scmp.eq.s32.totalorder %s15, 1
    %p38 = por %p36, %p37
    %p40 = scmp.ne.s32.totalorder %s23, %s39
    %p41 = scmp.eq.s32.totalorder %s15, 0
    %p42 = por %p40, %p41
    %s44 = sadd.s32 %s43, 1
    %p47 = scmp.eq.s32.totalorder %s9, 1
    %p48 = scmp.ne.s32.totalorder %s43, %s45
    %p49 = scmp.eq.s32.totalorder %s9, 0
    %p50 = por %p48, %p49
    %p51 = scmp.ne.s32.totalorder %s43, %s45
    %p52 = scmp.eq.s32.totalorder %s14, 1
    %p53 = por %p51, %p52
    %p54 = scmp.ne.s32.totalorder %s45, %s46
    %p55 = scmp.eq.s32.totalorder %s14, 0
    %p56 = por %p54, %p55
    %p57 = scmp.ne.s32.totalorder %s45, %s46
    %p58 = scmp.eq.s32.totalorder %s15, 1
    %p59 = por %p57, %p58
    %p61 = scmp.ne.s32.totalorder %s46, %s60
    %p62 = scmp.eq.s32.totalorder %s15, 0
    %p63 = por %p61, %p62
    %s65 = sadd.s32 %s64, 1
    %p68 = scmp.eq.s32.totalorder %s9, 1
    %p69 = scmp.ne.s32.totalorder %s64, %s66
    %p70 = scmp.eq.s32.totalorder %s9, 0
    %p71 = por %p69, %p70
    %p72 = scmp.ne.s32.totalorder %s64, %s66
    %p73 = scmp.eq.s32.totalorder %s14, 1
    %p74 = por %p72, %p73
    %p75 = scmp.ne.s32.totalorder %s66, %s67
    %p76 = scmp.eq.s32.totalorder %s14, 0
    %p77 = por %p75, %p76
    %p78 = scmp.ne.s32.totalorder %s66, %s67
    %p79 = scmp.eq.s32.totalorder %s15, 1
    %p80 = por %p78, %p79
    %p82 = scmp.ne.s32.totalorder %s67, %s81
    %p83 = scmp.eq.s32.totalorder %s15, 0
    %p84 = por %p82, %p83
    %s85 = ssub.s32 %s9, %s16
    %p86 = scmp.eq.s32.totalorder %s85, 0
    %s88 = sadd.s32 %s87, 1
    %s89 = scalar_select %p86, %s87, %s88
    %p92 = pneg %p86
    %p93 = scmp.eq.s32.totalorder %s9, 1
    %p94 = por %p92, %p93
    %p95 = scmp.ne.s32.totalorder %s87, %s90
    %p96 = scmp.eq.s32.totalorder %s9, 0
    %p97 = por %p95, %p96
    %p98 = scmp.ne.s32.totalorder %s87, %s90
    %p99 = scmp.eq.s32.totalorder %s14, 1
    %p100 = por %p98, %p99
    %p101 = scmp.ne.s32.totalorder %s90, %s91
    %p102 = scmp.eq.s32.totalorder %s14, 0
    %p103 = por %p101, %p102
    %p104 = scmp.ne.s32.totalorder %s90, %s91
    %p105 = scmp.eq.s32.totalorder %s15, 1
    %p106 = por %p104, %p105
    %p108 = scmp.ne.s32.totalorder %s91, %s107
    %p109 = scmp.eq.s32.totalorder %s15, 0
    %p110 = por %p108, %p109
    %p111 = scmp.le.s32.totalorder 1, %s9
    %p112 = scmp.lt.s32.totalorder %s9, 3
    %p113 = pnand %p111, %p112
    %p114 = pneg %p113
    // Predicated region
    $region9: #{tpu_custom_call.1} parent=5 // pred_check
      _
    $region10: #{tpu_custom_call.1} parent=5 // pred_check_branch
      %116 = sbr.rel (%p113) target = $region12
    $region11: #{tpu_custom_call.1} parent=5 // pred_region
      %s117 = ssub.s32 %s9, 1
      // Predicated region
      $region13: #{tpu_custom_call.1} parent=11 // pred_check
        %p118 = pneg %p56
      $region14: #{tpu_custom_call.1} parent=11 // pred_check_branch
        %120 = sbr.rel (%p118) target = $region16
      $region15: #{tpu_custom_call.1} parent=11 // pred_region
        _
      $region16: #{tpu_custom_call.1} parent=11 // pred_fallthru
        _
      // Predicated region
      $region17: #{tpu_custom_call.1} parent=11 // pred_check
        %p121 = pneg %p77
      $region18: #{tpu_custom_call.1} parent=11 // pred_check_branch
        %123 = sbr.rel (%p121) target = $region20
      $region19: #{tpu_custom_call.1} parent=11 // pred_region
        _
      $region20: #{tpu_custom_call.1} parent=11 // pred_fallthru
        _
    $region12: #{tpu_custom_call.1} parent=5 // pred_fallthru
      _
    %p124 = scmp.lt.s32.totalorder %s9, 2
    // Predicated region
    $region21: #{tpu_custom_call.1} parent=5 // pred_check
      %p125 = pneg %p124
    $region22: #{tpu_custom_call.1} parent=5 // pred_check_branch
      %127 = sbr.rel (%p125) target = $region24
    $region23: #{tpu_custom_call.1} parent=5 // pred_region
      // Predicated region
      $region25: #{tpu_custom_call.1} parent=23 // pred_check
        %p128 = pneg %p29
      $region26: #{tpu_custom_call.1} parent=23 // pred_check_branch
        %130 = sbr.rel (%p128) target = $region28
      $region27: #{tpu_custom_call.1} parent=23 // pred_region
        %p131 = scmp.lt.s32.totalorder %s9, 1
        %s132 = scalar_select %p131, %s9, 1
        %s133 = smul.addr %s132, 32
        %s134 = smul.addr %s133, 8
        %s135 = scalar_lea.vmem %s0, %s134
      $region28: #{tpu_custom_call.1} parent=23 // pred_fallthru
        _
    $region24: #{tpu_custom_call.1} parent=5 // pred_fallthru
      _
    %p136 = scmp.le.s32.totalorder 1, %s9
    %p137 = scmp.lt.s32.totalorder %s9, 3
    %p138 = pnand %p136, %p137
    %p139 = pneg %p138
    // Predicated region
    $region29: #{tpu_custom_call.1} parent=5 // pred_check
      _
    $region30: #{tpu_custom_call.1} parent=5 // pred_check_branch
      %141 = sbr.rel (%p138) target = $region32
    $region31: #{tpu_custom_call.1} parent=5 // pred_region
      %s142 = ssub.s32 %s9, 1
      %p143 = scmp.lt.s32.totalorder %s14, 1
      %s144 = scalar_select %p143, %s14, 1
      %s145 = smul.addr %s144, 32
      %s146 = smul.addr %s145, 8
      %s147 = scalar_lea.vmem %s0, %s146
      %p148 = pneg %p35
      %p149 = pneg %p32
      %p150 = pneg %p56
      %p151 = pneg %p53
      %p152 = pneg %p77
      %p153 = pneg %p74
      %p154 = pneg %p103
      %p155 = pneg %p100
      %p156 = scmp.lt.s32.totalorder %s14, 1
      %s157 = scalar_select %p156, %s14, 1
      %s158 = smul.addr %s157, 32
      %s159 = smul.addr %s158, 8
      %s160 = scalar_lea.vmem %s3, %s159
      %p161 = scmp.lt.s32.totalorder %s14, 1
      %s162 = scalar_select %p161, %s14, 1
      %s163 = smul.addr %s162, 32
      %s164 = smul.addr %s163, 8
      %s165 = scalar_lea.vmem %s0, %s164
      %p166 = scmp.lt.s32.totalorder %s14, 1
      %s167 = scalar_select %p166, %s14, 1
      %s168 = smul.addr %s167, 32
      %s169 = smul.addr %s168, 8
      %s170 = scalar_lea.vmem %s3, %s169
      %vm171 = vcmask 64512
      %172 = vst.msk [vmem:[#allocation2] sm:$0xff] %vm171, 0.0
      %173 = vst.msk [vmem:[#allocation2 + $0x8] sm:$0xff] %vm171, 0.0
      %vm174 = vcmask 58368
      %175 = vst.msk [vmem:[#allocation2 + $0x10] sm:$0x3] %vm174, 0.0
      %s176 = scalar_lea.vmem [#allocation2], 408
      %177 = vst.msk [vmem:[%s176] sm:$0xff] %vm171, 0.0
      %178 = vst.msk [vmem:[%s176 + $0x8] sm:$0xff] %vm171, 0.0
      %179 = vst.msk [vmem:[%s176 + $0x10] sm:$0x3] %vm174, 0.0
      %vm180 = vcmask 57344
      %181 = vst.msk [vmem:[#allocation2] sm:$0x1] %vm180, 0.0
      %182 = vst.msk [vmem:[#allocation2 + $0x18] sm:$0x1] %vm180, 0.0
      %183 = vst.msk [vmem:[#allocation2 + $0x30] sm:$0x1] %vm180, 0.0
      %184 = vst.msk [vmem:[#allocation2 + $0x48] sm:$0x1] %vm180, 0.0
      %185 = vst.msk [vmem:[#allocation2 + $0x60] sm:$0x1] %vm180, 0.0
      %186 = vst.msk [vmem:[#allocation2 + $0x78] sm:$0x1] %vm180, 0.0
      %187 = vst.msk [vmem:[#allocation2 + $0x90] sm:$0x1] %vm180, 0.0
      %188 = vst.msk [vmem:[#allocation2 + $0xa8] sm:$0x1] %vm180, 0.0
      %189 = vst.msk [vmem:[#allocation2 + $0xc0] sm:$0x1] %vm180, 0.0
      %190 = vst.msk [vmem:[#allocation2 + $0xd8] sm:$0x1] %vm180, 0.0
      %191 = vst.msk [vmem:[#allocation2 + $0xf0] sm:$0x1] %vm180, 0.0
      %192 = vst.msk [vmem:[#allocation2 + $0x108] sm:$0x1] %vm180, 0.0
      %193 = vst.msk [vmem:[#allocation2 + $0x120] sm:$0x1] %vm180, 0.0
      %194 = vst.msk [vmem:[#allocation2 + $0x138] sm:$0x1] %vm180, 0.0
      %195 = vst.msk [vmem:[#allocation2 + $0x150] sm:$0x1] %vm180, 0.0
      %196 = vst.msk [vmem:[#allocation2 + $0x168] sm:$0x1] %vm180, 0.0
      %197 = vst.msk [vmem:[#allocation2 + $0x180] sm:$0x1] %vm180, 0.0
      %198 = vst.msk [vmem:[#allocation2 + $0x198] sm:$0x1] %vm180, 0.0
      %199 = vst.msk [vmem:[#allocation2 + $0x11] sm:$0x1] %vm180, 0.0
      %200 = vst.msk [vmem:[#allocation2 + $0x29] sm:$0x1] %vm180, 0.0
      %201 = vst.msk [vmem:[#allocation2 + $0x41] sm:$0x1] %vm180, 0.0
      %202 = vst.msk [vmem:[#allocation2 + $0x59] sm:$0x1] %vm180, 0.0
      %203 = vst.msk [vmem:[#allocation2 + $0x71] sm:$0x1] %vm180, 0.0
      %204 = vst.msk [vmem:[#allocation2 + $0x89] sm:$0x1] %vm180, 0.0
      %205 = vst.msk [vmem:[#allocation2 + $0xa1] sm:$0x1] %vm180, 0.0
      %206 = vst.msk [vmem:[#allocation2 + $0xb9] sm:$0x1] %vm180, 0.0
      %207 = vst.msk [vmem:[#allocation2 + $0xd1] sm:$0x1] %vm180, 0.0
      %208 = vst.msk [vmem:[#allocation2 + $0xe9] sm:$0x1] %vm180, 0.0
      %209 = vst.msk [vmem:[#allocation2 + $0x101] sm:$0x1] %vm180, 0.0
      %210 = vst.msk [vmem:[#allocation2 + $0x119] sm:$0x1] %vm180, 0.0
      %211 = vst.msk [vmem:[#allocation2 + $0x131] sm:$0x1] %vm180, 0.0
      %212 = vst.msk [vmem:[#allocation2 + $0x149] sm:$0x1] %vm180, 0.0
      %213 = vst.msk [vmem:[#allocation2 + $0x161] sm:$0x1] %vm180, 0.0
      %214 = vst.msk [vmem:[#allocation2 + $0x179] sm:$0x1] %vm180, 0.0
      %215 = vst.msk [vmem:[#allocation2 + $0x191] sm:$0x1] %vm180, 0.0
      %216 = vst.msk [vmem:[#allocation2 + $0x1a9] sm:$0x1] %vm180, 0.0
      %v217 = vld [vmem:[%s165] sm:$0xff]
      %v218 = vld [vmem:[%s165 + $0x8] sm:$0xff]
      %v219 = vld [vmem:[%s165 + $0x10] sm:$0xff]
      %v220 = vld [vmem:[%s165 + $0x18] sm:$0xff]
      %v221 = vld [vmem:[%s165 + $0x20] sm:$0xff]
      %v222 = vld [vmem:[%s165 + $0x28] sm:$0xff]
      %v223 = vld [vmem:[%s165 + $0x30] sm:$0xff]
      %v224 = vld [vmem:[%s165 + $0x38] sm:$0xff]
      %v225 = vld [vmem:[%s165 + $0x40] sm:$0xff]
      %v226 = vld [vmem:[%s165 + $0x48] sm:$0xff]
      %v227 = vld [vmem:[%s165 + $0x50] sm:$0xff]
      %v228 = vld [vmem:[%s165 + $0x58] sm:$0xff]
      %v229 = vld [vmem:[%s165 + $0x60] sm:$0xff]
      %v230 = vld [vmem:[%s165 + $0x68] sm:$0xff]
      %v231 = vld [vmem:[%s165 + $0x70] sm:$0xff]
      %v232 = vld [vmem:[%s165 + $0x78] sm:$0xff]
      %v233 = vld [vmem:[%s165 + $0x80] sm:$0xff]
      %v234 = vld [vmem:[%s165 + $0x88] sm:$0xff]
      %v235 = vld [vmem:[%s165 + $0x90] sm:$0xff]
      %v236 = vld [vmem:[%s165 + $0x98] sm:$0xff]
      %v237 = vld [vmem:[%s165 + $0xa0] sm:$0xff]
      %v238 = vld [vmem:[%s165 + $0xa8] sm:$0xff]
      %v239 = vld [vmem:[%s165 + $0xb0] sm:$0xff]
      %v240 = vld [vmem:[%s165 + $0xb8] sm:$0xff]
      %v241 = vld [vmem:[%s165 + $0xc0] sm:$0xff]
      %v242 = vld [vmem:[%s165 + $0xc8] sm:$0xff]
      %v243 = vld [vmem:[%s165 + $0xd0] sm:$0xff]
      %v244 = vld [vmem:[%s165 + $0xd8] sm:$0xff]
      %v245 = vld [vmem:[%s165 + $0xe0] sm:$0xff]
      %v246 = vld [vmem:[%s165 + $0xe8] sm:$0xff]
      %v247 = vld [vmem:[%s165 + $0xf0] sm:$0xff]
      %v248 = vld [vmem:[%s165 + $0xf8] sm:$0xff]
      %s249 = scalar_lea.vmem [#allocation2], 24
      %250 = vst.msk [vmem:[%s249 + $0x1] sm:$0xff] %vm171, %v217
      %251 = vst.msk [vmem:[%s249 + $0x9] sm:$0xff] %vm171, %v218
      %252 = vst.msk [vmem:[%s249 + $0x19] sm:$0xff] %vm171, %v219
      %253 = vst.msk [vmem:[%s249 + $0x21] sm:$0xff] %vm171, %v220
      %254 = vst.msk [vmem:[%s249 + $0x31] sm:$0xff] %vm171, %v221
      %255 = vst.msk [vmem:[%s249 + $0x39] sm:$0xff] %vm171, %v222
      %256 = vst.msk [vmem:[%s249 + $0x49] sm:$0xff] %vm171, %v223
      %257 = vst.msk [vmem:[%s249 + $0x51] sm:$0xff] %vm171, %v224
      %258 = vst.msk [vmem:[%s249 + $0x61] sm:$0xff] %vm171, %v225
      %259 = vst.msk [vmem:[%s249 + $0x69] sm:$0xff] %vm171, %v226
      %260 = vst.msk [vmem:[%s249 + $0x79] sm:$0xff] %vm171, %v227
      %261 = vst.msk [vmem:[%s249 + $0x81] sm:$0xff] %vm171, %v228
      %262 = vst.msk [vmem:[%s249 + $0x91] sm:$0xff] %vm171, %v229
      %263 = vst.msk [vmem:[%s249 + $0x99] sm:$0xff] %vm171, %v230
      %264 = vst.msk [vmem:[%s249 + $0xa9] sm:$0xff] %vm171, %v231
      %265 = vst.msk [vmem:[%s249 + $0xb1] sm:$0xff] %vm171, %v232
      %266 = vst.msk [vmem:[%s249 + $0xc1] sm:$0xff] %vm171, %v233
      %267 = vst.msk [vmem:[%s249 + $0xc9] sm:$0xff] %vm171, %v234
      %268 = vst.msk [vmem:[%s249 + $0xd9] sm:$0xff] %vm171, %v235
      %269 = vst.msk [vmem:[%s249 + $0xe1] sm:$0xff] %vm171, %v236
      %270 = vst.msk [vmem:[%s249 + $0xf1] sm:$0xff] %vm171, %v237
      %271 = vst.msk [vmem:[%s249 + $0xf9] sm:$0xff] %vm171, %v238
      %272 = vst.msk [vmem:[%s249 + $0x109] sm:$0xff] %vm171, %v239
      %273 = vst.msk [vmem:[%s249 + $0x111] sm:$0xff] %vm171, %v240
      %274 = vst.msk [vmem:[%s249 + $0x121] sm:$0xff] %vm171, %v241
      %275 = vst.msk [vmem:[%s249 + $0x129] sm:$0xff] %vm171, %v242
      %276 = vst.msk [vmem:[%s249 + $0x139] sm:$0xff] %vm171, %v243
      %277 = vst.msk [vmem:[%s249 + $0x141] sm:$0xff] %vm171, %v244
      %278 = vst.msk [vmem:[%s249 + $0x151] sm:$0xff] %vm171, %v245
      %279 = vst.msk [vmem:[%s249 + $0x159] sm:$0xff] %vm171, %v246
      %280 = vst.msk [vmem:[%s249 + $0x169] sm:$0xff] %vm171, %v247
      %281 = vst.msk [vmem:[%s249 + $0x171] sm:$0xff] %vm171, %v248
      %282 = vst.msk [vmem:[#allocation3] sm:$0xff] %vm171, 0.0
      %283 = vst.msk [vmem:[#allocation3 + $0x8] sm:$0xff] %vm171, 0.0
      %284 = vst.msk [vmem:[#allocation3 + $0x10] sm:$0xff] %vm171, 0.0
      %285 = vst.msk [vmem:[#allocation3 + $0x18] sm:$0xff] %vm171, 0.0
      %286 = vst.msk [vmem:[#allocation3 + $0x20] sm:$0xff] %vm171, 0.0
      %287 = vst.msk [vmem:[#allocation3 + $0x28] sm:$0xff] %vm171, 0.0
      %288 = vst.msk [vmem:[#allocation3 + $0x30] sm:$0xff] %vm171, 0.0
      %289 = vst.msk [vmem:[#allocation3 + $0x38] sm:$0xff] %vm171, 0.0
      %290 = vst.msk [vmem:[#allocation3 + $0x40] sm:$0xff] %vm171, 0.0
      %291 = vst.msk [vmem:[#allocation3 + $0x48] sm:$0xff] %vm171, 0.0
      %292 = vst.msk [vmem:[#allocation3 + $0x50] sm:$0xff] %vm171, 0.0
      %293 = vst.msk [vmem:[#allocation3 + $0x58] sm:$0xff] %vm171, 0.0
      %294 = vst.msk [vmem:[#allocation3 + $0x60] sm:$0xff] %vm171, 0.0
      %295 = vst.msk [vmem:[#allocation3 + $0x68] sm:$0xff] %vm171, 0.0
      %296 = vst.msk [vmem:[#allocation3 + $0x70] sm:$0xff] %vm171, 0.0
      %297 = vst.msk [vmem:[#allocation3 + $0x78] sm:$0xff] %vm171, 0.0
      %298 = vst.msk [vmem:[#allocation3 + $0x80] sm:$0xff] %vm171, 0.0
      %299 = vst.msk [vmem:[#allocation3 + $0x88] sm:$0xff] %vm171, 0.0
      %300 = vst.msk [vmem:[#allocation3 + $0x90] sm:$0xff] %vm171, 0.0
      %301 = vst.msk [vmem:[#allocation3 + $0x98] sm:$0xff] %vm171, 0.0
      %302 = vst.msk [vmem:[#allocation3 + $0xa0] sm:$0xff] %vm171, 0.0
      %303 = vst.msk [vmem:[#allocation3 + $0xa8] sm:$0xff] %vm171, 0.0
      %304 = vst.msk [vmem:[#allocation3 + $0xb0] sm:$0xff] %vm171, 0.0
      %305 = vst.msk [vmem:[#allocation3 + $0xb8] sm:$0xff] %vm171, 0.0
      %306 = vst.msk [vmem:[#allocation3 + $0xc0] sm:$0xff] %vm171, 0.0
      %307 = vst.msk [vmem:[#allocation3 + $0xc8] sm:$0xff] %vm171, 0.0
      %308 = vst.msk [vmem:[#allocation3 + $0xd0] sm:$0xff] %vm171, 0.0
      %309 = vst.msk [vmem:[#allocation3 + $0xd8] sm:$0xff] %vm171, 0.0
      %310 = vst.msk [vmem:[#allocation3 + $0xe0] sm:$0xff] %vm171, 0.0
      %311 = vst.msk [vmem:[#allocation3 + $0xe8] sm:$0xff] %vm171, 0.0
      %312 = vst.msk [vmem:[#allocation3 + $0xf0] sm:$0xff] %vm171, 0.0
      %313 = vst.msk [vmem:[#allocation3 + $0xf8] sm:$0xff] %vm171, 0.0
      %v314 = vld [vmem:[%s1] sm:$0xff]
      %v315 = vld [vmem:[#allocation2] sm:$0xff]
      %v316 = vld [vmem:[#allocation2 + $0x8] sm:$0xff]
      %v317 = vld [vmem:[#allocation2 + $0x18] sm:$0xff]
      %v318 = vld [vmem:[#allocation2 + $0x20] sm:$0xff]
      %v319 = vld [vmem:[#allocation2 + $0x30] sm:$0xff]
      %v320 = vld [vmem:[#allocation2 + $0x38] sm:$0xff]
      %v321 = vld [vmem:[#allocation2 + $0x48] sm:$0xff]
      %v322 = vld [vmem:[#allocation2 + $0x50] sm:$0xff]
      %v323 = vld [vmem:[#allocation2 + $0x60] sm:$0xff]
      %v324 = vld [vmem:[#allocation2 + $0x68] sm:$0xff]
      %v325 = vld [vmem:[#allocation2 + $0x78] sm:$0xff]
      %v326 = vld [vmem:[#allocation2 + $0x80] sm:$0xff]
      %v327 = vld [vmem:[#allocation2 + $0x90] sm:$0xff]
      %v328 = vld [vmem:[#allocation2 + $0x98] sm:$0xff]
      %v329 = vld [vmem:[#allocation2 + $0xa8] sm:$0xff]
      %v330 = vld [vmem:[#allocation2 + $0xb0] sm:$0xff]
      %v331 = vld [vmem:[#allocation2 + $0xc0] sm:$0xff]
      %v332 = vld [vmem:[#allocation2 + $0xc8] sm:$0xff]
      %v333 = vld [vmem:[#allocation2 + $0xd8] sm:$0xff]
      %v334 = vld [vmem:[#allocation2 + $0xe0] sm:$0xff]
      %v335 = vld [vmem:[#allocation2 + $0xf0] sm:$0xff]
      %v336 = vld [vmem:[#allocation2 + $0xf8] sm:$0xff]
      %v337 = vld [vmem:[#allocation2 + $0x108] sm:$0xff]
      %v338 = vld [vmem:[#allocation2 + $0x110] sm:$0xff]
      %v339 = vld [vmem:[#allocation2 + $0x120] sm:$0xff]
      %v340 = vld [vmem:[#allocation2 + $0x128] sm:$0xff]
      %v341 = vld [vmem:[#allocation2 + $0x138] sm:$0xff]
      %v342 = vld [vmem:[#allocation2 + $0x140] sm:$0xff]
      %v343 = vld [vmem:[#allocation2 + $0x150] sm:$0xff]
      %v344 = vld [vmem:[#allocation2 + $0x158] sm:$0xff]
      %v345 = vld [vmem:[#allocation2 + $0x168] sm:$0xff]
      %v346 = vld [vmem:[#allocation2 + $0x170] sm:$0xff]
      %v347 = vld [vmem:[#allocation3] sm:$0xff]
      %v348 = vld [vmem:[#allocation3 + $0x8] sm:$0xff]
      %v349 = vld [vmem:[#allocation3 + $0x10] sm:$0xff]
      %v350 = vld [vmem:[#allocation3 + $0x18] sm:$0xff]
      %v351 = vld [vmem:[#allocation3 + $0x20] sm:$0xff]
      %v352 = vld [vmem:[#allocation3 + $0x28] sm:$0xff]
      %v353 = vld [vmem:[#allocation3 + $0x30] sm:$0xff]
      %v354 = vld [vmem:[#allocation3 + $0x38] sm:$0xff]
      %v355 = vld [vmem:[#allocation3 + $0x40] sm:$0xff]
      %v356 = vld [vmem:[#allocation3 + $0x48] sm:$0xff]
      %v357 = vld [vmem:[#allocation3 + $0x50] sm:$0xff]
      %v358 = vld [vmem:[#allocation3 + $0x58] sm:$0xff]
      %v359 = vld [vmem:[#allocation3 + $0x60] sm:$0xff]
      %v360 = vld [vmem:[#allocation3 + $0x68] sm:$0xff]
      %v361 = vld [vmem:[#allocation3 + $0x70] sm:$0xff]
      %v362 = vld [vmem:[#allocation3 + $0x78] sm:$0xff]
      %v363 = vld [vmem:[#allocation3 + $0x80] sm:$0xff]
      %v364 = vld [vmem:[#allocation3 + $0x88] sm:$0xff]
      %v365 = vld [vmem:[#allocation3 + $0x90] sm:$0xff]
      %v366 = vld [vmem:[#allocation3 + $0x98] sm:$0xff]
      %v367 = vld [vmem:[#allocation3 + $0xa0] sm:$0xff]
      %v368 = vld [vmem:[#allocation3 + $0xa8] sm:$0xff]
      %v369 = vld [vmem:[#allocation3 + $0xb0] sm:$0xff]
      %v370 = vld [vmem:[#allocation3 + $0xb8] sm:$0xff]
      %v371 = vld [vmem:[#allocation3 + $0xc0] sm:$0xff]
      %v372 = vld [vmem:[#allocation3 + $0xc8] sm:$0xff]
      %v373 = vld [vmem:[#allocation3 + $0xd0] sm:$0xff]
      %v374 = vld [vmem:[#allocation3 + $0xd8] sm:$0xff]
      %v375 = vld [vmem:[#allocation3 + $0xe0] sm:$0xff]
      %v376 = vld [vmem:[#allocation3 + $0xe8] sm:$0xff]
      %v377 = vld [vmem:[#allocation3 + $0xf0] sm:$0xff]
      %v378 = vld [vmem:[#allocation3 + $0xf8] sm:$0xff]
      %v380 = vsel %vm171, %v315, 0
      %v383 = vsel %vm171, %v316, 0
      %v386 = vsel %vm171, %v317, 0
      %v389 = vsel %vm171, %v318, 0
      %v392 = vsel %vm171, %v319, 0
      %v395 = vsel %vm171, %v320, 0
      %v398 = vsel %vm171, %v321, 0
      %v401 = vsel %vm171, %v322, 0
      %v404 = vsel %vm171, %v323, 0
      %v407 = vsel %vm171, %v324, 0
      %v410 = vsel %vm171, %v325, 0
      %v413 = vsel %vm171, %v326, 0
      %v416 = vsel %vm171, %v327, 0
      %v419 = vsel %vm171, %v328, 0
      %v422 = vsel %vm171, %v329, 0
      %v425 = vsel %vm171, %v330, 0
      %v428 = vsel %vm171, %v331, 0
      %v431 = vsel %vm171, %v332, 0
      %v434 = vsel %vm171, %v333, 0
      %v437 = vsel %vm171, %v334, 0
      %v440 = vsel %vm171, %v335, 0
      %v443 = vsel %vm171, %v336, 0
      %v446 = vsel %vm171, %v337, 0
      %v449 = vsel %vm171, %v338, 0
      %v452 = vsel %vm171, %v339, 0
      %v455 = vsel %vm171, %v340, 0
      %v458 = vsel %vm171, %v341, 0
      %v461 = vsel %vm171, %v342, 0
      %v464 = vsel %vm171, %v343, 0
      %v467 = vsel %vm171, %v344, 0
      %v470 = vsel %vm171, %v345, 0
      %v473 = vsel %vm171, %v346, 0
      %475 = vmatpush.msra.mxu0 0.0
      %476 = vmatpush.msra.mxu0 0.0
      %477 = vmatpush.msra.mxu0 0.0
      %478 = vmatpush.msra.mxu0 0.0
      %479 = vmatpush.msra.mxu0 0.0
      %480 = vmatpush.msra.mxu0 0.0
      %481 = vmatpush.msra.mxu0 0.0
      %482 = vmatpush.msra.mxu0 0.0
      %483 = vmatpush.msra.mxu0 0.0
      %484 = vmatpush.msra.mxu0 0.0
      %485 = vmatpush.msra.mxu0 0.0
      %486 = vmatpush.msra.mxu0 0.0
      %487 = vmatpush.msra.mxu0 0.0
      %488 = vmatpush.msra.mxu0 0.0
      %489 = vmatpush.msra.mxu0 0.0
      %490 = vmatpush.msra.mxu0 %v314
      %491 = vmatmul.f32.gmra.mxu0 %v380
      %v492 = vpop.f32.mrf.mxu0
      %v493 = vadd.f32 0.0, %v492
      %494 = vmatmul.f32.gmra.mxu0 %v383
      %v495 = vpop.f32.mrf.mxu0
      %v496 = vadd.f32 0.0, %v495
      %497 = vmatmul.f32.gmra.mxu0 %v386
      %v498 = vpop.f32.mrf.mxu0
      %v499 = vadd.f32 0.0, %v498
      %500 = vmatmul.f32.gmra.mxu0 %v389
      %v501 = vpop.f32.mrf.mxu0
      %v502 = vadd.f32 0.0, %v501
      %503 = vmatmul.f32.gmra.mxu0 %v392
      %v504 = vpop.f32.mrf.mxu0
      %v505 = vadd.f32 0.0, %v504
      %506 = vmatmul.f32.gmra.mxu0 %v395
      %v507 = vpop.f32.mrf.mxu0
      %v508 = vadd.f32 0.0, %v507
      %509 = vmatmul.f32.gmra.mxu0 %v398
      %v510 = vpop.f32.mrf.mxu0
      %v511 = vadd.f32 0.0, %v510
      %512 = vmatmul.f32.gmra.mxu0 %v401
      %v513 = vpop.f32.mrf.mxu0
      %v514 = vadd.f32 0.0, %v513
      %515 = vmatmul.f32.gmra.mxu0 %v404
      %v516 = vpop.f32.mrf.mxu0
      %v517 = vadd.f32 0.0, %v516
      %518 = vmatmul.f32.gmra.mxu0 %v407
      %v519 = vpop.f32.mrf.mxu0
      %v520 = vadd.f32 0.0, %v519
      %521 = vmatmul.f32.gmra.mxu0 %v410
      %v522 = vpop.f32.mrf.mxu0
      %v523 = vadd.f32 0.0, %v522
      %524 = vmatmul.f32.gmra.mxu0 %v413
      %v525 = vpop.f32.mrf.mxu0
      %v526 = vadd.f32 0.0, %v525
      %527 = vmatmul.f32.gmra.mxu0 %v416
      %v528 = vpop.f32.mrf.mxu0
      %v529 = vadd.f32 0.0, %v528
      %530 = vmatmul.f32.gmra.mxu0 %v419
      %v531 = vpop.f32.mrf.mxu0
      %v532 = vadd.f32 0.0, %v531
      %533 = vmatmul.f32.gmra.mxu0 %v422
      %v534 = vpop.f32.mrf.mxu0
      %v535 = vadd.f32 0.0, %v534
      %536 = vmatmul.f32.gmra.mxu0 %v425
      %v537 = vpop.f32.mrf.mxu0
      %v538 = vadd.f32 0.0, %v537
      %539 = vmatmul.f32.gmra.mxu0 %v428
      %v540 = vpop.f32.mrf.mxu0
      %v541 = vadd.f32 0.0, %v540
      %542 = vmatmul.f32.gmra.mxu0 %v431
      %v543 = vpop.f32.mrf.mxu0
      %v544 = vadd.f32 0.0, %v543
      %545 = vmatmul.f32.gmra.mxu0 %v434
      %v546 = vpop.f32.mrf.mxu0
      %v547 = vadd.f32 0.0, %v546
      %548 = vmatmul.f32.gmra.mxu0 %v437
      %v549 = vpop.f32.mrf.mxu0
      %v550 = vadd.f32 0.0, %v549
      %551 = vmatmul.f32.gmra.mxu0 %v440
      %v552 = vpop.f32.mrf.mxu0
      %v553 = vadd.f32 0.0, %v552
      %554 = vmatmul.f32.gmra.mxu0 %v443
      %v555 = vpop.f32.mrf.mxu0
      %v556 = vadd.f32 0.0, %v555
      %557 = vmatmul.f32.gmra.mxu0 %v446
      %v558 = vpop.f32.mrf.mxu0
      %v559 = vadd.f32 0.0, %v558
      %560 = vmatmul.f32.gmra.mxu0 %v449
      %v561 = vpop.f32.mrf.mxu0
      %v562 = vadd.f32 0.0, %v561
      %563 = vmatmul.f32.gmra.mxu0 %v452
      %v564 = vpop.f32.mrf.mxu0
      %v565 = vadd.f32 0.0, %v564
      %566 = vmatmul.f32.gmra.mxu0 %v455
      %v567 = vpop.f32.mrf.mxu0
      %v568 = vadd.f32 0.0, %v567
      %569 = vmatmul.f32.gmra.mxu0 %v458
      %v570 = vpop.f32.mrf.mxu0
      %v571 = vadd.f32 0.0, %v570
      %572 = vmatmul.f32.gmra.mxu0 %v461
      %v573 = vpop.f32.mrf.mxu0
      %v574 = vadd.f32 0.0, %v573
      %575 = vmatmul.f32.gmra.mxu0 %v464
      %v576 = vpop.f32.mrf.mxu0
      %v577 = vadd.f32 0.0, %v576
      %578 = vmatmul.f32.gmra.mxu0 %v467
      %v579 = vpop.f32.mrf.mxu0
      %v580 = vadd.f32 0.0, %v579
      %581 = vmatmul.f32.gmra.mxu0 %v470
      %v582 = vpop.f32.mrf.mxu0
      %v583 = vadd.f32 0.0, %v582
      %584 = vmatmul.f32.gmra.mxu0 %v473
      %v585 = vpop.f32.mrf.mxu0
      %v586 = vadd.f32 0.0, %v585
      %587 = vdwg.mxu0
      %v588 = vadd.f32 %v347, %v493
      %v589 = vadd.f32 %v348, %v496
      %v590 = vadd.f32 %v349, %v499
      %v591 = vadd.f32 %v350, %v502
      %v592 = vadd.f32 %v351, %v505
      %v593 = vadd.f32 %v352, %v508
      %v594 = vadd.f32 %v353, %v511
      %v595 = vadd.f32 %v354, %v514
      %v596 = vadd.f32 %v355, %v517
      %v597 = vadd.f32 %v356, %v520
      %v598 = vadd.f32 %v357, %v523
      %v599 = vadd.f32 %v358, %v526
      %v600 = vadd.f32 %v359, %v529
      %v601 = vadd.f32 %v360, %v532
      %v602 = vadd.f32 %v361, %v535
      %v603 = vadd.f32 %v362, %v538
      %v604 = vadd.f32 %v363, %v541
      %v605 = vadd.f32 %v364, %v544
      %v606 = vadd.f32 %v365, %v547
      %v607 = vadd.f32 %v366, %v550
      %v608 = vadd.f32 %v367, %v553
      %v609 = vadd.f32 %v368, %v556
      %v610 = vadd.f32 %v369, %v559
      %v611 = vadd.f32 %v370, %v562
      %v612 = vadd.f32 %v371, %v565
      %v613 = vadd.f32 %v372, %v568
      %v614 = vadd.f32 %v373, %v571
      %v615 = vadd.f32 %v374, %v574
      %v616 = vadd.f32 %v375, %v577
      %v617 = vadd.f32 %v376, %v580
      %v618 = vadd.f32 %v377, %v583
      %v619 = vadd.f32 %v378, %v586
      %620 = vst.msk [vmem:[#allocation3] sm:$0xff] %vm171, %v588
      %621 = vst.msk [vmem:[#allocation3 + $0x8] sm:$0xff] %vm171, %v589
      %622 = vst.msk [vmem:[#allocation3 + $0x10] sm:$0xff] %vm171, %v590
      %623 = vst.msk [vmem:[#allocation3 + $0x18] sm:$0xff] %vm171, %v591
      %624 = vst.msk [vmem:[#allocation3 + $0x20] sm:$0xff] %vm171, %v592
      %625 = vst.msk [vmem:[#allocation3 + $0x28] sm:$0xff] %vm171, %v593
      %626 = vst.msk [vmem:[#allocation3 + $0x30] sm:$0xff] %vm171, %v594
      %627 = vst.msk [vmem:[#allocation3 + $0x38] sm:$0xff] %vm171, %v595
      %628 = vst.msk [vmem:[#allocation3 + $0x40] sm:$0xff] %vm171, %v596
      %629 = vst.msk [vmem:[#allocation3 + $0x48] sm:$0xff] %vm171, %v597
      %630 = vst.msk [vmem:[#allocation3 + $0x50] sm:$0xff] %vm171, %v598
      %631 = vst.msk [vmem:[#allocation3 + $0x58] sm:$0xff] %vm171, %v599
      %632 = vst.msk [vmem:[#allocation3 + $0x60] sm:$0xff] %vm171, %v600
      %633 = vst.msk [vmem:[#allocation3 + $0x68] sm:$0xff] %vm171, %v601
      %634 = vst.msk [vmem:[#allocation3 + $0x70] sm:$0xff] %vm171, %v602
      %635 = vst.msk [vmem:[#allocation3 + $0x78] sm:$0xff] %vm171, %v603
      %636 = vst.msk [vmem:[#allocation3 + $0x80] sm:$0xff] %vm171, %v604
      %637 = vst.msk [vmem:[#allocation3 + $0x88] sm:$0xff] %vm171, %v605
      %638 = vst.msk [vmem:[#allocation3 + $0x90] sm:$0xff] %vm171, %v606
      %639 = vst.msk [vmem:[#allocation3 + $0x98] sm:$0xff] %vm171, %v607
      %640 = vst.msk [vmem:[#allocation3 + $0xa0] sm:$0xff] %vm171, %v608
      %641 = vst.msk [vmem:[#allocation3 + $0xa8] sm:$0xff] %vm171, %v609
      %642 = vst.msk [vmem:[#allocation3 + $0xb0] sm:$0xff] %vm171, %v610
      %643 = vst.msk [vmem:[#allocation3 + $0xb8] sm:$0xff] %vm171, %v611
      %644 = vst.msk [vmem:[#allocation3 + $0xc0] sm:$0xff] %vm171, %v612
      %645 = vst.msk [vmem:[#allocation3 + $0xc8] sm:$0xff] %vm171, %v613
      %646 = vst.msk [vmem:[#allocation3 + $0xd0] sm:$0xff] %vm171, %v614
      %647 = vst.msk [vmem:[#allocation3 + $0xd8] sm:$0xff] %vm171, %v615
      %648 = vst.msk [vmem:[#allocation3 + $0xe0] sm:$0xff] %vm171, %v616
      %649 = vst.msk [vmem:[#allocation3 + $0xe8] sm:$0xff] %vm171, %v617
      %650 = vst.msk [vmem:[#allocation3 + $0xf0] sm:$0xff] %vm171, %v618
      %651 = vst.msk [vmem:[#allocation3 + $0xf8] sm:$0xff] %vm171, %v619
      %s652 = scalar_lea.vmem %s1, 8
      %v653 = vld [vmem:[%s652] sm:$0xff]
      %v654 = vld [vmem:[#allocation2 + $0x1] sm:$0xff]
      %v655 = vld [vmem:[#allocation2 + $0x9] sm:$0xff]
      %v656 = vld [vmem:[#allocation2 + $0x19] sm:$0xff]
      %v657 = vld [vmem:[#allocation2 + $0x21] sm:$0xff]
      %v658 = vld [vmem:[#allocation2 + $0x31] sm:$0xff]
      %v659 = vld [vmem:[#allocation2 + $0x39] sm:$0xff]
      %v660 = vld [vmem:[#allocation2 + $0x49] sm:$0xff]
      %v661 = vld [vmem:[#allocation2 + $0x51] sm:$0xff]
      %v662 = vld [vmem:[#allocation2 + $0x61] sm:$0xff]
      %v663 = vld [vmem:[#allocation2 + $0x69] sm:$0xff]
      %v664 = vld [vmem:[#allocation2 + $0x79] sm:$0xff]
      %v665 = vld [vmem:[#allocation2 + $0x81] sm:$0xff]
      %v666 = vld [vmem:[#allocation2 + $0x91] sm:$0xff]
      %v667 = vld [vmem:[#allocation2 + $0x99] sm:$0xff]
      %v668 = vld [vmem:[#allocation2 + $0xa9] sm:$0xff]
      %v669 = vld [vmem:[#allocation2 + $0xb1] sm:$0xff]
      %v670 = vld [vmem:[#allocation2 + $0xc1] sm:$0xff]
      %v671 = vld [vmem:[#allocation2 + $0xc9] sm:$0xff]
      %v672 = vld [vmem:[#allocation2 + $0xd9] sm:$0xff]
      %v673 = vld [vmem:[#allocation2 + $0xe1] sm:$0xff]
      %v674 = vld [vmem:[#allocation2 + $0xf1] sm:$0xff]
      %v675 = vld [vmem:[#allocation2 + $0xf9] sm:$0xff]
      %v676 = vld [vmem:[#allocation2 + $0x109] sm:$0xff]
      %v677 = vld [vmem:[#allocation2 + $0x111] sm:$0xff]
      %v678 = vld [vmem:[#allocation2 + $0x121] sm:$0xff]
      %v679 = vld [vmem:[#allocation2 + $0x129] sm:$0xff]
      %v680 = vld [vmem:[#allocation2 + $0x139] sm:$0xff]
      %v681 = vld [vmem:[#allocation2 + $0x141] sm:$0xff]
      %v682 = vld [vmem:[#allocation2 + $0x151] sm:$0xff]
      %v683 = vld [vmem:[#allocation2 + $0x159] sm:$0xff]
      %v684 = vld [vmem:[#allocation2 + $0x169] sm:$0xff]
      %v685 = vld [vmem:[#allocation2 + $0x171] sm:$0xff]
      %v686 = vld [vmem:[#allocation3] sm:$0xff]
      %v687 = vld [vmem:[#allocation3 + $0x8] sm:$0xff]
      %v688 = vld [vmem:[#allocation3 + $0x10] sm:$0xff]
      %v689 = vld [vmem:[#allocation3 + $0x18] sm:$0xff]
      %v690 = vld [vmem:[#allocation3 + $0x20] sm:$0xff]
      %v691 = vld [vmem:[#allocation3 + $0x28] sm:$0xff]
      %v692 = vld [vmem:[#allocation3 + $0x30] sm:$0xff]
      %v693 = vld [vmem:[#allocation3 + $0x38] sm:$0xff]
      %v694 = vld [vmem:[#allocation3 + $0x40] sm:$0xff]
      %v695 = vld [vmem:[#allocation3 + $0x48] sm:$0xff]
      %v696 = vld [vmem:[#allocation3 + $0x50] sm:$0xff]
      %v697 = vld [vmem:[#allocation3 + $0x58] sm:$0xff]
      %v698 = vld [vmem:[#allocation3 + $0x60] sm:$0xff]
      %v699 = vld [vmem:[#allocation3 + $0x68] sm:$0xff]
      %v700 = vld [vmem:[#allocation3 + $0x70] sm:$0xff]
      %v701 = vld [vmem:[#allocation3 + $0x78] sm:$0xff]
      %v702 = vld [vmem:[#allocation3 + $0x80] sm:$0xff]
      %v703 = vld [vmem:[#allocation3 + $0x88] sm:$0xff]
      %v704 = vld [vmem:[#allocation3 + $0x90] sm:$0xff]
      %v705 = vld [vmem:[#allocation3 + $0x98] sm:$0xff]
      %v706 = vld [vmem:[#allocation3 + $0xa0] sm:$0xff]
      %v707 = vld [vmem:[#allocation3 + $0xa8] sm:$0xff]
      %v708 = vld [vmem:[#allocation3 + $0xb0] sm:$0xff]
      %v709 = vld [vmem:[#allocation3 + $0xb8] sm:$0xff]
      %v710 = vld [vmem:[#allocation3 + $0xc0] sm:$0xff]
      %v711 = vld [vmem:[#allocation3 + $0xc8] sm:$0xff]
      %v712 = vld [vmem:[#allocation3 + $0xd0] sm:$0xff]
      %v713 = vld [vmem:[#allocation3 + $0xd8] sm:$0xff]
      %v714 = vld [vmem:[#allocation3 + $0xe0] sm:$0xff]
      %v715 = vld [vmem:[#allocation3 + $0xe8] sm:$0xff]
      %v716 = vld [vmem:[#allocation3 + $0xf0] sm:$0xff]
      %v717 = vld [vmem:[#allocation3 + $0xf8] sm:$0xff]
      %v719 = vsel %vm171, %v654, 0
      %v722 = vsel %vm171, %v655, 0
      %v725 = vsel %vm171, %v656, 0
      %v728 = vsel %vm171, %v657, 0
      %v731 = vsel %vm171, %v658, 0
      %v734 = vsel %vm171, %v659, 0
      %v737 = vsel %vm171, %v660, 0
      %v740 = vsel %vm171, %v661, 0
      %v743 = vsel %vm171, %v662, 0
      %v746 = vsel %vm171, %v663, 0
      %v749 = vsel %vm171, %v664, 0
      %v752 = vsel %vm171, %v665, 0
      %v755 = vsel %vm171, %v666, 0
      %v758 = vsel %vm171, %v667, 0
      %v761 = vsel %vm171, %v668, 0
      %v764 = vsel %vm171, %v669, 0
      %v767 = vsel %vm171, %v670, 0
      %v770 = vsel %vm171, %v671, 0
      %v773 = vsel %vm171, %v672, 0
      %v776 = vsel %vm171, %v673, 0
      %v779 = vsel %vm171, %v674, 0
      %v782 = vsel %vm171, %v675, 0
      %v785 = vsel %vm171, %v676, 0
      %v788 = vsel %vm171, %v677, 0
      %v791 = vsel %vm171, %v678, 0
      %v794 = vsel %vm171, %v679, 0
      %v797 = vsel %vm171, %v680, 0
      %v800 = vsel %vm171, %v681, 0
      %v803 = vsel %vm171, %v682, 0
      %v806 = vsel %vm171, %v683, 0
      %v809 = vsel %vm171, %v684, 0
      %v812 = vsel %vm171, %v685, 0
      %814 = vmatpush.msra.mxu0 0.0
      %815 = vmatpush.msra.mxu0 0.0
      %816 = vmatpush.msra.mxu0 0.0
      %817 = vmatpush.msra.mxu0 0.0
      %818 = vmatpush.msra.mxu0 0.0
      %819 = vmatpush.msra.mxu0 0.0
      %820 = vmatpush.msra.mxu0 0.0
      %821 = vmatpush.msra.mxu0 0.0
      %822 = vmatpush.msra.mxu0 0.0
      %823 = vmatpush.msra.mxu0 0.0
      %824 = vmatpush.msra.mxu0 0.0
      %825 = vmatpush.msra.mxu0 0.0
      %826 = vmatpush.msra.mxu0 0.0
      %827 = vmatpush.msra.mxu0 0.0
      %828 = vmatpush.msra.mxu0 0.0
      %829 = vmatpush.msra.mxu0 %v653
      %830 = vmatmul.f32.gmra.mxu0 %v719
      %v831 = vpop.f32.mrf.mxu0
      %v832 = vadd.f32 0.0, %v831
      %833 = vmatmul.f32.gmra.mxu0 %v722
      %v834 = vpop.f32.mrf.mxu0
      %v835 = vadd.f32 0.0, %v834
      %836 = vmatmul.f32.gmra.mxu0 %v725
      %v837 = vpop.f32.mrf.mxu0
      %v838 = vadd.f32 0.0, %v837
      %839 = vmatmul.f32.gmra.mxu0 %v728
      %v840 = vpop.f32.mrf.mxu0
      %v841 = vadd.f32 0.0, %v840
      %842 = vmatmul.f32.gmra.mxu0 %v731
      %v843 = vpop.f32.mrf.mxu0
      %v844 = vadd.f32 0.0, %v843
      %845 = vmatmul.f32.gmra.mxu0 %v734
      %v846 = vpop.f32.mrf.mxu0
      %v847 = vadd.f32 0.0, %v846
      %848 = vmatmul.f32.gmra.mxu0 %v737
      %v849 = vpop.f32.mrf.mxu0
      %v850 = vadd.f32 0.0, %v849
      %851 = vmatmul.f32.gmra.mxu0 %v740
      %v852 = vpop.f32.mrf.mxu0
      %v853 = vadd.f32 0.0, %v852
      %854 = vmatmul.f32.gmra.mxu0 %v743
      %v855 = vpop.f32.mrf.mxu0
      %v856 = vadd.f32 0.0, %v855
      %857 = vmatmul.f32.gmra.mxu0 %v746
      %v858 = vpop.f32.mrf.mxu0
      %v859 = vadd.f32 0.0, %v858
      %860 = vmatmul.f32.gmra.mxu0 %v749
      %v861 = vpop.f32.mrf.mxu0
      %v862 = vadd.f32 0.0, %v861
      %863 = vmatmul.f32.gmra.mxu0 %v752
      %v864 = vpop.f32.mrf.mxu0
      %v865 = vadd.f32 0.0, %v864
      %866 = vmatmul.f32.gmra.mxu0 %v755
      %v867 = vpop.f32.mrf.mxu0
      %v868 = vadd.f32 0.0, %v867
      %869 = vmatmul.f32.gmra.mxu0 %v758
      %v870 = vpop.f32.mrf.mxu0
      %v871 = vadd.f32 0.0, %v870
      %872 = vmatmul.f32.gmra.mxu0 %v761
      %v873 = vpop.f32.mrf.mxu0
      %v874 = vadd.f32 0.0, %v873
      %875 = vmatmul.f32.gmra.mxu0 %v764
      %v876 = vpop.f32.mrf.mxu0
      %v877 = vadd.f32 0.0, %v876
      %878 = vmatmul.f32.gmra.mxu0 %v767
      %v879 = vpop.f32.mrf.mxu0
      %v880 = vadd.f32 0.0, %v879
      %881 = vmatmul.f32.gmra.mxu0 %v770
      %v882 = vpop.f32.mrf.mxu0
      %v883 = vadd.f32 0.0, %v882
      %884 = vmatmul.f32.gmra.mxu0 %v773
      %v885 = vpop.f32.mrf.mxu0
      %v886 = vadd.f32 0.0, %v885
      %887 = vmatmul.f32.gmra.mxu0 %v776
      %v888 = vpop.f32.mrf.mxu0
      %v889 = vadd.f32 0.0, %v888
      %890 = vmatmul.f32.gmra.mxu0 %v779
      %v891 = vpop.f32.mrf.mxu0
      %v892 = vadd.f32 0.0, %v891
      %893 = vmatmul.f32.gmra.mxu0 %v782
      %v894 = vpop.f32.mrf.mxu0
      %v895 = vadd.f32 0.0, %v894
      %896 = vmatmul.f32.gmra.mxu0 %v785
      %v897 = vpop.f32.mrf.mxu0
      %v898 = vadd.f32 0.0, %v897
      %899 = vmatmul.f32.gmra.mxu0 %v788
      %v900 = vpop.f32.mrf.mxu0
      %v901 = vadd.f32 0.0, %v900
      %902 = vmatmul.f32.gmra.mxu0 %v791
      %v903 = vpop.f32.mrf.mxu0
      %v904 = vadd.f32 0.0, %v903
      %905 = vmatmul.f32.gmra.mxu0 %v794
      %v906 = vpop.f32.mrf.mxu0
      %v907 = vadd.f32 0.0, %v906
      %908 = vmatmul.f32.gmra.mxu0 %v797
      %v909 = vpop.f32.mrf.mxu0
      %v910 = vadd.f32 0.0, %v909
      %911 = vmatmul.f32.gmra.mxu0 %v800
      %v912 = vpop.f32.mrf.mxu0
      %v913 = vadd.f32 0.0, %v912
      %914 = vmatmul.f32.gmra.mxu0 %v803
      %v915 = vpop.f32.mrf.mxu0
      %v916 = vadd.f32 0.0, %v915
      %917 = vmatmul.f32.gmra.mxu0 %v806
      %v918 = vpop.f32.mrf.mxu0
      %v919 = vadd.f32 0.0, %v918
      %920 = vmatmul.f32.gmra.mxu0 %v809
      %v921 = vpop.f32.mrf.mxu0
      %v922 = vadd.f32 0.0, %v921
      %923 = vmatmul.f32.gmra.mxu0 %v812
      %v924 = vpop.f32.mrf.mxu0
      %v925 = vadd.f32 0.0, %v924
      %926 = vdwg.mxu0
      %v927 = vadd.f32 %v686, %v832
      %v928 = vadd.f32 %v687, %v835
      %v929 = vadd.f32 %v688, %v838
      %v930 = vadd.f32 %v689, %v841
      %v931 = vadd.f32 %v690, %v844
      %v932 = vadd.f32 %v691, %v847
      %v933 = vadd.f32 %v692, %v850
      %v934 = vadd.f32 %v693, %v853
      %v935 = vadd.f32 %v694, %v856
      %v936 = vadd.f32 %v695, %v859
      %v937 = vadd.f32 %v696, %v862
      %v938 = vadd.f32 %v697, %v865
      %v939 = vadd.f32 %v698, %v868
      %v940 = vadd.f32 %v699, %v871
      %v941 = vadd.f32 %v700, %v874
      %v942 = vadd.f32 %v701, %v877
      %v943 = vadd.f32 %v702, %v880
      %v944 = vadd.f32 %v703, %v883
      %v945 = vadd.f32 %v704, %v886
      %v946 = vadd.f32 %v705, %v889
      %v947 = vadd.f32 %v706, %v892
      %v948 = vadd.f32 %v707, %v895
      %v949 = vadd.f32 %v708, %v898
      %v950 = vadd.f32 %v709, %v901
      %v951 = vadd.f32 %v710, %v904
      %v952 = vadd.f32 %v711, %v907
      %v953 = vadd.f32 %v712, %v910
      %v954 = vadd.f32 %v713, %v913
      %v955 = vadd.f32 %v714, %v916
      %v956 = vadd.f32 %v715, %v919
      %v957 = vadd.f32 %v716, %v922
      %v958 = vadd.f32 %v717, %v925
      %959 = vst.msk [vmem:[#allocation3] sm:$0xff] %vm171, %v927
      %960 = vst.msk [vmem:[#allocation3 + $0x8] sm:$0xff] %vm171, %v928
      %961 = vst.msk [vmem:[#allocation3 + $0x10] sm:$0xff] %vm171, %v929
      %962 = vst.msk [vmem:[#allocation3 + $0x18] sm:$0xff] %vm171, %v930
      %963 = vst.msk [vmem:[#allocation3 + $0x20] sm:$0xff] %vm171, %v931
      %964 = vst.msk [vmem:[#allocation3 + $0x28] sm:$0xff] %vm171, %v932
      %965 = vst.msk [vmem:[#allocation3 + $0x30] sm:$0xff] %vm171, %v933
      %966 = vst.msk [vmem:[#allocation3 + $0x38] sm:$0xff] %vm171, %v934
      %967 = vst.msk [vmem:[#allocation3 + $0x40] sm:$0xff] %vm171, %v935
      %968 = vst.msk [vmem:[#allocation3 + $0x48] sm:$0xff] %vm171, %v936
      %969 = vst.msk [vmem:[#allocation3 + $0x50] sm:$0xff] %vm171, %v937
      %970 = vst.msk [vmem:[#allocation3 + $0x58] sm:$0xff] %vm171, %v938
      %971 = vst.msk [vmem:[#allocation3 + $0x60] sm:$0xff] %vm171, %v939
      %972 = vst.msk [vmem:[#allocation3 + $0x68] sm:$0xff] %vm171, %v940
      %973 = vst.msk [vmem:[#allocation3 + $0x70] sm:$0xff] %vm171, %v941
      %974 = vst.msk [vmem:[#allocation3 + $0x78] sm:$0xff] %vm171, %v942
      %975 = vst.msk [vmem:[#allocation3 + $0x80] sm:$0xff] %vm171, %v943
      %976 = vst.msk [vmem:[#allocation3 + $0x88] sm:$0xff] %vm171, %v944
      %977 = vst.msk [vmem:[#allocation3 + $0x90] sm:$0xff] %vm171, %v945
      %978 = vst.msk [vmem:[#allocation3 + $0x98] sm:$0xff] %vm171, %v946
      %979 = vst.msk [vmem:[#allocation3 + $0xa0] sm:$0xff] %vm171, %v947
      %980 = vst.msk [vmem:[#allocation3 + $0xa8] sm:$0xff] %vm171, %v948
      %981 = vst.msk [vmem:[#allocation3 + $0xb0] sm:$0xff] %vm171, %v949
      %982 = vst.msk [vmem:[#allocation3 + $0xb8] sm:$0xff] %vm171, %v950
      %983 = vst.msk [vmem:[#allocation3 + $0xc0] sm:$0xff] %vm171, %v951
      %984 = vst.msk [vmem:[#allocation3 + $0xc8] sm:$0xff] %vm171, %v952
      %985 = vst.msk [vmem:[#allocation3 + $0xd0] sm:$0xff] %vm171, %v953
      %986 = vst.msk [vmem:[#allocation3 + $0xd8] sm:$0xff] %vm171, %v954
      %987 = vst.msk [vmem:[#allocation3 + $0xe0] sm:$0xff] %vm171, %v955
      %988 = vst.msk [vmem:[#allocation3 + $0xe8] sm:$0xff] %vm171, %v956
      %989 = vst.msk [vmem:[#allocation3 + $0xf0] sm:$0xff] %vm171, %v957
      %990 = vst.msk [vmem:[#allocation3 + $0xf8] sm:$0xff] %vm171, %v958
      %s991 = scalar_lea.vmem %s1, 16
      %v992 = vld [vmem:[%s991] sm:$0xff]
      %v993 = vld [vmem:[#allocation2 + $0x2] sm:$0xff]
      %v994 = vld [vmem:[#allocation2 + $0xa] sm:$0xff]
      %v995 = vld [vmem:[#allocation2 + $0x1a] sm:$0xff]
      %v996 = vld [vmem:[#allocation2 + $0x22] sm:$0xff]
      %v997 = vld [vmem:[#allocation2 + $0x32] sm:$0xff]
      %v998 = vld [vmem:[#allocation2 + $0x3a] sm:$0xff]
      %v999 = vld [vmem:[#allocation2 + $0x4a] sm:$0xff]
      %v1000 = vld [vmem:[#allocation2 + $0x52] sm:$0xff]
      %v1001 = vld [vmem:[#allocation2 + $0x62] sm:$0xff]
      %v1002 = vld [vmem:[#allocation2 + $0x6a] sm:$0xff]
      %v1003 = vld [vmem:[#allocation2 + $0x7a] sm:$0xff]
      %v1004 = vld [vmem:[#allocation2 + $0x82] sm:$0xff]
      %v1005 = vld [vmem:[#allocation2 + $0x92] sm:$0xff]
      %v1006 = vld [vmem:[#allocation2 + $0x9a] sm:$0xff]
      %v1007 = vld [vmem:[#allocation2 + $0xaa] sm:$0xff]
      %v1008 = vld [vmem:[#allocation2 + $0xb2] sm:$0xff]
      %v1009 = vld [vmem:[#allocation2 + $0xc2] sm:$0xff]
      %v1010 = vld [vmem:[#allocation2 + $0xca] sm:$0xff]
      %v1011 = vld [vmem:[#allocation2 + $0xda] sm:$0xff]
      %v1012 = vld [vmem:[#allocation2 + $0xe2] sm:$0xff]
      %v1013 = vld [vmem:[#allocation2 + $0xf2] sm:$0xff]
      %v1014 = vld [vmem:[#allocation2 + $0xfa] sm:$0xff]
      %v1015 = vld [vmem:[#allocation2 + $0x10a] sm:$0xff]
      %v1016 = vld [vmem:[#allocation2 + $0x112] sm:$0xff]
      %v1017 = vld [vmem:[#allocation2 + $0x122] sm:$0xff]
      %v1018 = vld [vmem:[#allocation2 + $0x12a] sm:$0xff]
      %v1019 = vld [vmem:[#allocation2 + $0x13a] sm:$0xff]
      %v1020 = vld [vmem:[#allocation2 + $0x142] sm:$0xff]
      %v1021 = vld [vmem:[#allocation2 + $0x152] sm:$0xff]
      %v1022 = vld [vmem:[#allocation2 + $0x15a] sm:$0xff]
      %v1023 = vld [vmem:[#allocation2 + $0x16a] sm:$0xff]
      %v1024 = vld [vmem:[#allocation2 + $0x172] sm:$0xff]
      %v1025 = vld [vmem:[#allocation3] sm:$0xff]
      %v1026 = vld [vmem:[#allocation3 + $0x8] sm:$0xff]
      %v1027 = vld [vmem:[#allocation3 + $0x10] sm:$0xff]
      %v1028 = vld [vmem:[#allocation3 + $0x18] sm:$0xff]
      %v1029 = vld [vmem:[#allocation3 + $0x20] sm:$0xff]
      %v1030 = vld [vmem:[#allocation3 + $0x28] sm:$0xff]
      %v1031 = vld [vmem:[#allocation3 + $0x30] sm:$0xff]
      %v1032 = vld [vmem:[#allocation3 + $0x38] sm:$0xff]
      %v1033 = vld [vmem:[#allocation3 + $0x40] sm:$0xff]
      %v1034 = vld [vmem:[#allocation3 + $0x48] sm:$0xff]
      %v1035 = vld [vmem:[#allocation3 + $0x50] sm:$0xff]
      %v1036 = vld [vmem:[#allocation3 + $0x58] sm:$0xff]
      %v1037 = vld [vmem:[#allocation3 + $0x60] sm:$0xff]
      %v1038 = vld [vmem:[#allocation3 + $0x68] sm:$0xff]
      %v1039 = vld [vmem:[#allocation3 + $0x70] sm:$0xff]
      %v1040 = vld [vmem:[#allocation3 + $0x78] sm:$0xff]
      %v1041 = vld [vmem:[#allocation3 + $0x80] sm:$0xff]
      %v1042 = vld [vmem:[#allocation3 + $0x88] sm:$0xff]
      %v1043 = vld [vmem:[#allocation3 + $0x90] sm:$0xff]
      %v1044 = vld [vmem:[#allocation3 + $0x98] sm:$0xff]
      %v1045 = vld [vmem:[#allocation3 + $0xa0] sm:$0xff]
      %v1046 = vld [vmem:[#allocation3 + $0xa8] sm:$0xff]
      %v1047 = vld [vmem:[#allocation3 + $0xb0] sm:$0xff]
      %v1048 = vld [vmem:[#allocation3 + $0xb8] sm:$0xff]
      %v1049 = vld [vmem:[#allocation3 + $0xc0] sm:$0xff]
      %v1050 = vld [vmem:[#allocation3 + $0xc8] sm:$0xff]
      %v1051 = vld [vmem:[#allocation3 + $0xd0] sm:$0xff]
      %v1052 = vld [vmem:[#allocation3 + $0xd8] sm:$0xff]
      %v1053 = vld [vmem:[#allocation3 + $0xe0] sm:$0xff]
      %v1054 = vld [vmem:[#allocation3 + $0xe8] sm:$0xff]
      %v1055 = vld [vmem:[#allocation3 + $0xf0] sm:$0xff]
      %v1056 = vld [vmem:[#allocation3 + $0xf8] sm:$0xff]
      %v1058 = vsel %vm171, %v993, 0
      %v1061 = vsel %vm171, %v994, 0
      %v1064 = vsel %vm171, %v995, 0
      %v1067 = vsel %vm171, %v996, 0
      %v1070 = vsel %vm171, %v997, 0
      %v1073 = vsel %vm171, %v998, 0
      %v1076 = vsel %vm171, %v999, 0
      %v1079 = vsel %vm171, %v1000, 0
      %v1082 = vsel %vm171, %v1001, 0
      %v1085 = vsel %vm171, %v1002, 0
      %v1088 = vsel %vm171, %v1003, 0
      %v1091 = vsel %vm171, %v1004, 0
      %v1094 = vsel %vm171, %v1005, 0
      %v1097 = vsel %vm171, %v1006, 0
      %v1100 = vsel %vm171, %v1007, 0
      %v1103 = vsel %vm171, %v1008, 0
      %v1106 = vsel %vm171, %v1009, 0
      %v1109 = vsel %vm171, %v1010, 0
      %v1112 = vsel %vm171, %v1011, 0
      %v1115 = vsel %vm171, %v1012, 0
      %v1118 = vsel %vm171, %v1013, 0
      %v1121 = vsel %vm171, %v1014, 0
      %v1124 = vsel %vm171, %v1015, 0
      %v1127 = vsel %vm171, %v1016, 0
      %v1130 = vsel %vm171, %v1017, 0
      %v1133 = vsel %vm171, %v1018, 0
      %v1136 = vsel %vm171, %v1019, 0
      %v1139 = vsel %vm171, %v1020, 0
      %v1142 = vsel %vm171, %v1021, 0
      %v1145 = vsel %vm171, %v1022, 0
      %v1148 = vsel %vm171, %v1023, 0
      %v1151 = vsel %vm171, %v1024, 0
      %1153 = vmatpush.msra.mxu0 0.0
      %1154 = vmatpush.msra.mxu0 0.0
      %1155 = vmatpush.msra.mxu0 0.0
      %1156 = vmatpush.msra.mxu0 0.0
      %1157 = vmatpush.msra.mxu0 0.0
      %1158 = vmatpush.msra.mxu0 0.0
      %1159 = vmatpush.msra.mxu0 0.0
      %1160 = vmatpush.msra.mxu0 0.0
      %1161 = vmatpush.msra.mxu0 0.0
      %1162 = vmatpush.msra.mxu0 0.0
      %1163 = vmatpush.msra.mxu0 0.0
      %1164 = vmatpush.msra.mxu0 0.0
      %1165 = vmatpush.msra.mxu0 0.0
      %1166 = vmatpush.msra.mxu0 0.0
      %1167 = vmatpush.msra.mxu0 0.0
      %1168 = vmatpush.msra.mxu0 %v992
      %1169 = vmatmul.f32.gmra.mxu0 %v1058
      %v1170 = vpop.f32.mrf.mxu0
      %v1171 = vadd.f32 0.0, %v1170
      %1172 = vmatmul.f32.gmra.mxu0 %v1061
      %v1173 = vpop.f32.mrf.mxu0
      %v1174 = vadd.f32 0.0, %v1173
      %1175 = vmatmul.f32.gmra.mxu0 %v1064
      %v1176 = vpop.f32.mrf.mxu0
      %v1177 = vadd.f32 0.0, %v1176
      %1178 = vmatmul.f32.gmra.mxu0 %v1067
      %v1179 = vpop.f32.mrf.mxu0
      %v1180 = vadd.f32 0.0, %v1179
      %1181 = vmatmul.f32.gmra.mxu0 %v1070
      %v1182 = vpop.f32.mrf.mxu0
      %v1183 = vadd.f32 0.0, %v1182
      %1184 = vmatmul.f32.gmra.mxu0 %v1073
      %v1185 = vpop.f32.mrf.mxu0
      %v1186 = vadd.f32 0.0, %v1185
      %1187 = vmatmul.f32.gmra.mxu0 %v1076
      %v1188 = vpop.f32.mrf.mxu0
      %v1189 = vadd.f32 0.0, %v1188
      %1190 = vmatmul.f32.gmra.mxu0 %v1079
      %v1191 = vpop.f32.mrf.mxu0
      %v1192 = vadd.f32 0.0, %v1191
      %1193 = vmatmul.f32.gmra.mxu0 %v1082
      %v1194 = vpop.f32.mrf.mxu0
      %v1195 = vadd.f32 0.0, %v1194
      %1196 = vmatmul.f32.gmra.mxu0 %v1085
      %v1197 = vpop.f32.mrf.mxu0
      %v1198 = vadd.f32 0.0, %v1197
      %1199 = vmatmul.f32.gmra.mxu0 %v1088
      %v1200 = vpop.f32.mrf.mxu0
      %v1201 = vadd.f32 0.0, %v1200
      %1202 = vmatmul.f32.gmra.mxu0 %v1091
      %v1203 = vpop.f32.mrf.mxu0
      %v1204 = vadd.f32 0.0, %v1203
      %1205 = vmatmul.f32.gmra.mxu0 %v1094
      %v1206 = vpop.f32.mrf.mxu0
      %v1207 = vadd.f32 0.0, %v1206
      %1208 = vmatmul.f32.gmra.mxu0 %v1097
      %v1209 = vpop.f32.mrf.mxu0
      %v1210 = vadd.f32 0.0, %v1209
      %1211 = vmatmul.f32.gmra.mxu0 %v1100
      %v1212 = vpop.f32.mrf.mxu0
      %v1213 = vadd.f32 0.0, %v1212
      %1214 = vmatmul.f32.gmra.mxu0 %v1103
      %v1215 = vpop.f32.mrf.mxu0
      %v1216 = vadd.f32 0.0, %v1215
      %1217 = vmatmul.f32.gmra.mxu0 %v1106
      %v1218 = vpop.f32.mrf.mxu0
      %v1219 = vadd.f32 0.0, %v1218
      %1220 = vmatmul.f32.gmra.mxu0 %v1109
      %v1221 = vpop.f32.mrf.mxu0
      %v1222 = vadd.f32 0.0, %v1221
      %1223 = vmatmul.f32.gmra.mxu0 %v1112
      %v1224 = vpop.f32.mrf.mxu0
      %v1225 = vadd.f32 0.0, %v1224
      %1226 = vmatmul.f32.gmra.mxu0 %v1115
      %v1227 = vpop.f32.mrf.mxu0
      %v1228 = vadd.f32 0.0, %v1227
      %1229 = vmatmul.f32.gmra.mxu0 %v1118
      %v1230 = vpop.f32.mrf.mxu0
      %v1231 = vadd.f32 0.0, %v1230
      %1232 = vmatmul.f32.gmra.mxu0 %v1121
      %v1233 = vpop.f32.mrf.mxu0
      %v1234 = vadd.f32 0.0, %v1233
      %1235 = vmatmul.f32.gmra.mxu0 %v1124
      %v1236 = vpop.f32.mrf.mxu0
      %v1237 = vadd.f32 0.0, %v1236
      %1238 = vmatmul.f32.gmra.mxu0 %v1127
      %v1239 = vpop.f32.mrf.mxu0
      %v1240 = vadd.f32 0.0, %v1239
      %1241 = vmatmul.f32.gmra.mxu0 %v1130
      %v1242 = vpop.f32.mrf.mxu0
      %v1243 = vadd.f32 0.0, %v1242
      %1244 = vmatmul.f32.gmra.mxu0 %v1133
      %v1245 = vpop.f32.mrf.mxu0
      %v1246 = vadd.f32 0.0, %v1245
      %1247 = vmatmul.f32.gmra.mxu0 %v1136
      %v1248 = vpop.f32.mrf.mxu0
      %v1249 = vadd.f32 0.0, %v1248
      %1250 = vmatmul.f32.gmra.mxu0 %v1139
      %v1251 = vpop.f32.mrf.mxu0
      %v1252 = vadd.f32 0.0, %v1251
      %1253 = vmatmul.f32.gmra.mxu0 %v1142
      %v1254 = vpop.f32.mrf.mxu0
      %v1255 = vadd.f32 0.0, %v1254
      %1256 = vmatmul.f32.gmra.mxu0 %v1145
      %v1257 = vpop.f32.mrf.mxu0
      %v1258 = vadd.f32 0.0, %v1257
      %1259 = vmatmul.f32.gmra.mxu0 %v1148
      %v1260 = vpop.f32.mrf.mxu0
      %v1261 = vadd.f32 0.0, %v1260
      %1262 = vmatmul.f32.gmra.mxu0 %v1151
      %v1263 = vpop.f32.mrf.mxu0
      %v1264 = vadd.f32 0.0, %v1263
      %1265 = vdwg.mxu0
      %v1266 = vadd.f32 %v1025, %v1171
      %v1267 = vadd.f32 %v1026, %v1174
      %v1268 = vadd.f32 %v1027, %v1177
      %v1269 = vadd.f32 %v1028, %v1180
      %v1270 = vadd.f32 %v1029, %v1183
      %v1271 = vadd.f32 %v1030, %v1186
      %v1272 = vadd.f32 %v1031, %v1189
      %v1273 = vadd.f32 %v1032, %v1192
      %v1274 = vadd.f32 %v1033, %v1195
      %v1275 = vadd.f32 %v1034, %v1198
      %v1276 = vadd.f32 %v1035, %v1201
      %v1277 = vadd.f32 %v1036, %v1204
      %v1278 = vadd.f32 %v1037, %v1207
      %v1279 = vadd.f32 %v1038, %v1210
      %v1280 = vadd.f32 %v1039, %v1213
      %v1281 = vadd.f32 %v1040, %v1216
      %v1282 = vadd.f32 %v1041, %v1219
      %v1283 = vadd.f32 %v1042, %v1222
      %v1284 = vadd.f32 %v1043, %v1225
      %v1285 = vadd.f32 %v1044, %v1228
      %v1286 = vadd.f32 %v1045, %v1231
      %v1287 = vadd.f32 %v1046, %v1234
      %v1288 = vadd.f32 %v1047, %v1237
      %v1289 = vadd.f32 %v1048, %v1240
      %v1290 = vadd.f32 %v1049, %v1243
      %v1291 = vadd.f32 %v1050, %v1246
      %v1292 = vadd.f32 %v1051, %v1249
      %v1293 = vadd.f32 %v1052, %v1252
      %v1294 = vadd.f32 %v1053, %v1255
      %v1295 = vadd.f32 %v1054, %v1258
      %v1296 = vadd.f32 %v1055, %v1261
      %v1297 = vadd.f32 %v1056, %v1264
      %1298 = vst.msk [vmem:[#allocation3] sm:$0xff] %vm171, %v1266
      %1299 = vst.msk [vmem:[#allocation3 + $0x8] sm:$0xff] %vm171, %v1267
      %1300 = vst.msk [vmem:[#allocation3 + $0x10] sm:$0xff] %vm171, %v1268
      %1301 = vst.msk [vmem:[#allocation3 + $0x18] sm:$0xff] %vm171, %v1269
      %1302 = vst.msk [vmem:[#allocation3 + $0x20] sm:$0xff] %vm171, %v1270
      %1303 = vst.msk [vmem:[#allocation3 + $0x28] sm:$0xff] %vm171, %v1271
      %1304 = vst.msk [vmem:[#allocation3 + $0x30] sm:$0xff] %vm171, %v1272
      %1305 = vst.msk [vmem:[#allocation3 + $0x38] sm:$0xff] %vm171, %v1273
      %1306 = vst.msk [vmem:[#allocation3 + $0x40] sm:$0xff] %vm171, %v1274
      %1307 = vst.msk [vmem:[#allocation3 + $0x48] sm:$0xff] %vm171, %v1275
      %1308 = vst.msk [vmem:[#allocation3 + $0x50] sm:$0xff] %vm171, %v1276
      %1309 = vst.msk [vmem:[#allocation3 + $0x58] sm:$0xff] %vm171, %v1277
      %1310 = vst.msk [vmem:[#allocation3 + $0x60] sm:$0xff] %vm171, %v1278
      %1311 = vst.msk [vmem:[#allocation3 + $0x68] sm:$0xff] %vm171, %v1279
      %1312 = vst.msk [vmem:[#allocation3 + $0x70] sm:$0xff] %vm171, %v1280
      %1313 = vst.msk [vmem:[#allocation3 + $0x78] sm:$0xff] %vm171, %v1281
      %1314 = vst.msk [vmem:[#allocation3 + $0x80] sm:$0xff] %vm171, %v1282
      %1315 = vst.msk [vmem:[#allocation3 + $0x88] sm:$0xff] %vm171, %v1283
      %1316 = vst.msk [vmem:[#allocation3 + $0x90] sm:$0xff] %vm171, %v1284
      %1317 = vst.msk [vmem:[#allocation3 + $0x98] sm:$0xff] %vm171, %v1285
      %1318 = vst.msk [vmem:[#allocation3 + $0xa0] sm:$0xff] %vm171, %v1286
      %1319 = vst.msk [vmem:[#allocation3 + $0xa8] sm:$0xff] %vm171, %v1287
      %1320 = vst.msk [vmem:[#allocation3 + $0xb0] sm:$0xff] %vm171, %v1288
      %1321 = vst.msk [vmem:[#allocation3 + $0xb8] sm:$0xff] %vm171, %v1289
      %1322 = vst.msk [vmem:[#allocation3 + $0xc0] sm:$0xff] %vm171, %v1290
      %1323 = vst.msk [vmem:[#allocation3 + $0xc8] sm:$0xff] %vm171, %v1291
      %1324 = vst.msk [vmem:[#allocation3 + $0xd0] sm:$0xff] %vm171, %v1292
      %1325 = vst.msk [vmem:[#allocation3 + $0xd8] sm:$0xff] %vm171, %v1293
      %1326 = vst.msk [vmem:[#allocation3 + $0xe0] sm:$0xff] %vm171, %v1294
      %1327 = vst.msk [vmem:[#allocation3 + $0xe8] sm:$0xff] %vm171, %v1295
      %1328 = vst.msk [vmem:[#allocation3 + $0xf0] sm:$0xff] %vm171, %v1296
      %1329 = vst.msk [vmem:[#allocation3 + $0xf8] sm:$0xff] %vm171, %v1297
      %s1330 = scalar_lea.vmem %s1, 24
      %v1331 = vld [vmem:[%s1330] sm:$0xff]
      %v1332 = vld [vmem:[%s249] sm:$0xff]
      %v1333 = vld [vmem:[%s249 + $0x8] sm:$0xff]
      %v1334 = vld [vmem:[%s249 + $0x18] sm:$0xff]
      %v1335 = vld [vmem:[%s249 + $0x20] sm:$0xff]
      %v1336 = vld [vmem:[%s249 + $0x30] sm:$0xff]
      %v1337 = vld [vmem:[%s249 + $0x38] sm:$0xff]
      %v1338 = vld [vmem:[%s249 + $0x48] sm:$0xff]
      %v1339 = vld [vmem:[%s249 + $0x50] sm:$0xff]
      %v1340 = vld [vmem:[%s249 + $0x60] sm:$0xff]
      %v1341 = vld [vmem:[%s249 + $0x68] sm:$0xff]
      %v1342 = vld [vmem:[%s249 + $0x78] sm:$0xff]
      %v1343 = vld [vmem:[%s249 + $0x80] sm:$0xff]
      %v1344 = vld [vmem:[%s249 + $0x90] sm:$0xff]
      %v1345 = vld [vmem:[%s249 + $0x98] sm:$0xff]
      %v1346 = vld [vmem:[%s249 + $0xa8] sm:$0xff]
      %v1347 = vld [vmem:[%s249 + $0xb0] sm:$0xff]
      %v1348 = vld [vmem:[%s249 + $0xc0] sm:$0xff]
      %v1349 = vld [vmem:[%s249 + $0xc8] sm:$0xff]
      %v1350 = vld [vmem:[%s249 + $0xd8] sm:$0xff]
      %v1351 = vld [vmem:[%s249 + $0xe0] sm:$0xff]
      %v1352 = vld [vmem:[%s249 + $0xf0] sm:$0xff]
      %v1353 = vld [vmem:[%s249 + $0xf8] sm:$0xff]
      %v1354 = vld [vmem:[%s249 + $0x108] sm:$0xff]
      %v1355 = vld [vmem:[%s249 + $0x110] sm:$0xff]
      %v1356 = vld [vmem:[%s249 + $0x120] sm:$0xff]
      %v1357 = vld [vmem:[%s249 + $0x128] sm:$0xff]
      %v1358 = vld [vmem:[%s249 + $0x138] sm:$0xff]
      %v1359 = vld [vmem:[%s249 + $0x140] sm:$0xff]
      %v1360 = vld [vmem:[%s249 + $0x150] sm:$0xff]
      %v1361 = vld [vmem:[%s249 + $0x158] sm:$0xff]
      %v1362 = vld [vmem:[%s249 + $0x168] sm:$0xff]
      %v1363 = vld [vmem:[%s249 + $0x170] sm:$0xff]
      %v1364 = vld [vmem:[#allocation3] sm:$0xff]
      %v1365 = vld [vmem:[#allocation3 + $0x8] sm:$0xff]
      %v1366 = vld [vmem:[#allocation3 + $0x10] sm:$0xff]
      %v1367 = vld [vmem:[#allocation3 + $0x18] sm:$0xff]
      %v1368 = vld [vmem:[#allocation3 + $0x20] sm:$0xff]
      %v1369 = vld [vmem:[#allocation3 + $0x28] sm:$0xff]
      %v1370 = vld [vmem:[#allocation3 + $0x30] sm:$0xff]
      %v1371 = vld [vmem:[#allocation3 + $0x38] sm:$0xff]
      %v1372 = vld [vmem:[#allocation3 + $0x40] sm:$0xff]
      %v1373 = vld [vmem:[#allocation3 + $0x48] sm:$0xff]
      %v1374 = vld [vmem:[#allocation3 + $0x50] sm:$0xff]
      %v1375 = vld [vmem:[#allocation3 + $0x58] sm:$0xff]
      %v1376 = vld [vmem:[#allocation3 + $0x60] sm:$0xff]
      %v1377 = vld [vmem:[#allocation3 + $0x68] sm:$0xff]
      %v1378 = vld [vmem:[#allocation3 + $0x70] sm:$0xff]
      %v1379 = vld [vmem:[#allocation3 + $0x78] sm:$0xff]
      %v1380 = vld [vmem:[#allocation3 + $0x80] sm:$0xff]
      %v1381 = vld [vmem:[#allocation3 + $0x88] sm:$0xff]
      %v1382 = vld [vmem:[#allocation3 + $0x90] sm:$0xff]
      %v1383 = vld [vmem:[#allocation3 + $0x98] sm:$0xff]
      %v1384 = vld [vmem:[#allocation3 + $0xa0] sm:$0xff]
      %v1385 = vld [vmem:[#allocation3 + $0xa8] sm:$0xff]
      %v1386 = vld [vmem:[#allocation3 + $0xb0] sm:$0xff]
      %v1387 = vld [vmem:[#allocation3 + $0xb8] sm:$0xff]
      %v1388 = vld [vmem:[#allocation3 + $0xc0] sm:$0xff]
      %v1389 = vld [vmem:[#allocation3 + $0xc8] sm:$0xff]
      %v1390 = vld [vmem:[#allocation3 + $0xd0] sm:$0xff]
      %v1391 = vld [vmem:[#allocation3 + $0xd8] sm:$0xff]
      %v1392 = vld [vmem:[#allocation3 + $0xe0] sm:$0xff]
      %v1393 = vld [vmem:[#allocation3 + $0xe8] sm:$0xff]
      %v1394 = vld [vmem:[#allocation3 + $0xf0] sm:$0xff]
      %v1395 = vld [vmem:[#allocation3 + $0xf8] sm:$0xff]
      %v1397 = vsel %vm171, %v1332, 0
      %v1400 = vsel %vm171, %v1333, 0
      %v1403 = vsel %vm171, %v1334, 0
      %v1406 = vsel %vm171, %v1335, 0
      %v1409 = vsel %vm171, %v1336, 0
      %v1412 = vsel %vm171, %v1337, 0
      %v1415 = vsel %vm171, %v1338, 0
      %v1418 = vsel %vm171, %v1339, 0
      %v1421 = vsel %vm171, %v1340, 0
      %v1424 = vsel %vm171, %v1341, 0
      %v1427 = vsel %vm171, %v1342, 0
      %v1430 = vsel %vm171, %v1343, 0
      %v1433 = vsel %vm171, %v1344, 0
      %v1436 = vsel %vm171, %v1345, 0
      %v1439 = vsel %vm171, %v1346, 0
      %v1442 = vsel %vm171, %v1347, 0
      %v1445 = vsel %vm171, %v1348, 0
      %v1448 = vsel %vm171, %v1349, 0
      %v1451 = vsel %vm171, %v1350, 0
      %v1454 = vsel %vm171, %v1351, 0
      %v1457 = vsel %vm171, %v1352, 0
      %v1460 = vsel %vm171, %v1353, 0
      %v1463 = vsel %vm171, %v1354, 0
      %v1466 = vsel %vm171, %v1355, 0
      %v1469 = vsel %vm171, %v1356, 0
      %v1472 = vsel %vm171, %v1357, 0
      %v1475 = vsel %vm171, %v1358, 0
      %v1478 = vsel %vm171, %v1359, 0
      %v1481 = vsel %vm171, %v1360, 0
      %v1484 = vsel %vm171, %v1361, 0
      %v1487 = vsel %vm171, %v1362, 0
      %v1490 = vsel %vm171, %v1363, 0
      %1492 = vmatpush.msra.mxu0 0.0
      %1493 = vmatpush.msra.mxu0 0.0
      %1494 = vmatpush.msra.mxu0 0.0
      %1495 = vmatpush.msra.mxu0 0.0
      %1496 = vmatpush.msra.mxu0 0.0
      %1497 = vmatpush.msra.mxu0 0.0
      %1498 = vmatpush.msra.mxu0 0.0
      %1499 = vmatpush.msra.mxu0 0.0
      %1500 = vmatpush.msra.mxu0 0.0
      %1501 = vmatpush.msra.mxu0 0.0
      %1502 = vmatpush.msra.mxu0 0.0
      %1503 = vmatpush.msra.mxu0 0.0
      %1504 = vmatpush.msra.mxu0 0.0
      %1505 = vmatpush.msra.mxu0 0.0
      %1506 = vmatpush.msra.mxu0 0.0
      %1507 = vmatpush.msra.mxu0 %v1331
      %1508 = vmatmul.f32.gmra.mxu0 %v1397
      %v1509 = vpop.f32.mrf.mxu0
      %v1510 = vadd.f32 0.0, %v1509
      %1511 = vmatmul.f32.gmra.mxu0 %v1400
      %v1512 = vpop.f32.mrf.mxu0
      %v1513 = vadd.f32 0.0, %v1512
      %1514 = vmatmul.f32.gmra.mxu0 %v1403
      %v1515 = vpop.f32.mrf.mxu0
      %v1516 = vadd.f32 0.0, %v1515
      %1517 = vmatmul.f32.gmra.mxu0 %v1406
      %v1518 = vpop.f32.mrf.mxu0
      %v1519 = vadd.f32 0.0, %v1518
      %1520 = vmatmul.f32.gmra.mxu0 %v1409
      %v1521 = vpop.f32.mrf.mxu0
      %v1522 = vadd.f32 0.0, %v1521
      %1523 = vmatmul.f32.gmra.mxu0 %v1412
      %v1524 = vpop.f32.mrf.mxu0
      %v1525 = vadd.f32 0.0, %v1524
      %1526 = vmatmul.f32.gmra.mxu0 %v1415
      %v1527 = vpop.f32.mrf.mxu0
      %v1528 = vadd.f32 0.0, %v1527
      %1529 = vmatmul.f32.gmra.mxu0 %v1418
      %v1530 = vpop.f32.mrf.mxu0
      %v1531 = vadd.f32 0.0, %v1530
      %1532 = vmatmul.f32.gmra.mxu0 %v1421
      %v1533 = vpop.f32.mrf.mxu0
      %v1534 = vadd.f32 0.0, %v1533
      %1535 = vmatmul.f32.gmra.mxu0 %v1424
      %v1536 = vpop.f32.mrf.mxu0
      %v1537 = vadd.f32 0.0, %v1536
      %1538 = vmatmul.f32.gmra.mxu0 %v1427
      %v1539 = vpop.f32.mrf.mxu0
      %v1540 = vadd.f32 0.0, %v1539
      %1541 = vmatmul.f32.gmra.mxu0 %v1430
      %v1542 = vpop.f32.mrf.mxu0
      %v1543 = vadd.f32 0.0, %v1542
      %1544 = vmatmul.f32.gmra.mxu0 %v1433
      %v1545 = vpop.f32.mrf.mxu0
      %v1546 = vadd.f32 0.0, %v1545
      %1547 = vmatmul.f32.gmra.mxu0 %v1436
      %v1548 = vpop.f32.mrf.mxu0
      %v1549 = vadd.f32 0.0, %v1548
      %1550 = vmatmul.f32.gmra.mxu0 %v1439
      %v1551 = vpop.f32.mrf.mxu0
      %v1552 = vadd.f32 0.0, %v1551
      %1553 = vmatmul.f32.gmra.mxu0 %v1442
      %v1554 = vpop.f32.mrf.mxu0
      %v1555 = vadd.f32 0.0, %v1554
      %1556 = vmatmul.f32.gmra.mxu0 %v1445
      %v1557 = vpop.f32.mrf.mxu0
      %v1558 = vadd.f32 0.0, %v1557
      %1559 = vmatmul.f32.gmra.mxu0 %v1448
      %v1560 = vpop.f32.mrf.mxu0
      %v1561 = vadd.f32 0.0, %v1560
      %1562 = vmatmul.f32.gmra.mxu0 %v1451
      %v1563 = vpop.f32.mrf.mxu0
      %v1564 = vadd.f32 0.0, %v1563
      %1565 = vmatmul.f32.gmra.mxu0 %v1454
      %v1566 = vpop.f32.mrf.mxu0
      %v1567 = vadd.f32 0.0, %v1566
      %1568 = vmatmul.f32.gmra.mxu0 %v1457
      %v1569 = vpop.f32.mrf.mxu0
      %v1570 = vadd.f32 0.0, %v1569
      %1571 = vmatmul.f32.gmra.mxu0 %v1460
      %v1572 = vpop.f32.mrf.mxu0
      %v1573 = vadd.f32 0.0, %v1572
      %1574 = vmatmul.f32.gmra.mxu0 %v1463
      %v1575 = vpop.f32.mrf.mxu0
      %v1576 = vadd.f32 0.0, %v1575
      %1577 = vmatmul.f32.gmra.mxu0 %v1466
      %v1578 = vpop.f32.mrf.mxu0
      %v1579 = vadd.f32 0.0, %v1578
      %1580 = vmatmul.f32.gmra.mxu0 %v1469
      %v1581 = vpop.f32.mrf.mxu0
      %v1582 = vadd.f32 0.0, %v1581
      %1583 = vmatmul.f32.gmra.mxu0 %v1472
      %v1584 = vpop.f32.mrf.mxu0
      %v1585 = vadd.f32 0.0, %v1584
      %1586 = vmatmul.f32.gmra.mxu0 %v1475
      %v1587 = vpop.f32.mrf.mxu0
      %v1588 = vadd.f32 0.0, %v1587
      %1589 = vmatmul.f32.gmra.mxu0 %v1478
      %v1590 = vpop.f32.mrf.mxu0
      %v1591 = vadd.f32 0.0, %v1590
      %1592 = vmatmul.f32.gmra.mxu0 %v1481
      %v1593 = vpop.f32.mrf.mxu0
      %v1594 = vadd.f32 0.0, %v1593
      %1595 = vmatmul.f32.gmra.mxu0 %v1484
      %v1596 = vpop.f32.mrf.mxu0
      %v1597 = vadd.f32 0.0, %v1596
      %1598 = vmatmul.f32.gmra.mxu0 %v1487
      %v1599 = vpop.f32.mrf.mxu0
      %v1600 = vadd.f32 0.0, %v1599
      %1601 = vmatmul.f32.gmra.mxu0 %v1490
      %v1602 = vpop.f32.mrf.mxu0
      %v1603 = vadd.f32 0.0, %v1602
      %1604 = vdwg.mxu0
      %v1605 = vadd.f32 %v1364, %v1510
      %v1606 = vadd.f32 %v1365, %v1513
      %v1607 = vadd.f32 %v1366, %v1516
      %v1608 = vadd.f32 %v1367, %v1519
      %v1609 = vadd.f32 %v1368, %v1522
      %v1610 = vadd.f32 %v1369, %v1525
      %v1611 = vadd.f32 %v1370, %v1528
      %v1612 = vadd.f32 %v1371, %v1531
      %v1613 = vadd.f32 %v1372, %v1534
      %v1614 = vadd.f32 %v1373, %v1537
      %v1615 = vadd.f32 %v1374, %v1540
      %v1616 = vadd.f32 %v1375, %v1543
      %v1617 = vadd.f32 %v1376, %v1546
      %v1618 = vadd.f32 %v1377, %v1549
      %v1619 = vadd.f32 %v1378, %v1552
      %v1620 = vadd.f32 %v1379, %v1555
      %v1621 = vadd.f32 %v1380, %v1558
      %v1622 = vadd.f32 %v1381, %v1561
      %v1623 = vadd.f32 %v1382, %v1564
      %v1624 = vadd.f32 %v1383, %v1567
      %v1625 = vadd.f32 %v1384, %v1570
      %v1626 = vadd.f32 %v1385, %v1573
      %v1627 = vadd.f32 %v1386, %v1576
      %v1628 = vadd.f32 %v1387, %v1579
      %v1629 = vadd.f32 %v1388, %v1582
      %v1630 = vadd.f32 %v1389, %v1585
      %v1631 = vadd.f32 %v1390, %v1588
      %v1632 = vadd.f32 %v1391, %v1591
      %v1633 = vadd.f32 %v1392, %v1594
      %v1634 = vadd.f32 %v1393, %v1597
      %v1635 = vadd.f32 %v1394, %v1600
      %v1636 = vadd.f32 %v1395, %v1603
      %1637 = vst.msk [vmem:[#allocation3] sm:$0xff] %vm171, %v1605
      %1638 = vst.msk [vmem:[#allocation3 + $0x8] sm:$0xff] %vm171, %v1606
      %1639 = vst.msk [vmem:[#allocation3 + $0x10] sm:$0xff] %vm171, %v1607
      %1640 = vst.msk [vmem:[#allocation3 + $0x18] sm:$0xff] %vm171, %v1608
      %1641 = vst.msk [vmem:[#allocation3 + $0x20] sm:$0xff] %vm171, %v1609
      %1642 = vst.msk [vmem:[#allocation3 + $0x28] sm:$0xff] %vm171, %v1610
      %1643 = vst.msk [vmem:[#allocation3 + $0x30] sm:$0xff] %vm171, %v1611
      %1644 = vst.msk [vmem:[#allocation3 + $0x38] sm:$0xff] %vm171, %v1612
      %1645 = vst.msk [vmem:[#allocation3 + $0x40] sm:$0xff] %vm171, %v1613
      %1646 = vst.msk [vmem:[#allocation3 + $0x48] sm:$0xff] %vm171, %v1614
      %1647 = vst.msk [vmem:[#allocation3 + $0x50] sm:$0xff] %vm171, %v1615
      %1648 = vst.msk [vmem:[#allocation3 + $0x58] sm:$0xff] %vm171, %v1616
      %1649 = vst.msk [vmem:[#allocation3 + $0x60] sm:$0xff] %vm171, %v1617
      %1650 = vst.msk [vmem:[#allocation3 + $0x68] sm:$0xff] %vm171, %v1618
      %1651 = vst.msk [vmem:[#allocation3 + $0x70] sm:$0xff] %vm171, %v1619
      %1652 = vst.msk [vmem:[#allocation3 + $0x78] sm:$0xff] %vm171, %v1620
      %1653 = vst.msk [vmem:[#allocation3 + $0x80] sm:$0xff] %vm171, %v1621
      %1654 = vst.msk [vmem:[#allocation3 + $0x88] sm:$0xff] %vm171, %v1622
      %1655 = vst.msk [vmem:[#allocation3 + $0x90] sm:$0xff] %vm171, %v1623
      %1656 = vst.msk [vmem:[#allocation3 + $0x98] sm:$0xff] %vm171, %v1624
      %1657 = vst.msk [vmem:[#allocation3 + $0xa0] sm:$0xff] %vm171, %v1625
      %1658 = vst.msk [vmem:[#allocation3 + $0xa8] sm:$0xff] %vm171, %v1626
      %1659 = vst.msk [vmem:[#allocation3 + $0xb0] sm:$0xff] %vm171, %v1627
      %1660 = vst.msk [vmem:[#allocation3 + $0xb8] sm:$0xff] %vm171, %v1628
      %1661 = vst.msk [vmem:[#allocation3 + $0xc0] sm:$0xff] %vm171, %v1629
      %1662 = vst.msk [vmem:[#allocation3 + $0xc8] sm:$0xff] %vm171, %v1630
      %1663 = vst.msk [vmem:[#allocation3 + $0xd0] sm:$0xff] %vm171, %v1631
      %1664 = vst.msk [vmem:[#allocation3 + $0xd8] sm:$0xff] %vm171, %v1632
      %1665 = vst.msk [vmem:[#allocation3 + $0xe0] sm:$0xff] %vm171, %v1633
      %1666 = vst.msk [vmem:[#allocation3 + $0xe8] sm:$0xff] %vm171, %v1634
      %1667 = vst.msk [vmem:[#allocation3 + $0xf0] sm:$0xff] %vm171, %v1635
      %1668 = vst.msk [vmem:[#allocation3 + $0xf8] sm:$0xff] %vm171, %v1636
      %s1669 = scalar_lea.vmem %s1, 32
      %v1670 = vld [vmem:[%s1669] sm:$0xff]
      %v1671 = vld [vmem:[%s249 + $0x1] sm:$0xff]
      %v1672 = vld [vmem:[%s249 + $0x9] sm:$0xff]
      %v1673 = vld [vmem:[%s249 + $0x19] sm:$0xff]
      %v1674 = vld [vmem:[%s249 + $0x21] sm:$0xff]
      %v1675 = vld [vmem:[%s249 + $0x31] sm:$0xff]
      %v1676 = vld [vmem:[%s249 + $0x39] sm:$0xff]
      %v1677 = vld [vmem:[%s249 + $0x49] sm:$0xff]
      %v1678 = vld [vmem:[%s249 + $0x51] sm:$0xff]
      %v1679 = vld [vmem:[%s249 + $0x61] sm:$0xff]
      %v1680 = vld [vmem:[%s249 + $0x69] sm:$0xff]
      %v1681 = vld [vmem:[%s249 + $0x79] sm:$0xff]
      %v1682 = vld [vmem:[%s249 + $0x81] sm:$0xff]
      %v1683 = vld [vmem:[%s249 + $0x91] sm:$0xff]
      %v1684 = vld [vmem:[%s249 + $0x99] sm:$0xff]
      %v1685 = vld [vmem:[%s249 + $0xa9] sm:$0xff]
      %v1686 = vld [vmem:[%s249 + $0xb1] sm:$0xff]
      %v1687 = vld [vmem:[%s249 + $0xc1] sm:$0xff]
      %v1688 = vld [vmem:[%s249 + $0xc9] sm:$0xff]
      %v1689 = vld [vmem:[%s249 + $0xd9] sm:$0xff]
      %v1690 = vld [vmem:[%s249 + $0xe1] sm:$0xff]
      %v1691 = vld [vmem:[%s249 + $0xf1] sm:$0xff]
      %v1692 = vld [vmem:[%s249 + $0xf9] sm:$0xff]
      %v1693 = vld [vmem:[%s249 + $0x109] sm:$0xff]
      %v1694 = vld [vmem:[%s249 + $0x111] sm:$0xff]
      %v1695 = vld [vmem:[%s249 + $0x121] sm:$0xff]
      %v1696 = vld [vmem:[%s249 + $0x129] sm:$0xff]
      %v1697 = vld [vmem:[%s249 + $0x139] sm:$0xff]
      %v1698 = vld [vmem:[%s249 + $0x141] sm:$0xff]
      %v1699 = vld [vmem:[%s249 + $0x151] sm:$0xff]
      %v1700 = vld [vmem:[%s249 + $0x159] sm:$0xff]
      %v1701 = vld [vmem:[%s249 + $0x169] sm:$0xff]
      %v1702 = vld [vmem:[%s249 + $0x171] sm:$0xff]
      %v1703 = vld [vmem:[#allocation3] sm:$0xff]
      %v1704 = vld [vmem:[#allocation3 + $0x8] sm:$0xff]
      %v1705 = vld [vmem:[#allocation3 + $0x10] sm:$0xff]
      %v1706 = vld [vmem:[#allocation3 + $0x18] sm:$0xff]
      %v1707 = vld [vmem:[#allocation3 + $0x20] sm:$0xff]
      %v1708 = vld [vmem:[#allocation3 + $0x28] sm:$0xff]
      %v1709 = vld [vmem:[#allocation3 + $0x30] sm:$0xff]
      %v1710 = vld [vmem:[#allocation3 + $0x38] sm:$0xff]
      %v1711 = vld [vmem:[#allocation3 + $0x40] sm:$0xff]
      %v1712 = vld [vmem:[#allocation3 + $0x48] sm:$0xff]
      %v1713 = vld [vmem:[#allocation3 + $0x50] sm:$0xff]
      %v1714 = vld [vmem:[#allocation3 + $0x58] sm:$0xff]
      %v1715 = vld [vmem:[#allocation3 + $0x60] sm:$0xff]
      %v1716 = vld [vmem:[#allocation3 + $0x68] sm:$0xff]
      %v1717 = vld [vmem:[#allocation3 + $0x70] sm:$0xff]
      %v1718 = vld [vmem:[#allocation3 + $0x78] sm:$0xff]
      %v1719 = vld [vmem:[#allocation3 + $0x80] sm:$0xff]
      %v1720 = vld [vmem:[#allocation3 + $0x88] sm:$0xff]
      %v1721 = vld [vmem:[#allocation3 + $0x90] sm:$0xff]
      %v1722 = vld [vmem:[#allocation3 + $0x98] sm:$0xff]
      %v1723 = vld [vmem:[#allocation3 + $0xa0] sm:$0xff]
      %v1724 = vld [vmem:[#allocation3 + $0xa8] sm:$0xff]
      %v1725 = vld [vmem:[#allocation3 + $0xb0] sm:$0xff]
      %v1726 = vld [vmem:[#allocation3 + $0xb8] sm:$0xff]
      %v1727 = vld [vmem:[#allocation3 + $0xc0] sm:$0xff]
      %v1728 = vld [vmem:[#allocation3 + $0xc8] sm:$0xff]
      %v1729 = vld [vmem:[#allocation3 + $0xd0] sm:$0xff]
      %v1730 = vld [vmem:[#allocation3 + $0xd8] sm:$0xff]
      %v1731 = vld [vmem:[#allocation3 + $0xe0] sm:$0xff]
      %v1732 = vld [vmem:[#allocation3 + $0xe8] sm:$0xff]
      %v1733 = vld [vmem:[#allocation3 + $0xf0] sm:$0xff]
      %v1734 = vld [vmem:[#allocation3 + $0xf8] sm:$0xff]
      %v1736 = vsel %vm171, %v1671, 0
      %v1739 = vsel %vm171, %v1672, 0
      %v1742 = vsel %vm171, %v1673, 0
      %v1745 = vsel %vm171, %v1674, 0
      %v1748 = vsel %vm171, %v1675, 0
      %v1751 = vsel %vm171, %v1676, 0
      %v1754 = vsel %vm171, %v1677, 0
      %v1757 = vsel %vm171, %v1678, 0
      %v1760 = vsel %vm171, %v1679, 0
      %v1763 = vsel %vm171, %v1680, 0
      %v1766 = vsel %vm171, %v1681, 0
      %v1769 = vsel %vm171, %v1682, 0
      %v1772 = vsel %vm171, %v1683, 0
      %v1775 = vsel %vm171, %v1684, 0
      %v1778 = vsel %vm171, %v1685, 0
      %v1781 = vsel %vm171, %v1686, 0
      %v1784 = vsel %vm171, %v1687, 0
      %v1787 = vsel %vm171, %v1688, 0
      %v1790 = vsel %vm171, %v1689, 0
      %v1793 = vsel %vm171, %v1690, 0
      %v1796 = vsel %vm171, %v1691, 0
      %v1799 = vsel %vm171, %v1692, 0
      %v1802 = vsel %vm171, %v1693, 0
      %v1805 = vsel %vm171, %v1694, 0
      %v1808 = vsel %vm171, %v1695, 0
      %v1811 = vsel %vm171, %v1696, 0
      %v1814 = vsel %vm171, %v1697, 0
      %v1817 = vsel %vm171, %v1698, 0
      %v1820 = vsel %vm171, %v1699, 0
      %v1823 = vsel %vm171, %v1700, 0
      %v1826 = vsel %vm171, %v1701, 0
      %v1829 = vsel %vm171, %v1702, 0
      %1831 = vmatpush.msra.mxu0 0.0
      %1832 = vmatpush.msra.mxu0 0.0
      %1833 = vmatpush.msra.mxu0 0.0
      %1834 = vmatpush.msra.mxu0 0.0
      %1835 = vmatpush.msra.mxu0 0.0
      %1836 = vmatpush.msra.mxu0 0.0
      %1837 = vmatpush.msra.mxu0 0.0
      %1838 = vmatpush.msra.mxu0 0.0
      %1839 = vmatpush.msra.mxu0 0.0
      %1840 = vmatpush.msra.mxu0 0.0
      %1841 = vmatpush.msra.mxu0 0.0
      %1842 = vmatpush.msra.mxu0 0.0
      %1843 = vmatpush.msra.mxu0 0.0
      %1844 = vmatpush.msra.mxu0 0.0
      %1845 = vmatpush.msra.mxu0 0.0
      %1846 = vmatpush.msra.mxu0 %v1670
      %1847 = vmatmul.f32.gmra.mxu0 %v1736
      %v1848 = vpop.f32.mrf.mxu0
      %v1849 = vadd.f32 0.0, %v1848
      %1850 = vmatmul.f32.gmra.mxu0 %v1739
      %v1851 = vpop.f32.mrf.mxu0
      %v1852 = vadd.f32 0.0, %v1851
      %1853 = vmatmul.f32.gmra.mxu0 %v1742
      %v1854 = vpop.f32.mrf.mxu0
      %v1855 = vadd.f32 0.0, %v1854
      %1856 = vmatmul.f32.gmra.mxu0 %v1745
      %v1857 = vpop.f32.mrf.mxu0
      %v1858 = vadd.f32 0.0, %v1857
      %1859 = vmatmul.f32.gmra.mxu0 %v1748
      %v1860 = vpop.f32.mrf.mxu0
      %v1861 = vadd.f32 0.0, %v1860
      %1862 = vmatmul.f32.gmra.mxu0 %v1751
      %v1863 = vpop.f32.mrf.mxu0
      %v1864 = vadd.f32 0.0, %v1863
      %1865 = vmatmul.f32.gmra.mxu0 %v1754
      %v1866 = vpop.f32.mrf.mxu0
      %v1867 = vadd.f32 0.0, %v1866
      %1868 = vmatmul.f32.gmra.mxu0 %v1757
      %v1869 = vpop.f32.mrf.mxu0
      %v1870 = vadd.f32 0.0, %v1869
      %1871 = vmatmul.f32.gmra.mxu0 %v1760
      %v1872 = vpop.f32.mrf.mxu0
      %v1873 = vadd.f32 0.0, %v1872
      %1874 = vmatmul.f32.gmra.mxu0 %v1763
      %v1875 = vpop.f32.mrf.mxu0
      %v1876 = vadd.f32 0.0, %v1875
      %1877 = vmatmul.f32.gmra.mxu0 %v1766
      %v1878 = vpop.f32.mrf.mxu0
      %v1879 = vadd.f32 0.0, %v1878
      %1880 = vmatmul.f32.gmra.mxu0 %v1769
      %v1881 = vpop.f32.mrf.mxu0
      %v1882 = vadd.f32 0.0, %v1881
      %1883 = vmatmul.f32.gmra.mxu0 %v1772
      %v1884 = vpop.f32.mrf.mxu0
      %v1885 = vadd.f32 0.0, %v1884
      %1886 = vmatmul.f32.gmra.mxu0 %v1775
      %v1887 = vpop.f32.mrf.mxu0
      %v1888 = vadd.f32 0.0, %v1887
      %1889 = vmatmul.f32.gmra.mxu0 %v1778
      %v1890 = vpop.f32.mrf.mxu0
      %v1891 = vadd.f32 0.0, %v1890
      %1892 = vmatmul.f32.gmra.mxu0 %v1781
      %v1893 = vpop.f32.mrf.mxu0
      %v1894 = vadd.f32 0.0, %v1893
      %1895 = vmatmul.f32.gmra.mxu0 %v1784
      %v1896 = vpop.f32.mrf.mxu0
      %v1897 = vadd.f32 0.0, %v1896
      %1898 = vmatmul.f32.gmra.mxu0 %v1787
      %v1899 = vpop.f32.mrf.mxu0
      %v1900 = vadd.f32 0.0, %v1899
      %1901 = vmatmul.f32.gmra.mxu0 %v1790
      %v1902 = vpop.f32.mrf.mxu0
      %v1903 = vadd.f32 0.0, %v1902
      %1904 = vmatmul.f32.gmra.mxu0 %v1793
      %v1905 = vpop.f32.mrf.mxu0
      %v1906 = vadd.f32 0.0, %v1905
      %1907 = vmatmul.f32.gmra.mxu0 %v1796
      %v1908 = vpop.f32.mrf.mxu0
      %v1909 = vadd.f32 0.0, %v1908
      %1910 = vmatmul.f32.gmra.mxu0 %v1799
      %v1911 = vpop.f32.mrf.mxu0
      %v1912 = vadd.f32 0.0, %v1911
      %1913 = vmatmul.f32.gmra.mxu0 %v1802
      %v1914 = vpop.f32.mrf.mxu0
      %v1915 = vadd.f32 0.0, %v1914
      %1916 = vmatmul.f32.gmra.mxu0 %v1805
      %v1917 = vpop.f32.mrf.mxu0
      %v1918 = vadd.f32 0.0, %v1917
      %1919 = vmatmul.f32.gmra.mxu0 %v1808
      %v1920 = vpop.f32.mrf.mxu0
      %v1921 = vadd.f32 0.0, %v1920
      %1922 = vmatmul.f32.gmra.mxu0 %v1811
      %v1923 = vpop.f32.mrf.mxu0
      %v1924 = vadd.f32 0.0, %v1923
      %1925 = vmatmul.f32.gmra.mxu0 %v1814
      %v1926 = vpop.f32.mrf.mxu0
      %v1927 = vadd.f32 0.0, %v1926
      %1928 = vmatmul.f32.gmra.mxu0 %v1817
      %v1929 = vpop.f32.mrf.mxu0
      %v1930 = vadd.f32 0.0, %v1929
      %1931 = vmatmul.f32.gmra.mxu0 %v1820
      %v1932 = vpop.f32.mrf.mxu0
      %v1933 = vadd.f32 0.0, %v1932
      %1934 = vmatmul.f32.gmra.mxu0 %v1823
      %v1935 = vpop.f32.mrf.mxu0
      %v1936 = vadd.f32 0.0, %v1935
      %1937 = vmatmul.f32.gmra.mxu0 %v1826
      %v1938 = vpop.f32.mrf.mxu0
      %v1939 = vadd.f32 0.0, %v1938
      %1940 = vmatmul.f32.gmra.mxu0 %v1829
      %v1941 = vpop.f32.mrf.mxu0
      %v1942 = vadd.f32 0.0, %v1941
      %1943 = vdwg.mxu0
      %v1944 = vadd.f32 %v1703, %v1849
      %v1945 = vadd.f32 %v1704, %v1852
      %v1946 = vadd.f32 %v1705, %v1855
      %v1947 = vadd.f32 %v1706, %v1858
      %v1948 = vadd.f32 %v1707, %v1861
      %v1949 = vadd.f32 %v1708, %v1864
      %v1950 = vadd.f32 %v1709, %v1867
      %v1951 = vadd.f32 %v1710, %v1870
      %v1952 = vadd.f32 %v1711, %v1873
      %v1953 = vadd.f32 %v1712, %v1876
      %v1954 = vadd.f32 %v1713, %v1879
      %v1955 = vadd.f32 %v1714, %v1882
      %v1956 = vadd.f32 %v1715, %v1885
      %v1957 = vadd.f32 %v1716, %v1888
      %v1958 = vadd.f32 %v1717, %v1891
      %v1959 = vadd.f32 %v1718, %v1894
      %v1960 = vadd.f32 %v1719, %v1897
      %v1961 = vadd.f32 %v1720, %v1900
      %v1962 = vadd.f32 %v1721, %v1903
      %v1963 = vadd.f32 %v1722, %v1906
      %v1964 = vadd.f32 %v1723, %v1909
      %v1965 = vadd.f32 %v1724, %v1912
      %v1966 = vadd.f32 %v1725, %v1915
      %v1967 = vadd.f32 %v1726, %v1918
      %v1968 = vadd.f32 %v1727, %v1921
      %v1969 = vadd.f32 %v1728, %v1924
      %v1970 = vadd.f32 %v1729, %v1927
      %v1971 = vadd.f32 %v1730, %v1930
      %v1972 = vadd.f32 %v1731, %v1933
      %v1973 = vadd.f32 %v1732, %v1936
      %v1974 = vadd.f32 %v1733, %v1939
      %v1975 = vadd.f32 %v1734, %v1942
      %1976 = vst.msk [vmem:[#allocation3] sm:$0xff] %vm171, %v1944
      %1977 = vst.msk [vmem:[#allocation3 + $0x8] sm:$0xff] %vm171, %v1945
      %1978 = vst.msk [vmem:[#allocation3 + $0x10] sm:$0xff] %vm171, %v1946
      %1979 = vst.msk [vmem:[#allocation3 + $0x18] sm:$0xff] %vm171, %v1947
      %1980 = vst.msk [vmem:[#allocation3 + $0x20] sm:$0xff] %vm171, %v1948
      %1981 = vst.msk [vmem:[#allocation3 + $0x28] sm:$0xff] %vm171, %v1949
      %1982 = vst.msk [vmem:[#allocation3 + $0x30] sm:$0xff] %vm171, %v1950
      %1983 = vst.msk [vmem:[#allocation3 + $0x38] sm:$0xff] %vm171, %v1951
      %1984 = vst.msk [vmem:[#allocation3 + $0x40] sm:$0xff] %vm171, %v1952
      %1985 = vst.msk [vmem:[#allocation3 + $0x48] sm:$0xff] %vm171, %v1953
      %1986 = vst.msk [vmem:[#allocation3 + $0x50] sm:$0xff] %vm171, %v1954
      %1987 = vst.msk [vmem:[#allocation3 + $0x58] sm:$0xff] %vm171, %v1955
      %1988 = vst.msk [vmem:[#allocation3 + $0x60] sm:$0xff] %vm171, %v1956
      %1989 = vst.msk [vmem:[#allocation3 + $0x68] sm:$0xff] %vm171, %v1957
      %1990 = vst.msk [vmem:[#allocation3 + $0x70] sm:$0xff] %vm171, %v1958
      %1991 = vst.msk [vmem:[#allocation3 + $0x78] sm:$0xff] %vm171, %v1959
      %1992 = vst.msk [vmem:[#allocation3 + $0x80] sm:$0xff] %vm171, %v1960
      %1993 = vst.msk [vmem:[#allocation3 + $0x88] sm:$0xff] %vm171, %v1961
      %1994 = vst.msk [vmem:[#allocation3 + $0x90] sm:$0xff] %vm171, %v1962
      %1995 = vst.msk [vmem:[#allocation3 + $0x98] sm:$0xff] %vm171, %v1963
      %1996 = vst.msk [vmem:[#allocation3 + $0xa0] sm:$0xff] %vm171, %v1964
      %1997 = vst.msk [vmem:[#allocation3 + $0xa8] sm:$0xff] %vm171, %v1965
      %1998 = vst.msk [vmem:[#allocation3 + $0xb0] sm:$0xff] %vm171, %v1966
      %1999 = vst.msk [vmem:[#allocation3 + $0xb8] sm:$0xff] %vm171, %v1967
      %2000 = vst.msk [vmem:[#allocation3 + $0xc0] sm:$0xff] %vm171, %v1968
      %2001 = vst.msk [vmem:[#allocation3 + $0xc8] sm:$0xff] %vm171, %v1969
      %2002 = vst.msk [vmem:[#allocation3 + $0xd0] sm:$0xff] %vm171, %v1970
      %2003 = vst.msk [vmem:[#allocation3 + $0xd8] sm:$0xff] %vm171, %v1971
      %2004 = vst.msk [vmem:[#allocation3 + $0xe0] sm:$0xff] %vm171, %v1972
      %2005 = vst.msk [vmem:[#allocation3 + $0xe8] sm:$0xff] %vm171, %v1973
      %2006 = vst.msk [vmem:[#allocation3 + $0xf0] sm:$0xff] %vm171, %v1974
      %2007 = vst.msk [vmem:[#allocation3 + $0xf8] sm:$0xff] %vm171, %v1975
      %s2008 = scalar_lea.vmem %s1, 40
      %v2009 = vld [vmem:[%s2008] sm:$0xff]
      %v2010 = vld [vmem:[%s249 + $0x2] sm:$0xff]
      %v2011 = vld [vmem:[%s249 + $0xa] sm:$0xff]
      %v2012 = vld [vmem:[%s249 + $0x1a] sm:$0xff]
      %v2013 = vld [vmem:[%s249 + $0x22] sm:$0xff]
      %v2014 = vld [vmem:[%s249 + $0x32] sm:$0xff]
      %v2015 = vld [vmem:[%s249 + $0x3a] sm:$0xff]
      %v2016 = vld [vmem:[%s249 + $0x4a] sm:$0xff]
      %v2017 = vld [vmem:[%s249 + $0x52] sm:$0xff]
      %v2018 = vld [vmem:[%s249 + $0x62] sm:$0xff]
      %v2019 = vld [vmem:[%s249 + $0x6a] sm:$0xff]
      %v2020 = vld [vmem:[%s249 + $0x7a] sm:$0xff]
      %v2021 = vld [vmem:[%s249 + $0x82] sm:$0xff]
      %v2022 = vld [vmem:[%s249 + $0x92] sm:$0xff]
      %v2023 = vld [vmem:[%s249 + $0x9a] sm:$0xff]
      %v2024 = vld [vmem:[%s249 + $0xaa] sm:$0xff]
      %v2025 = vld [vmem:[%s249 + $0xb2] sm:$0xff]
      %v2026 = vld [vmem:[%s249 + $0xc2] sm:$0xff]
      %v2027 = vld [vmem:[%s249 + $0xca] sm:$0xff]
      %v2028 = vld [vmem:[%s249 + $0xda] sm:$0xff]
      %v2029 = vld [vmem:[%s249 + $0xe2] sm:$0xff]
      %v2030 = vld [vmem:[%s249 + $0xf2] sm:$0xff]
      %v2031 = vld [vmem:[%s249 + $0xfa] sm:$0xff]
      %v2032 = vld [vmem:[%s249 + $0x10a] sm:$0xff]
      %v2033 = vld [vmem:[%s249 + $0x112] sm:$0xff]
      %v2034 = vld [vmem:[%s249 + $0x122] sm:$0xff]
      %v2035 = vld [vmem:[%s249 + $0x12a] sm:$0xff]
      %v2036 = vld [vmem:[%s249 + $0x13a] sm:$0xff]
      %v2037 = vld [vmem:[%s249 + $0x142] sm:$0xff]
      %v2038 = vld [vmem:[%s249 + $0x152] sm:$0xff]
      %v2039 = vld [vmem:[%s249 + $0x15a] sm:$0xff]
      %v2040 = vld [vmem:[%s249 + $0x16a] sm:$0xff]
      %v2041 = vld [vmem:[%s249 + $0x172] sm:$0xff]
      %v2042 = vld [vmem:[#allocation3] sm:$0xff]
      %v2043 = vld [vmem:[#allocation3 + $0x8] sm:$0xff]
      %v2044 = vld [vmem:[#allocation3 + $0x10] sm:$0xff]
      %v2045 = vld [vmem:[#allocation3 + $0x18] sm:$0xff]
      %v2046 = vld [vmem:[#allocation3 + $0x20] sm:$0xff]
      %v2047 = vld [vmem:[#allocation3 + $0x28] sm:$0xff]
      %v2048 = vld [vmem:[#allocation3 + $0x30] sm:$0xff]
      %v2049 = vld [vmem:[#allocation3 + $0x38] sm:$0xff]
      %v2050 = vld [vmem:[#allocation3 + $0x40] sm:$0xff]
      %v2051 = vld [vmem:[#allocation3 + $0x48] sm:$0xff]
      %v2052 = vld [vmem:[#allocation3 + $0x50] sm:$0xff]
      %v2053 = vld [vmem:[#allocation3 + $0x58] sm:$0xff]
      %v2054 = vld [vmem:[#allocation3 + $0x60] sm:$0xff]
      %v2055 = vld [vmem:[#allocation3 + $0x68] sm:$0xff]
      %v2056 = vld [vmem:[#allocation3 + $0x70] sm:$0xff]
      %v2057 = vld [vmem:[#allocation3 + $0x78] sm:$0xff]
      %v2058 = vld [vmem:[#allocation3 + $0x80] sm:$0xff]
      %v2059 = vld [vmem:[#allocation3 + $0x88] sm:$0xff]
      %v2060 = vld [vmem:[#allocation3 + $0x90] sm:$0xff]
      %v2061 = vld [vmem:[#allocation3 + $0x98] sm:$0xff]
      %v2062 = vld [vmem:[#allocation3 + $0xa0] sm:$0xff]
      %v2063 = vld [vmem:[#allocation3 + $0xa8] sm:$0xff]
      %v2064 = vld [vmem:[#allocation3 + $0xb0] sm:$0xff]
      %v2065 = vld [vmem:[#allocation3 + $0xb8] sm:$0xff]
      %v2066 = vld [vmem:[#allocation3 + $0xc0] sm:$0xff]
      %v2067 = vld [vmem:[#allocation3 + $0xc8] sm:$0xff]
      %v2068 = vld [vmem:[#allocation3 + $0xd0] sm:$0xff]
      %v2069 = vld [vmem:[#allocation3 + $0xd8] sm:$0xff]
      %v2070 = vld [vmem:[#allocation3 + $0xe0] sm:$0xff]
      %v2071 = vld [vmem:[#allocation3 + $0xe8] sm:$0xff]
      %v2072 = vld [vmem:[#allocation3 + $0xf0] sm:$0xff]
      %v2073 = vld [vmem:[#allocation3 + $0xf8] sm:$0xff]
      %v2075 = vsel %vm171, %v2010, 0
      %v2078 = vsel %vm171, %v2011, 0
      %v2081 = vsel %vm171, %v2012, 0
      %v2084 = vsel %vm171, %v2013, 0
      %v2087 = vsel %vm171, %v2014, 0
      %v2090 = vsel %vm171, %v2015, 0
      %v2093 = vsel %vm171, %v2016, 0
      %v2096 = vsel %vm171, %v2017, 0
      %v2099 = vsel %vm171, %v2018, 0
      %v2102 = vsel %vm171, %v2019, 0
      %v2105 = vsel %vm171, %v2020, 0
      %v2108 = vsel %vm171, %v2021, 0
      %v2111 = vsel %vm171, %v2022, 0
      %v2114 = vsel %vm171, %v2023, 0
      %v2117 = vsel %vm171, %v2024, 0
      %v2120 = vsel %vm171, %v2025, 0
      %v2123 = vsel %vm171, %v2026, 0
      %v2126 = vsel %vm171, %v2027, 0
      %v2129 = vsel %vm171, %v2028, 0
      %v2132 = vsel %vm171, %v2029, 0
      %v2135 = vsel %vm171, %v2030, 0
      %v2138 = vsel %vm171, %v2031, 0
      %v2141 = vsel %vm171, %v2032, 0
      %v2144 = vsel %vm171, %v2033, 0
      %v2147 = vsel %vm171, %v2034, 0
      %v2150 = vsel %vm171, %v2035, 0
      %v2153 = vsel %vm171, %v2036, 0
      %v2156 = vsel %vm171, %v2037, 0
      %v2159 = vsel %vm171, %v2038, 0
      %v2162 = vsel %vm171, %v2039, 0
      %v2165 = vsel %vm171, %v2040, 0
      %v2168 = vsel %vm171, %v2041, 0
      %2170 = vmatpush.msra.mxu0 0.0
      %2171 = vmatpush.msra.mxu0 0.0
      %2172 = vmatpush.msra.mxu0 0.0
      %2173 = vmatpush.msra.mxu0 0.0
      %2174 = vmatpush.msra.mxu0 0.0
      %2175 = vmatpush.msra.mxu0 0.0
      %2176 = vmatpush.msra.mxu0 0.0
      %2177 = vmatpush.msra.mxu0 0.0
      %2178 = vmatpush.msra.mxu0 0.0
      %2179 = vmatpush.msra.mxu0 0.0
      %2180 = vmatpush.msra.mxu0 0.0
      %2181 = vmatpush.msra.mxu0 0.0
      %2182 = vmatpush.msra.mxu0 0.0
      %2183 = vmatpush.msra.mxu0 0.0
      %2184 = vmatpush.msra.mxu0 0.0
      %2185 = vmatpush.msra.mxu0 %v2009
      %2186 = vmatmul.f32.gmra.mxu0 %v2075
      %v2187 = vpop.f32.mrf.mxu0
      %v2188 = vadd.f32 0.0, %v2187
      %2189 = vmatmul.f32.gmra.mxu0 %v2078
      %v2190 = vpop.f32.mrf.mxu0
      %v2191 = vadd.f32 0.0, %v2190
      %2192 = vmatmul.f32.gmra.mxu0 %v2081
      %v2193 = vpop.f32.mrf.mxu0
      %v2194 = vadd.f32 0.0, %v2193
      %2195 = vmatmul.f32.gmra.mxu0 %v2084
      %v2196 = vpop.f32.mrf.mxu0
      %v2197 = vadd.f32 0.0, %v2196
      %2198 = vmatmul.f32.gmra.mxu0 %v2087
      %v2199 = vpop.f32.mrf.mxu0
      %v2200 = vadd.f32 0.0, %v2199
      %2201 = vmatmul.f32.gmra.mxu0 %v2090
      %v2202 = vpop.f32.mrf.mxu0
      %v2203 = vadd.f32 0.0, %v2202
      %2204 = vmatmul.f32.gmra.mxu0 %v2093
      %v2205 = vpop.f32.mrf.mxu0
      %v2206 = vadd.f32 0.0, %v2205
      %2207 = vmatmul.f32.gmra.mxu0 %v2096
      %v2208 = vpop.f32.mrf.mxu0
      %v2209 = vadd.f32 0.0, %v2208
      %2210 = vmatmul.f32.gmra.mxu0 %v2099
      %v2211 = vpop.f32.mrf.mxu0
      %v2212 = vadd.f32 0.0, %v2211
      %2213 = vmatmul.f32.gmra.mxu0 %v2102
      %v2214 = vpop.f32.mrf.mxu0
      %v2215 = vadd.f32 0.0, %v2214
      %2216 = vmatmul.f32.gmra.mxu0 %v2105
      %v2217 = vpop.f32.mrf.mxu0
      %v2218 = vadd.f32 0.0, %v2217
      %2219 = vmatmul.f32.gmra.mxu0 %v2108
      %v2220 = vpop.f32.mrf.mxu0
      %v2221 = vadd.f32 0.0, %v2220
      %2222 = vmatmul.f32.gmra.mxu0 %v2111
      %v2223 = vpop.f32.mrf.mxu0
      %v2224 = vadd.f32 0.0, %v2223
      %2225 = vmatmul.f32.gmra.mxu0 %v2114
      %v2226 = vpop.f32.mrf.mxu0
      %v2227 = vadd.f32 0.0, %v2226
      %2228 = vmatmul.f32.gmra.mxu0 %v2117
      %v2229 = vpop.f32.mrf.mxu0
      %v2230 = vadd.f32 0.0, %v2229
      %2231 = vmatmul.f32.gmra.mxu0 %v2120
      %v2232 = vpop.f32.mrf.mxu0
      %v2233 = vadd.f32 0.0, %v2232
      %2234 = vmatmul.f32.gmra.mxu0 %v2123
      %v2235 = vpop.f32.mrf.mxu0
      %v2236 = vadd.f32 0.0, %v2235
      %2237 = vmatmul.f32.gmra.mxu0 %v2126
      %v2238 = vpop.f32.mrf.mxu0
      %v2239 = vadd.f32 0.0, %v2238
      %2240 = vmatmul.f32.gmra.mxu0 %v2129
      %v2241 = vpop.f32.mrf.mxu0
      %v2242 = vadd.f32 0.0, %v2241
      %2243 = vmatmul.f32.gmra.mxu0 %v2132
      %v2244 = vpop.f32.mrf.mxu0
      %v2245 = vadd.f32 0.0, %v2244
      %2246 = vmatmul.f32.gmra.mxu0 %v2135
      %v2247 = vpop.f32.mrf.mxu0
      %v2248 = vadd.f32 0.0, %v2247
      %2249 = vmatmul.f32.gmra.mxu0 %v2138
      %v2250 = vpop.f32.mrf.mxu0
      %v2251 = vadd.f32 0.0, %v2250
      %2252 = vmatmul.f32.gmra.mxu0 %v2141
      %v2253 = vpop.f32.mrf.mxu0
      %v2254 = vadd.f32 0.0, %v2253
      %2255 = vmatmul.f32.gmra.mxu0 %v2144
      %v2256 = vpop.f32.mrf.mxu0
      %v2257 = vadd.f32 0.0, %v2256
      %2258 = vmatmul.f32.gmra.mxu0 %v2147
      %v2259 = vpop.f32.mrf.mxu0
      %v2260 = vadd.f32 0.0, %v2259
      %2261 = vmatmul.f32.gmra.mxu0 %v2150
      %v2262 = vpop.f32.mrf.mxu0
      %v2263 = vadd.f32 0.0, %v2262
      %2264 = vmatmul.f32.gmra.mxu0 %v2153
      %v2265 = vpop.f32.mrf.mxu0
      %v2266 = vadd.f32 0.0, %v2265
      %2267 = vmatmul.f32.gmra.mxu0 %v2156
      %v2268 = vpop.f32.mrf.mxu0
      %v2269 = vadd.f32 0.0, %v2268
      %2270 = vmatmul.f32.gmra.mxu0 %v2159
      %v2271 = vpop.f32.mrf.mxu0
      %v2272 = vadd.f32 0.0, %v2271
      %2273 = vmatmul.f32.gmra.mxu0 %v2162
      %v2274 = vpop.f32.mrf.mxu0
      %v2275 = vadd.f32 0.0, %v2274
      %2276 = vmatmul.f32.gmra.mxu0 %v2165
      %v2277 = vpop.f32.mrf.mxu0
      %v2278 = vadd.f32 0.0, %v2277
      %2279 = vmatmul.f32.gmra.mxu0 %v2168
      %v2280 = vpop.f32.mrf.mxu0
      %v2281 = vadd.f32 0.0, %v2280
      %2282 = vdwg.mxu0
      %v2283 = vadd.f32 %v2042, %v2188
      %v2284 = vadd.f32 %v2043, %v2191
      %v2285 = vadd.f32 %v2044, %v2194
      %v2286 = vadd.f32 %v2045, %v2197
      %v2287 = vadd.f32 %v2046, %v2200
      %v2288 = vadd.f32 %v2047, %v2203
      %v2289 = vadd.f32 %v2048, %v2206
      %v2290 = vadd.f32 %v2049, %v2209
      %v2291 = vadd.f32 %v2050, %v2212
      %v2292 = vadd.f32 %v2051, %v2215
      %v2293 = vadd.f32 %v2052, %v2218
      %v2294 = vadd.f32 %v2053, %v2221
      %v2295 = vadd.f32 %v2054, %v2224
      %v2296 = vadd.f32 %v2055, %v2227
      %v2297 = vadd.f32 %v2056, %v2230
      %v2298 = vadd.f32 %v2057, %v2233
      %v2299 = vadd.f32 %v2058, %v2236
      %v2300 = vadd.f32 %v2059, %v2239
      %v2301 = vadd.f32 %v2060, %v2242
      %v2302 = vadd.f32 %v2061, %v2245
      %v2303 = vadd.f32 %v2062, %v2248
      %v2304 = vadd.f32 %v2063, %v2251
      %v2305 = vadd.f32 %v2064, %v2254
      %v2306 = vadd.f32 %v2065, %v2257
      %v2307 = vadd.f32 %v2066, %v2260
      %v2308 = vadd.f32 %v2067, %v2263
      %v2309 = vadd.f32 %v2068, %v2266
      %v2310 = vadd.f32 %v2069, %v2269
      %v2311 = vadd.f32 %v2070, %v2272
      %v2312 = vadd.f32 %v2071, %v2275
      %v2313 = vadd.f32 %v2072, %v2278
      %v2314 = vadd.f32 %v2073, %v2281
      %2315 = vst.msk [vmem:[#allocation3] sm:$0xff] %vm171, %v2283
      %2316 = vst.msk [vmem:[#allocation3 + $0x8] sm:$0xff] %vm171, %v2284
      %2317 = vst.msk [vmem:[#allocation3 + $0x10] sm:$0xff] %vm171, %v2285
      %2318 = vst.msk [vmem:[#allocation3 + $0x18] sm:$0xff] %vm171, %v2286
      %2319 = vst.msk [vmem:[#allocation3 + $0x20] sm:$0xff] %vm171, %v2287
      %2320 = vst.msk [vmem:[#allocation3 + $0x28] sm:$0xff] %vm171, %v2288
      %2321 = vst.msk [vmem:[#allocation3 + $0x30] sm:$0xff] %vm171, %v2289
      %2322 = vst.msk [vmem:[#allocation3 + $0x38] sm:$0xff] %vm171, %v2290
      %2323 = vst.msk [vmem:[#allocation3 + $0x40] sm:$0xff] %vm171, %v2291
      %2324 = vst.msk [vmem:[#allocation3 + $0x48] sm:$0xff] %vm171, %v2292
      %2325 = vst.msk [vmem:[#allocation3 + $0x50] sm:$0xff] %vm171, %v2293
      %2326 = vst.msk [vmem:[#allocation3 + $0x58] sm:$0xff] %vm171, %v2294
      %2327 = vst.msk [vmem:[#allocation3 + $0x60] sm:$0xff] %vm171, %v2295
      %2328 = vst.msk [vmem:[#allocation3 + $0x68] sm:$0xff] %vm171, %v2296
      %2329 = vst.msk [vmem:[#allocation3 + $0x70] sm:$0xff] %vm171, %v2297
      %2330 = vst.msk [vmem:[#allocation3 + $0x78] sm:$0xff] %vm171, %v2298
      %2331 = vst.msk [vmem:[#allocation3 + $0x80] sm:$0xff] %vm171, %v2299
      %2332 = vst.msk [vmem:[#allocation3 + $0x88] sm:$0xff] %vm171, %v2300
      %2333 = vst.msk [vmem:[#allocation3 + $0x90] sm:$0xff] %vm171, %v2301
      %2334 = vst.msk [vmem:[#allocation3 + $0x98] sm:$0xff] %vm171, %v2302
      %2335 = vst.msk [vmem:[#allocation3 + $0xa0] sm:$0xff] %vm171, %v2303
      %2336 = vst.msk [vmem:[#allocation3 + $0xa8] sm:$0xff] %vm171, %v2304
      %2337 = vst.msk [vmem:[#allocation3 + $0xb0] sm:$0xff] %vm171, %v2305
      %2338 = vst.msk [vmem:[#allocation3 + $0xb8] sm:$0xff] %vm171, %v2306
      %2339 = vst.msk [vmem:[#allocation3 + $0xc0] sm:$0xff] %vm171, %v2307
      %2340 = vst.msk [vmem:[#allocation3 + $0xc8] sm:$0xff] %vm171, %v2308
      %2341 = vst.msk [vmem:[#allocation3 + $0xd0] sm:$0xff] %vm171, %v2309
      %2342 = vst.msk [vmem:[#allocation3 + $0xd8] sm:$0xff] %vm171, %v2310
      %2343 = vst.msk [vmem:[#allocation3 + $0xe0] sm:$0xff] %vm171, %v2311
      %2344 = vst.msk [vmem:[#allocation3 + $0xe8] sm:$0xff] %vm171, %v2312
      %2345 = vst.msk [vmem:[#allocation3 + $0xf0] sm:$0xff] %vm171, %v2313
      %2346 = vst.msk [vmem:[#allocation3 + $0xf8] sm:$0xff] %vm171, %v2314
      %s2347 = scalar_lea.vmem %s1, 48
      %v2348 = vld [vmem:[%s2347] sm:$0xff]
      %s2349 = scalar_lea.vmem [#allocation2], 48
      %v2350 = vld [vmem:[%s2349] sm:$0xff]
      %v2351 = vld [vmem:[%s2349 + $0x8] sm:$0xff]
      %v2352 = vld [vmem:[%s2349 + $0x18] sm:$0xff]
      %v2353 = vld [vmem:[%s2349 + $0x20] sm:$0xff]
      %v2354 = vld [vmem:[%s2349 + $0x30] sm:$0xff]
      %v2355 = vld [vmem:[%s2349 + $0x38] sm:$0xff]
      %v2356 = vld [vmem:[%s2349 + $0x48] sm:$0xff]
      %v2357 = vld [vmem:[%s2349 + $0x50] sm:$0xff]
      %v2358 = vld [vmem:[%s2349 + $0x60] sm:$0xff]
      %v2359 = vld [vmem:[%s2349 + $0x68] sm:$0xff]
      %v2360 = vld [vmem:[%s2349 + $0x78] sm:$0xff]
      %v2361 = vld [vmem:[%s2349 + $0x80] sm:$0xff]
      %v2362 = vld [vmem:[%s2349 + $0x90] sm:$0xff]
      %v2363 = vld [vmem:[%s2349 + $0x98] sm:$0xff]
      %v2364 = vld [vmem:[%s2349 + $0xa8] sm:$0xff]
      %v2365 = vld [vmem:[%s2349 + $0xb0] sm:$0xff]
      %v2366 = vld [vmem:[%s2349 + $0xc0] sm:$0xff]
      %v2367 = vld [vmem:[%s2349 + $0xc8] sm:$0xff]
      %v2368 = vld [vmem:[%s2349 + $0xd8] sm:$0xff]
      %v2369 = vld [vmem:[%s2349 + $0xe0] sm:$0xff]
      %v2370 = vld [vmem:[%s2349 + $0xf0] sm:$0xff]
      %v2371 = vld [vmem:[%s2349 + $0xf8] sm:$0xff]
      %v2372 = vld [vmem:[%s2349 + $0x108] sm:$0xff]
      %v2373 = vld [vmem:[%s2349 + $0x110] sm:$0xff]
      %v2374 = vld [vmem:[%s2349 + $0x120] sm:$0xff]
      %v2375 = vld [vmem:[%s2349 + $0x128] sm:$0xff]
      %v2376 = vld [vmem:[%s2349 + $0x138] sm:$0xff]
      %v2377 = vld [vmem:[%s2349 + $0x140] sm:$0xff]
      %v2378 = vld [vmem:[%s2349 + $0x150] sm:$0xff]
      %v2379 = vld [vmem:[%s2349 + $0x158] sm:$0xff]
      %v2380 = vld [vmem:[%s2349 + $0x168] sm:$0xff]
      %v2381 = vld [vmem:[%s2349 + $0x170] sm:$0xff]
      %v2382 = vld [vmem:[#allocation3] sm:$0xff]
      %v2383 = vld [vmem:[#allocation3 + $0x8] sm:$0xff]
      %v2384 = vld [vmem:[#allocation3 + $0x10] sm:$0xff]
      %v2385 = vld [vmem:[#allocation3 + $0x18] sm:$0xff]
      %v2386 = vld [vmem:[#allocation3 + $0x20] sm:$0xff]
      %v2387 = vld [vmem:[#allocation3 + $0x28] sm:$0xff]
      %v2388 = vld [vmem:[#allocation3 + $0x30] sm:$0xff]
      %v2389 = vld [vmem:[#allocation3 + $0x38] sm:$0xff]
      %v2390 = vld [vmem:[#allocation3 + $0x40] sm:$0xff]
      %v2391 = vld [vmem:[#allocation3 + $0x48] sm:$0xff]
      %v2392 = vld [vmem:[#allocation3 + $0x50] sm:$0xff]
      %v2393 = vld [vmem:[#allocation3 + $0x58] sm:$0xff]
      %v2394 = vld [vmem:[#allocation3 + $0x60] sm:$0xff]
      %v2395 = vld [vmem:[#allocation3 + $0x68] sm:$0xff]
      %v2396 = vld [vmem:[#allocation3 + $0x70] sm:$0xff]
      %v2397 = vld [vmem:[#allocation3 + $0x78] sm:$0xff]
      %v2398 = vld [vmem:[#allocation3 + $0x80] sm:$0xff]
      %v2399 = vld [vmem:[#allocation3 + $0x88] sm:$0xff]
      %v2400 = vld [vmem:[#allocation3 + $0x90] sm:$0xff]
      %v2401 = vld [vmem:[#allocation3 + $0x98] sm:$0xff]
      %v2402 = vld [vmem:[#allocation3 + $0xa0] sm:$0xff]
      %v2403 = vld [vmem:[#allocation3 + $0xa8] sm:$0xff]
      %v2404 = vld [vmem:[#allocation3 + $0xb0] sm:$0xff]
      %v2405 = vld [vmem:[#allocation3 + $0xb8] sm:$0xff]
      %v2406 = vld [vmem:[#allocation3 + $0xc0] sm:$0xff]
      %v2407 = vld [vmem:[#allocation3 + $0xc8] sm:$0xff]
      %v2408 = vld [vmem:[#allocation3 + $0xd0] sm:$0xff]
      %v2409 = vld [vmem:[#allocation3 + $0xd8] sm:$0xff]
      %v2410 = vld [vmem:[#allocation3 + $0xe0] sm:$0xff]
      %v2411 = vld [vmem:[#allocation3 + $0xe8] sm:$0xff]
      %v2412 = vld [vmem:[#allocation3 + $0xf0] sm:$0xff]
      %v2413 = vld [vmem:[#allocation3 + $0xf8] sm:$0xff]
      %v2415 = vsel %vm171, %v2350, 0
      %v2418 = vsel %vm171, %v2351, 0
      %v2421 = vsel %vm171, %v2352, 0
      %v2424 = vsel %vm171, %v2353, 0
      %v2427 = vsel %vm171, %v2354, 0
      %v2430 = vsel %vm171, %v2355, 0
      %v2433 = vsel %vm171, %v2356, 0
      %v2436 = vsel %vm171, %v2357, 0
      %v2439 = vsel %vm171, %v2358, 0
      %v2442 = vsel %vm171, %v2359, 0
      %v2445 = vsel %vm171, %v2360, 0
      %v2448 = vsel %vm171, %v2361, 0
      %v2451 = vsel %vm171, %v2362, 0
      %v2454 = vsel %vm171, %v2363, 0
      %v2457 = vsel %vm171, %v2364, 0
      %v2460 = vsel %vm171, %v2365, 0
      %v2463 = vsel %vm171, %v2366, 0
      %v2466 = vsel %vm171, %v2367, 0
      %v2469 = vsel %vm171, %v2368, 0
      %v2472 = vsel %vm171, %v2369, 0
      %v2475 = vsel %vm171, %v2370, 0
      %v2478 = vsel %vm171, %v2371, 0
      %v2481 = vsel %vm171, %v2372, 0
      %v2484 = vsel %vm171, %v2373, 0
      %v2487 = vsel %vm171, %v2374, 0
      %v2490 = vsel %vm171, %v2375, 0
      %v2493 = vsel %vm171, %v2376, 0
      %v2496 = vsel %vm171, %v2377, 0
      %v2499 = vsel %vm171, %v2378, 0
      %v2502 = vsel %vm171, %v2379, 0
      %v2505 = vsel %vm171, %v2380, 0
      %v2508 = vsel %vm171, %v2381, 0
      %2510 = vmatpush.msra.mxu0 0.0
      %2511 = vmatpush.msra.mxu0 0.0
      %2512 = vmatpush.msra.mxu0 0.0
      %2513 = vmatpush.msra.mxu0 0.0
      %2514 = vmatpush.msra.mxu0 0.0
      %2515 = vmatpush.msra.mxu0 0.0
      %2516 = vmatpush.msra.mxu0 0.0
      %2517 = vmatpush.msra.mxu0 0.0
      %2518 = vmatpush.msra.mxu0 0.0
      %2519 = vmatpush.msra.mxu0 0.0
      %2520 = vmatpush.msra.mxu0 0.0
      %2521 = vmatpush.msra.mxu0 0.0
      %2522 = vmatpush.msra.mxu0 0.0
      %2523 = vmatpush.msra.mxu0 0.0
      %2524 = vmatpush.msra.mxu0 0.0
      %2525 = vmatpush.msra.mxu0 %v2348
      %2526 = vmatmul.f32.gmra.mxu0 %v2415
      %v2527 = vpop.f32.mrf.mxu0
      %v2528 = vadd.f32 0.0, %v2527
      %2529 = vmatmul.f32.gmra.mxu0 %v2418
      %v2530 = vpop.f32.mrf.mxu0
      %v2531 = vadd.f32 0.0, %v2530
      %2532 = vmatmul.f32.gmra.mxu0 %v2421
      %v2533 = vpop.f32.mrf.mxu0
      %v2534 = vadd.f32 0.0, %v2533
      %2535 = vmatmul.f32.gmra.mxu0 %v2424
      %v2536 = vpop.f32.mrf.mxu0
      %v2537 = vadd.f32 0.0, %v2536
      %2538 = vmatmul.f32.gmra.mxu0 %v2427
      %v2539 = vpop.f32.mrf.mxu0
      %v2540 = vadd.f32 0.0, %v2539
      %2541 = vmatmul.f32.gmra.mxu0 %v2430
      %v2542 = vpop.f32.mrf.mxu0
      %v2543 = vadd.f32 0.0, %v2542
      %2544 = vmatmul.f32.gmra.mxu0 %v2433
      %v2545 = vpop.f32.mrf.mxu0
      %v2546 = vadd.f32 0.0, %v2545
      %2547 = vmatmul.f32.gmra.mxu0 %v2436
      %v2548 = vpop.f32.mrf.mxu0
      %v2549 = vadd.f32 0.0, %v2548
      %2550 = vmatmul.f32.gmra.mxu0 %v2439
      %v2551 = vpop.f32.mrf.mxu0
      %v2552 = vadd.f32 0.0, %v2551
      %2553 = vmatmul.f32.gmra.mxu0 %v2442
      %v2554 = vpop.f32.mrf.mxu0
      %v2555 = vadd.f32 0.0, %v2554
      %2556 = vmatmul.f32.gmra.mxu0 %v2445
      %v2557 = vpop.f32.mrf.mxu0
      %v2558 = vadd.f32 0.0, %v2557
      %2559 = vmatmul.f32.gmra.mxu0 %v2448
      %v2560 = vpop.f32.mrf.mxu0
      %v2561 = vadd.f32 0.0, %v2560
      %2562 = vmatmul.f32.gmra.mxu0 %v2451
      %v2563 = vpop.f32.mrf.mxu0
      %v2564 = vadd.f32 0.0, %v2563
      %2565 = vmatmul.f32.gmra.mxu0 %v2454
      %v2566 = vpop.f32.mrf.mxu0
      %v2567 = vadd.f32 0.0, %v2566
      %2568 = vmatmul.f32.gmra.mxu0 %v2457
      %v2569 = vpop.f32.mrf.mxu0
      %v2570 = vadd.f32 0.0, %v2569
      %2571 = vmatmul.f32.gmra.mxu0 %v2460
      %v2572 = vpop.f32.mrf.mxu0
      %v2573 = vadd.f32 0.0, %v2572
      %2574 = vmatmul.f32.gmra.mxu0 %v2463
      %v2575 = vpop.f32.mrf.mxu0
      %v2576 = vadd.f32 0.0, %v2575
      %2577 = vmatmul.f32.gmra.mxu0 %v2466
      %v2578 = vpop.f32.mrf.mxu0
      %v2579 = vadd.f32 0.0, %v2578
      %2580 = vmatmul.f32.gmra.mxu0 %v2469
      %v2581 = vpop.f32.mrf.mxu0
      %v2582 = vadd.f32 0.0, %v2581
      %2583 = vmatmul.f32.gmra.mxu0 %v2472
      %v2584 = vpop.f32.mrf.mxu0
      %v2585 = vadd.f32 0.0, %v2584
      %2586 = vmatmul.f32.gmra.mxu0 %v2475
      %v2587 = vpop.f32.mrf.mxu0
      %v2588 = vadd.f32 0.0, %v2587
      %2589 = vmatmul.f32.gmra.mxu0 %v2478
      %v2590 = vpop.f32.mrf.mxu0
      %v2591 = vadd.f32 0.0, %v2590
      %2592 = vmatmul.f32.gmra.mxu0 %v2481
      %v2593 = vpop.f32.mrf.mxu0
      %v2594 = vadd.f32 0.0, %v2593
      %2595 = vmatmul.f32.gmra.mxu0 %v2484
      %v2596 = vpop.f32.mrf.mxu0
      %v2597 = vadd.f32 0.0, %v2596
      %2598 = vmatmul.f32.gmra.mxu0 %v2487
      %v2599 = vpop.f32.mrf.mxu0
      %v2600 = vadd.f32 0.0, %v2599
      %2601 = vmatmul.f32.gmra.mxu0 %v2490
      %v2602 = vpop.f32.mrf.mxu0
      %v2603 = vadd.f32 0.0, %v2602
      %2604 = vmatmul.f32.gmra.mxu0 %v2493
      %v2605 = vpop.f32.mrf.mxu0
      %v2606 = vadd.f32 0.0, %v2605
      %2607 = vmatmul.f32.gmra.mxu0 %v2496
      %v2608 = vpop.f32.mrf.mxu0
      %v2609 = vadd.f32 0.0, %v2608
      %2610 = vmatmul.f32.gmra.mxu0 %v2499
      %v2611 = vpop.f32.mrf.mxu0
      %v2612 = vadd.f32 0.0, %v2611
      %2613 = vmatmul.f32.gmra.mxu0 %v2502
      %v2614 = vpop.f32.mrf.mxu0
      %v2615 = vadd.f32 0.0, %v2614
      %2616 = vmatmul.f32.gmra.mxu0 %v2505
      %v2617 = vpop.f32.mrf.mxu0
      %v2618 = vadd.f32 0.0, %v2617
      %2619 = vmatmul.f32.gmra.mxu0 %v2508
      %v2620 = vpop.f32.mrf.mxu0
      %v2621 = vadd.f32 0.0, %v2620
      %2622 = vdwg.mxu0
      %v2623 = vadd.f32 %v2382, %v2528
      %v2624 = vadd.f32 %v2383, %v2531
      %v2625 = vadd.f32 %v2384, %v2534
      %v2626 = vadd.f32 %v2385, %v2537
      %v2627 = vadd.f32 %v2386, %v2540
      %v2628 = vadd.f32 %v2387, %v2543
      %v2629 = vadd.f32 %v2388, %v2546
      %v2630 = vadd.f32 %v2389, %v2549
      %v2631 = vadd.f32 %v2390, %v2552
      %v2632 = vadd.f32 %v2391, %v2555
      %v2633 = vadd.f32 %v2392, %v2558
      %v2634 = vadd.f32 %v2393, %v2561
      %v2635 = vadd.f32 %v2394, %v2564
      %v2636 = vadd.f32 %v2395, %v2567
      %v2637 = vadd.f32 %v2396, %v2570
      %v2638 = vadd.f32 %v2397, %v2573
      %v2639 = vadd.f32 %v2398, %v2576
      %v2640 = vadd.f32 %v2399, %v2579
      %v2641 = vadd.f32 %v2400, %v2582
      %v2642 = vadd.f32 %v2401, %v2585
      %v2643 = vadd.f32 %v2402, %v2588
      %v2644 = vadd.f32 %v2403, %v2591
      %v2645 = vadd.f32 %v2404, %v2594
      %v2646 = vadd.f32 %v2405, %v2597
      %v2647 = vadd.f32 %v2406, %v2600
      %v2648 = vadd.f32 %v2407, %v2603
      %v2649 = vadd.f32 %v2408, %v2606
      %v2650 = vadd.f32 %v2409, %v2609
      %v2651 = vadd.f32 %v2410, %v2612
      %v2652 = vadd.f32 %v2411, %v2615
      %v2653 = vadd.f32 %v2412, %v2618
      %v2654 = vadd.f32 %v2413, %v2621
      %2655 = vst.msk [vmem:[#allocation3] sm:$0xff] %vm171, %v2623
      %2656 = vst.msk [vmem:[#allocation3 + $0x8] sm:$0xff] %vm171, %v2624
      %2657 = vst.msk [vmem:[#allocation3 + $0x10] sm:$0xff] %vm171, %v2625
      %2658 = vst.msk [vmem:[#allocation3 + $0x18] sm:$0xff] %vm171, %v2626
      %2659 = vst.msk [vmem:[#allocation3 + $0x20] sm:$0xff] %vm171, %v2627
      %2660 = vst.msk [vmem:[#allocation3 + $0x28] sm:$0xff] %vm171, %v2628
      %2661 = vst.msk [vmem:[#allocation3 + $0x30] sm:$0xff] %vm171, %v2629
      %2662 = vst.msk [vmem:[#allocation3 + $0x38] sm:$0xff] %vm171, %v2630
      %2663 = vst.msk [vmem:[#allocation3 + $0x40] sm:$0xff] %vm171, %v2631
      %2664 = vst.msk [vmem:[#allocation3 + $0x48] sm:$0xff] %vm171, %v2632
      %2665 = vst.msk [vmem:[#allocation3 + $0x50] sm:$0xff] %vm171, %v2633
      %2666 = vst.msk [vmem:[#allocation3 + $0x58] sm:$0xff] %vm171, %v2634
      %2667 = vst.msk [vmem:[#allocation3 + $0x60] sm:$0xff] %vm171, %v2635
      %2668 = vst.msk [vmem:[#allocation3 + $0x68] sm:$0xff] %vm171, %v2636
      %2669 = vst.msk [vmem:[#allocation3 + $0x70] sm:$0xff] %vm171, %v2637
      %2670 = vst.msk [vmem:[#allocation3 + $0x78] sm:$0xff] %vm171, %v2638
      %2671 = vst.msk [vmem:[#allocation3 + $0x80] sm:$0xff] %vm171, %v2639
      %2672 = vst.msk [vmem:[#allocation3 + $0x88] sm:$0xff] %vm171, %v2640
      %2673 = vst.msk [vmem:[#allocation3 + $0x90] sm:$0xff] %vm171, %v2641
      %2674 = vst.msk [vmem:[#allocation3 + $0x98] sm:$0xff] %vm171, %v2642
      %2675 = vst.msk [vmem:[#allocation3 + $0xa0] sm:$0xff] %vm171, %v2643
      %2676 = vst.msk [vmem:[#allocation3 + $0xa8] sm:$0xff] %vm171, %v2644
      %2677 = vst.msk [vmem:[#allocation3 + $0xb0] sm:$0xff] %vm171, %v2645
      %2678 = vst.msk [vmem:[#allocation3 + $0xb8] sm:$0xff] %vm171, %v2646
      %2679 = vst.msk [vmem:[#allocation3 + $0xc0] sm:$0xff] %vm171, %v2647
      %2680 = vst.msk [vmem:[#allocation3 + $0xc8] sm:$0xff] %vm171, %v2648
      %2681 = vst.msk [vmem:[#allocation3 + $0xd0] sm:$0xff] %vm171, %v2649
      %2682 = vst.msk [vmem:[#allocation3 + $0xd8] sm:$0xff] %vm171, %v2650
      %2683 = vst.msk [vmem:[#allocation3 + $0xe0] sm:$0xff] %vm171, %v2651
      %2684 = vst.msk [vmem:[#allocation3 + $0xe8] sm:$0xff] %vm171, %v2652
      %2685 = vst.msk [vmem:[#allocation3 + $0xf0] sm:$0xff] %vm171, %v2653
      %2686 = vst.msk [vmem:[#allocation3 + $0xf8] sm:$0xff] %vm171, %v2654
      %s2687 = scalar_lea.vmem %s1, 56
      %v2688 = vld [vmem:[%s2687] sm:$0xff]
      %v2689 = vld [vmem:[%s2349 + $0x1] sm:$0xff]
      %v2690 = vld [vmem:[%s2349 + $0x9] sm:$0xff]
      %v2691 = vld [vmem:[%s2349 + $0x19] sm:$0xff]
      %v2692 = vld [vmem:[%s2349 + $0x21] sm:$0xff]
      %v2693 = vld [vmem:[%s2349 + $0x31] sm:$0xff]
      %v2694 = vld [vmem:[%s2349 + $0x39] sm:$0xff]
      %v2695 = vld [vmem:[%s2349 + $0x49] sm:$0xff]
      %v2696 = vld [vmem:[%s2349 + $0x51] sm:$0xff]
      %v2697 = vld [vmem:[%s2349 + $0x61] sm:$0xff]
      %v2698 = vld [vmem:[%s2349 + $0x69] sm:$0xff]
      %v2699 = vld [vmem:[%s2349 + $0x79] sm:$0xff]
      %v2700 = vld [vmem:[%s2349 + $0x81] sm:$0xff]
      %v2701 = vld [vmem:[%s2349 + $0x91] sm:$0xff]
      %v2702 = vld [vmem:[%s2349 + $0x99] sm:$0xff]
      %v2703 = vld [vmem:[%s2349 + $0xa9] sm:$0xff]
      %v2704 = vld [vmem:[%s2349 + $0xb1] sm:$0xff]
      %v2705 = vld [vmem:[%s2349 + $0xc1] sm:$0xff]
      %v2706 = vld [vmem:[%s2349 + $0xc9] sm:$0xff]
      %v2707 = vld [vmem:[%s2349 + $0xd9] sm:$0xff]
      %v2708 = vld [vmem:[%s2349 + $0xe1] sm:$0xff]
      %v2709 = vld [vmem:[%s2349 + $0xf1] sm:$0xff]
      %v2710 = vld [vmem:[%s2349 + $0xf9] sm:$0xff]
      %v2711 = vld [vmem:[%s2349 + $0x109] sm:$0xff]
      %v2712 = vld [vmem:[%s2349 + $0x111] sm:$0xff]
      %v2713 = vld [vmem:[%s2349 + $0x121] sm:$0xff]
      %v2714 = vld [vmem:[%s2349 + $0x129] sm:$0xff]
      %v2715 = vld [vmem:[%s2349 + $0x139] sm:$0xff]
      %v2716 = vld [vmem:[%s2349 + $0x141] sm:$0xff]
      %v2717 = vld [vmem:[%s2349 + $0x151] sm:$0xff]
      %v2718 = vld [vmem:[%s2349 + $0x159] sm:$0xff]
      %v2719 = vld [vmem:[%s2349 + $0x169] sm:$0xff]
      %v2720 = vld [vmem:[%s2349 + $0x171] sm:$0xff]
      %v2721 = vld [vmem:[#allocation3] sm:$0xff]
      %v2722 = vld [vmem:[#allocation3 + $0x8] sm:$0xff]
      %v2723 = vld [vmem:[#allocation3 + $0x10] sm:$0xff]
      %v2724 = vld [vmem:[#allocation3 + $0x18] sm:$0xff]
      %v2725 = vld [vmem:[#allocation3 + $0x20] sm:$0xff]
      %v2726 = vld [vmem:[#allocation3 + $0x28] sm:$0xff]
      %v2727 = vld [vmem:[#allocation3 + $0x30] sm:$0xff]
      %v2728 = vld [vmem:[#allocation3 + $0x38] sm:$0xff]
      %v2729 = vld [vmem:[#allocation3 + $0x40] sm:$0xff]
      %v2730 = vld [vmem:[#allocation3 + $0x48] sm:$0xff]
      %v2731 = vld [vmem:[#allocation3 + $0x50] sm:$0xff]
      %v2732 = vld [vmem:[#allocation3 + $0x58] sm:$0xff]
      %v2733 = vld [vmem:[#allocation3 + $0x60] sm:$0xff]
      %v2734 = vld [vmem:[#allocation3 + $0x68] sm:$0xff]
      %v2735 = vld [vmem:[#allocation3 + $0x70] sm:$0xff]
      %v2736 = vld [vmem:[#allocation3 + $0x78] sm:$0xff]
      %v2737 = vld [vmem:[#allocation3 + $0x80] sm:$0xff]
      %v2738 = vld [vmem:[#allocation3 + $0x88] sm:$0xff]
      %v2739 = vld [vmem:[#allocation3 + $0x90] sm:$0xff]
      %v2740 = vld [vmem:[#allocation3 + $0x98] sm:$0xff]
      %v2741 = vld [vmem:[#allocation3 + $0xa0] sm:$0xff]
      %v2742 = vld [vmem:[#allocation3 + $0xa8] sm:$0xff]
      %v2743 = vld [vmem:[#allocation3 + $0xb0] sm:$0xff]
      %v2744 = vld [vmem:[#allocation3 + $0xb8] sm:$0xff]
      %v2745 = vld [vmem:[#allocation3 + $0xc0] sm:$0xff]
      %v2746 = vld [vmem:[#allocation3 + $0xc8] sm:$0xff]
      %v2747 = vld [vmem:[#allocation3 + $0xd0] sm:$0xff]
      %v2748 = vld [vmem:[#allocation3 + $0xd8] sm:$0xff]
      %v2749 = vld [vmem:[#allocation3 + $0xe0] sm:$0xff]
      %v2750 = vld [vmem:[#allocation3 + $0xe8] sm:$0xff]
      %v2751 = vld [vmem:[#allocation3 + $0xf0] sm:$0xff]
      %v2752 = vld [vmem:[#allocation3 + $0xf8] sm:$0xff]
      %v2754 = vsel %vm171, %v2689, 0
      %v2757 = vsel %vm171, %v2690, 0
      %v2760 = vsel %vm171, %v2691, 0
      %v2763 = vsel %vm171, %v2692, 0
      %v2766 = vsel %vm171, %v2693, 0
      %v2769 = vsel %vm171, %v2694, 0
      %v2772 = vsel %vm171, %v2695, 0
      %v2775 = vsel %vm171, %v2696, 0
      %v2778 = vsel %vm171, %v2697, 0
      %v2781 = vsel %vm171, %v2698, 0
      %v2784 = vsel %vm171, %v2699, 0
      %v2787 = vsel %vm171, %v2700, 0
      %v2790 = vsel %vm171, %v2701, 0
      %v2793 = vsel %vm171, %v2702, 0
      %v2796 = vsel %vm171, %v2703, 0
      %v2799 = vsel %vm171, %v2704, 0
      %v2802 = vsel %vm171, %v2705, 0
      %v2805 = vsel %vm171, %v2706, 0
      %v2808 = vsel %vm171, %v2707, 0
      %v2811 = vsel %vm171, %v2708, 0
      %v2814 = vsel %vm171, %v2709, 0
      %v2817 = vsel %vm171, %v2710, 0
      %v2820 = vsel %vm171, %v2711, 0
      %v2823 = vsel %vm171, %v2712, 0
      %v2826 = vsel %vm171, %v2713, 0
      %v2829 = vsel %vm171, %v2714, 0
      %v2832 = vsel %vm171, %v2715, 0
      %v2835 = vsel %vm171, %v2716, 0
      %v2838 = vsel %vm171, %v2717, 0
      %v2841 = vsel %vm171, %v2718, 0
      %v2844 = vsel %vm171, %v2719, 0
      %v2847 = vsel %vm171, %v2720, 0
      %2849 = vmatpush.msra.mxu0 0.0
      %2850 = vmatpush.msra.mxu0 0.0
      %2851 = vmatpush.msra.mxu0 0.0
      %2852 = vmatpush.msra.mxu0 0.0
      %2853 = vmatpush.msra.mxu0 0.0
      %2854 = vmatpush.msra.mxu0 0.0
      %2855 = vmatpush.msra.mxu0 0.0
      %2856 = vmatpush.msra.mxu0 0.0
      %2857 = vmatpush.msra.mxu0 0.0
      %2858 = vmatpush.msra.mxu0 0.0
      %2859 = vmatpush.msra.mxu0 0.0
      %2860 = vmatpush.msra.mxu0 0.0
      %2861 = vmatpush.msra.mxu0 0.0
      %2862 = vmatpush.msra.mxu0 0.0
      %2863 = vmatpush.msra.mxu0 0.0
      %2864 = vmatpush.msra.mxu0 %v2688
      %2865 = vmatmul.f32.gmra.mxu0 %v2754
      %v2866 = vpop.f32.mrf.mxu0
      %v2867 = vadd.f32 0.0, %v2866
      %2868 = vmatmul.f32.gmra.mxu0 %v2757
      %v2869 = vpop.f32.mrf.mxu0
      %v2870 = vadd.f32 0.0, %v2869
      %2871 = vmatmul.f32.gmra.mxu0 %v2760
      %v2872 = vpop.f32.mrf.mxu0
      %v2873 = vadd.f32 0.0, %v2872
      %2874 = vmatmul.f32.gmra.mxu0 %v2763
      %v2875 = vpop.f32.mrf.mxu0
      %v2876 = vadd.f32 0.0, %v2875
      %2877 = vmatmul.f32.gmra.mxu0 %v2766
      %v2878 = vpop.f32.mrf.mxu0
      %v2879 = vadd.f32 0.0, %v2878
      %2880 = vmatmul.f32.gmra.mxu0 %v2769
      %v2881 = vpop.f32.mrf.mxu0
      %v2882 = vadd.f32 0.0, %v2881
      %2883 = vmatmul.f32.gmra.mxu0 %v2772
      %v2884 = vpop.f32.mrf.mxu0
      %v2885 = vadd.f32 0.0, %v2884
      %2886 = vmatmul.f32.gmra.mxu0 %v2775
      %v2887 = vpop.f32.mrf.mxu0
      %v2888 = vadd.f32 0.0, %v2887
      %2889 = vmatmul.f32.gmra.mxu0 %v2778
      %v2890 = vpop.f32.mrf.mxu0
      %v2891 = vadd.f32 0.0, %v2890
      %2892 = vmatmul.f32.gmra.mxu0 %v2781
      %v2893 = vpop.f32.mrf.mxu0
      %v2894 = vadd.f32 0.0, %v2893
      %2895 = vmatmul.f32.gmra.mxu0 %v2784
      %v2896 = vpop.f32.mrf.mxu0
      %v2897 = vadd.f32 0.0, %v2896
      %2898 = vmatmul.f32.gmra.mxu0 %v2787
      %v2899 = vpop.f32.mrf.mxu0
      %v2900 = vadd.f32 0.0, %v2899
      %2901 = vmatmul.f32.gmra.mxu0 %v2790
      %v2902 = vpop.f32.mrf.mxu0
      %v2903 = vadd.f32 0.0, %v2902
      %2904 = vmatmul.f32.gmra.mxu0 %v2793
      %v2905 = vpop.f32.mrf.mxu0
      %v2906 = vadd.f32 0.0, %v2905
      %2907 = vmatmul.f32.gmra.mxu0 %v2796
      %v2908 = vpop.f32.mrf.mxu0
      %v2909 = vadd.f32 0.0, %v2908
      %2910 = vmatmul.f32.gmra.mxu0 %v2799
      %v2911 = vpop.f32.mrf.mxu0
      %v2912 = vadd.f32 0.0, %v2911
      %2913 = vmatmul.f32.gmra.mxu0 %v2802
      %v2914 = vpop.f32.mrf.mxu0
      %v2915 = vadd.f32 0.0, %v2914
      %2916 = vmatmul.f32.gmra.mxu0 %v2805
      %v2917 = vpop.f32.mrf.mxu0
      %v2918 = vadd.f32 0.0, %v2917
      %2919 = vmatmul.f32.gmra.mxu0 %v2808
      %v2920 = vpop.f32.mrf.mxu0
      %v2921 = vadd.f32 0.0, %v2920
      %2922 = vmatmul.f32.gmra.mxu0 %v2811
      %v2923 = vpop.f32.mrf.mxu0
      %v2924 = vadd.f32 0.0, %v2923
      %2925 = vmatmul.f32.gmra.mxu0 %v2814
      %v2926 = vpop.f32.mrf.mxu0
      %v2927 = vadd.f32 0.0, %v2926
      %2928 = vmatmul.f32.gmra.mxu0 %v2817
      %v2929 = vpop.f32.mrf.mxu0
      %v2930 = vadd.f32 0.0, %v2929
      %2931 = vmatmul.f32.gmra.mxu0 %v2820
      %v2932 = vpop.f32.mrf.mxu0
      %v2933 = vadd.f32 0.0, %v2932
      %2934 = vmatmul.f32.gmra.mxu0 %v2823
      %v2935 = vpop.f32.mrf.mxu0
      %v2936 = vadd.f32 0.0, %v2935
      %2937 = vmatmul.f32.gmra.mxu0 %v2826
      %v2938 = vpop.f32.mrf.mxu0
      %v2939 = vadd.f32 0.0, %v2938
      %2940 = vmatmul.f32.gmra.mxu0 %v2829
      %v2941 = vpop.f32.mrf.mxu0
      %v2942 = vadd.f32 0.0, %v2941
      %2943 = vmatmul.f32.gmra.mxu0 %v2832
      %v2944 = vpop.f32.mrf.mxu0
      %v2945 = vadd.f32 0.0, %v2944
      %2946 = vmatmul.f32.gmra.mxu0 %v2835
      %v2947 = vpop.f32.mrf.mxu0
      %v2948 = vadd.f32 0.0, %v2947
      %2949 = vmatmul.f32.gmra.mxu0 %v2838
      %v2950 = vpop.f32.mrf.mxu0
      %v2951 = vadd.f32 0.0, %v2950
      %2952 = vmatmul.f32.gmra.mxu0 %v2841
      %v2953 = vpop.f32.mrf.mxu0
      %v2954 = vadd.f32 0.0, %v2953
      %2955 = vmatmul.f32.gmra.mxu0 %v2844
      %v2956 = vpop.f32.mrf.mxu0
      %v2957 = vadd.f32 0.0, %v2956
      %2958 = vmatmul.f32.gmra.mxu0 %v2847
      %v2959 = vpop.f32.mrf.mxu0
      %v2960 = vadd.f32 0.0, %v2959
      %2961 = vdwg.mxu0
      %v2962 = vadd.f32 %v2721, %v2867
      %v2963 = vadd.f32 %v2722, %v2870
      %v2964 = vadd.f32 %v2723, %v2873
      %v2965 = vadd.f32 %v2724, %v2876
      %v2966 = vadd.f32 %v2725, %v2879
      %v2967 = vadd.f32 %v2726, %v2882
      %v2968 = vadd.f32 %v2727, %v2885
      %v2969 = vadd.f32 %v2728, %v2888
      %v2970 = vadd.f32 %v2729, %v2891
      %v2971 = vadd.f32 %v2730, %v2894
      %v2972 = vadd.f32 %v2731, %v2897
      %v2973 = vadd.f32 %v2732, %v2900
      %v2974 = vadd.f32 %v2733, %v2903
      %v2975 = vadd.f32 %v2734, %v2906
      %v2976 = vadd.f32 %v2735, %v2909
      %v2977 = vadd.f32 %v2736, %v2912
      %v2978 = vadd.f32 %v2737, %v2915
      %v2979 = vadd.f32 %v2738, %v2918
      %v2980 = vadd.f32 %v2739, %v2921
      %v2981 = vadd.f32 %v2740, %v2924
      %v2982 = vadd.f32 %v2741, %v2927
      %v2983 = vadd.f32 %v2742, %v2930
      %v2984 = vadd.f32 %v2743, %v2933
      %v2985 = vadd.f32 %v2744, %v2936
      %v2986 = vadd.f32 %v2745, %v2939
      %v2987 = vadd.f32 %v2746, %v2942
      %v2988 = vadd.f32 %v2747, %v2945
      %v2989 = vadd.f32 %v2748, %v2948
      %v2990 = vadd.f32 %v2749, %v2951
      %v2991 = vadd.f32 %v2750, %v2954
      %v2992 = vadd.f32 %v2751, %v2957
      %v2993 = vadd.f32 %v2752, %v2960
      %2994 = vst.msk [vmem:[#allocation3] sm:$0xff] %vm171, %v2962
      %2995 = vst.msk [vmem:[#allocation3 + $0x8] sm:$0xff] %vm171, %v2963
      %2996 = vst.msk [vmem:[#allocation3 + $0x10] sm:$0xff] %vm171, %v2964
      %2997 = vst.msk [vmem:[#allocation3 + $0x18] sm:$0xff] %vm171, %v2965
      %2998 = vst.msk [vmem:[#allocation3 + $0x20] sm:$0xff] %vm171, %v2966
      %2999 = vst.msk [vmem:[#allocation3 + $0x28] sm:$0xff] %vm171, %v2967
      %3000 = vst.msk [vmem:[#allocation3 + $0x30] sm:$0xff] %vm171, %v2968
      %3001 = vst.msk [vmem:[#allocation3 + $0x38] sm:$0xff] %vm171, %v2969
      %3002 = vst.msk [vmem:[#allocation3 + $0x40] sm:$0xff] %vm171, %v2970
      %3003 = vst.msk [vmem:[#allocation3 + $0x48] sm:$0xff] %vm171, %v2971
      %3004 = vst.msk [vmem:[#allocation3 + $0x50] sm:$0xff] %vm171, %v2972
      %3005 = vst.msk [vmem:[#allocation3 + $0x58] sm:$0xff] %vm171, %v2973
      %3006 = vst.msk [vmem:[#allocation3 + $0x60] sm:$0xff] %vm171, %v2974
      %3007 = vst.msk [vmem:[#allocation3 + $0x68] sm:$0xff] %vm171, %v2975
      %3008 = vst.msk [vmem:[#allocation3 + $0x70] sm:$0xff] %vm171, %v2976
      %3009 = vst.msk [vmem:[#allocation3 + $0x78] sm:$0xff] %vm171, %v2977
      %3010 = vst.msk [vmem:[#allocation3 + $0x80] sm:$0xff] %vm171, %v2978
      %3011 = vst.msk [vmem:[#allocation3 + $0x88] sm:$0xff] %vm171, %v2979
      %3012 = vst.msk [vmem:[#allocation3 + $0x90] sm:$0xff] %vm171, %v2980
      %3013 = vst.msk [vmem:[#allocation3 + $0x98] sm:$0xff] %vm171, %v2981
      %3014 = vst.msk [vmem:[#allocation3 + $0xa0] sm:$0xff] %vm171, %v2982
      %3015 = vst.msk [vmem:[#allocation3 + $0xa8] sm:$0xff] %vm171, %v2983
      %3016 = vst.msk [vmem:[#allocation3 + $0xb0] sm:$0xff] %vm171, %v2984
      %3017 = vst.msk [vmem:[#allocation3 + $0xb8] sm:$0xff] %vm171, %v2985
      %3018 = vst.msk [vmem:[#allocation3 + $0xc0] sm:$0xff] %vm171, %v2986
      %3019 = vst.msk [vmem:[#allocation3 + $0xc8] sm:$0xff] %vm171, %v2987
      %3020 = vst.msk [vmem:[#allocation3 + $0xd0] sm:$0xff] %vm171, %v2988
      %3021 = vst.msk [vmem:[#allocation3 + $0xd8] sm:$0xff] %vm171, %v2989
      %3022 = vst.msk [vmem:[#allocation3 + $0xe0] sm:$0xff] %vm171, %v2990
      %3023 = vst.msk [vmem:[#allocation3 + $0xe8] sm:$0xff] %vm171, %v2991
      %3024 = vst.msk [vmem:[#allocation3 + $0xf0] sm:$0xff] %vm171, %v2992
      %3025 = vst.msk [vmem:[#allocation3 + $0xf8] sm:$0xff] %vm171, %v2993
      %s3026 = scalar_lea.vmem %s1, 64
      %v3027 = vld [vmem:[%s3026] sm:$0xff]
      %v3028 = vld [vmem:[%s2349 + $0x2] sm:$0xff]
      %v3029 = vld [vmem:[%s2349 + $0xa] sm:$0xff]
      %v3030 = vld [vmem:[%s2349 + $0x1a] sm:$0xff]
      %v3031 = vld [vmem:[%s2349 + $0x22] sm:$0xff]
      %v3032 = vld [vmem:[%s2349 + $0x32] sm:$0xff]
      %v3033 = vld [vmem:[%s2349 + $0x3a] sm:$0xff]
      %v3034 = vld [vmem:[%s2349 + $0x4a] sm:$0xff]
      %v3035 = vld [vmem:[%s2349 + $0x52] sm:$0xff]
      %v3036 = vld [vmem:[%s2349 + $0x62] sm:$0xff]
      %v3037 = vld [vmem:[%s2349 + $0x6a] sm:$0xff]
      %v3038 = vld [vmem:[%s2349 + $0x7a] sm:$0xff]
      %v3039 = vld [vmem:[%s2349 + $0x82] sm:$0xff]
      %v3040 = vld [vmem:[%s2349 + $0x92] sm:$0xff]
      %v3041 = vld [vmem:[%s2349 + $0x9a] sm:$0xff]
      %v3042 = vld [vmem:[%s2349 + $0xaa] sm:$0xff]
      %v3043 = vld [vmem:[%s2349 + $0xb2] sm:$0xff]
      %v3044 = vld [vmem:[%s2349 + $0xc2] sm:$0xff]
      %v3045 = vld [vmem:[%s2349 + $0xca] sm:$0xff]
      %v3046 = vld [vmem:[%s2349 + $0xda] sm:$0xff]
      %v3047 = vld [vmem:[%s2349 + $0xe2] sm:$0xff]
      %v3048 = vld [vmem:[%s2349 + $0xf2] sm:$0xff]
      %v3049 = vld [vmem:[%s2349 + $0xfa] sm:$0xff]
      %v3050 = vld [vmem:[%s2349 + $0x10a] sm:$0xff]
      %v3051 = vld [vmem:[%s2349 + $0x112] sm:$0xff]
      %v3052 = vld [vmem:[%s2349 + $0x122] sm:$0xff]
      %v3053 = vld [vmem:[%s2349 + $0x12a] sm:$0xff]
      %v3054 = vld [vmem:[%s2349 + $0x13a] sm:$0xff]
      %v3055 = vld [vmem:[%s2349 + $0x142] sm:$0xff]
      %v3056 = vld [vmem:[%s2349 + $0x152] sm:$0xff]
      %v3057 = vld [vmem:[%s2349 + $0x15a] sm:$0xff]
      %v3058 = vld [vmem:[%s2349 + $0x16a] sm:$0xff]
      %v3059 = vld [vmem:[%s2349 + $0x172] sm:$0xff]
      %v3060 = vld [vmem:[#allocation3] sm:$0xff]
      %v3061 = vld [vmem:[#allocation3 + $0x8] sm:$0xff]
      %v3062 = vld [vmem:[#allocation3 + $0x10] sm:$0xff]
      %v3063 = vld [vmem:[#allocation3 + $0x18] sm:$0xff]
      %v3064 = vld [vmem:[#allocation3 + $0x20] sm:$0xff]
      %v3065 = vld [vmem:[#allocation3 + $0x28] sm:$0xff]
      %v3066 = vld [vmem:[#allocation3 + $0x30] sm:$0xff]
      %v3067 = vld [vmem:[#allocation3 + $0x38] sm:$0xff]
      %v3068 = vld [vmem:[#allocation3 + $0x40] sm:$0xff]
      %v3069 = vld [vmem:[#allocation3 + $0x48] sm:$0xff]
      %v3070 = vld [vmem:[#allocation3 + $0x50] sm:$0xff]
      %v3071 = vld [vmem:[#allocation3 + $0x58] sm:$0xff]
      %v3072 = vld [vmem:[#allocation3 + $0x60] sm:$0xff]
      %v3073 = vld [vmem:[#allocation3 + $0x68] sm:$0xff]
      %v3074 = vld [vmem:[#allocation3 + $0x70] sm:$0xff]
      %v3075 = vld [vmem:[#allocation3 + $0x78] sm:$0xff]
      %v3076 = vld [vmem:[#allocation3 + $0x80] sm:$0xff]
      %v3077 = vld [vmem:[#allocation3 + $0x88] sm:$0xff]
      %v3078 = vld [vmem:[#allocation3 + $0x90] sm:$0xff]
      %v3079 = vld [vmem:[#allocation3 + $0x98] sm:$0xff]
      %v3080 = vld [vmem:[#allocation3 + $0xa0] sm:$0xff]
      %v3081 = vld [vmem:[#allocation3 + $0xa8] sm:$0xff]
      %v3082 = vld [vmem:[#allocation3 + $0xb0] sm:$0xff]
      %v3083 = vld [vmem:[#allocation3 + $0xb8] sm:$0xff]
      %v3084 = vld [vmem:[#allocation3 + $0xc0] sm:$0xff]
      %v3085 = vld [vmem:[#allocation3 + $0xc8] sm:$0xff]
      %v3086 = vld [vmem:[#allocation3 + $0xd0] sm:$0xff]
      %v3087 = vld [vmem:[#allocation3 + $0xd8] sm:$0xff]
      %v3088 = vld [vmem:[#allocation3 + $0xe0] sm:$0xff]
      %v3089 = vld [vmem:[#allocation3 + $0xe8] sm:$0xff]
      %v3090 = vld [vmem:[#allocation3 + $0xf0] sm:$0xff]
      %v3091 = vld [vmem:[#allocation3 + $0xf8] sm:$0xff]
      %v3093 = vsel %vm171, %v3028, 0
      %v3096 = vsel %vm171, %v3029, 0
      %v3099 = vsel %vm171, %v3030, 0
      %v3102 = vsel %vm171, %v3031, 0
      %v3105 = vsel %vm171, %v3032, 0
      %v3108 = vsel %vm171, %v3033, 0
      %v3111 = vsel %vm171, %v3034, 0
      %v3114 = vsel %vm171, %v3035, 0
      %v3117 = vsel %vm171, %v3036, 0
      %v3120 = vsel %vm171, %v3037, 0
      %v3123 = vsel %vm171, %v3038, 0
      %v3126 = vsel %vm171, %v3039, 0
      %v3129 = vsel %vm171, %v3040, 0
      %v3132 = vsel %vm171, %v3041, 0
      %v3135 = vsel %vm171, %v3042, 0
      %v3138 = vsel %vm171, %v3043, 0
      %v3141 = vsel %vm171, %v3044, 0
      %v3144 = vsel %vm171, %v3045, 0
      %v3147 = vsel %vm171, %v3046, 0
      %v3150 = vsel %vm171, %v3047, 0
      %v3153 = vsel %vm171, %v3048, 0
      %v3156 = vsel %vm171, %v3049, 0
      %v3159 = vsel %vm171, %v3050, 0
      %v3162 = vsel %vm171, %v3051, 0
      %v3165 = vsel %vm171, %v3052, 0
      %v3168 = vsel %vm171, %v3053, 0
      %v3171 = vsel %vm171, %v3054, 0
      %v3174 = vsel %vm171, %v3055, 0
      %v3177 = vsel %vm171, %v3056, 0
      %v3180 = vsel %vm171, %v3057, 0
      %v3183 = vsel %vm171, %v3058, 0
      %v3186 = vsel %vm171, %v3059, 0
      %3188 = vmatpush.msra.mxu0 0.0
      %3189 = vmatpush.msra.mxu0 0.0
      %3190 = vmatpush.msra.mxu0 0.0
      %3191 = vmatpush.msra.mxu0 0.0
      %3192 = vmatpush.msra.mxu0 0.0
      %3193 = vmatpush.msra.mxu0 0.0
      %3194 = vmatpush.msra.mxu0 0.0
      %3195 = vmatpush.msra.mxu0 0.0
      %3196 = vmatpush.msra.mxu0 0.0
      %3197 = vmatpush.msra.mxu0 0.0
      %3198 = vmatpush.msra.mxu0 0.0
      %3199 = vmatpush.msra.mxu0 0.0
      %3200 = vmatpush.msra.mxu0 0.0
      %3201 = vmatpush.msra.mxu0 0.0
      %3202 = vmatpush.msra.mxu0 0.0
      %3203 = vmatpush.msra.mxu0 %v3027
      %3204 = vmatmul.f32.gmra.mxu0 %v3093
      %v3205 = vpop.f32.mrf.mxu0
      %v3206 = vadd.f32 0.0, %v3205
      %3207 = vmatmul.f32.gmra.mxu0 %v3096
      %v3208 = vpop.f32.mrf.mxu0
      %v3209 = vadd.f32 0.0, %v3208
      %3210 = vmatmul.f32.gmra.mxu0 %v3099
      %v3211 = vpop.f32.mrf.mxu0
      %v3212 = vadd.f32 0.0, %v3211
      %3213 = vmatmul.f32.gmra.mxu0 %v3102
      %v3214 = vpop.f32.mrf.mxu0
      %v3215 = vadd.f32 0.0, %v3214
      %3216 = vmatmul.f32.gmra.mxu0 %v3105
      %v3217 = vpop.f32.mrf.mxu0
      %v3218 = vadd.f32 0.0, %v3217
      %3219 = vmatmul.f32.gmra.mxu0 %v3108
      %v3220 = vpop.f32.mrf.mxu0
      %v3221 = vadd.f32 0.0, %v3220
      %3222 = vmatmul.f32.gmra.mxu0 %v3111
      %v3223 = vpop.f32.mrf.mxu0
      %v3224 = vadd.f32 0.0, %v3223
      %3225 = vmatmul.f32.gmra.mxu0 %v3114
      %v3226 = vpop.f32.mrf.mxu0
      %v3227 = vadd.f32 0.0, %v3226
      %3228 = vmatmul.f32.gmra.mxu0 %v3117
      %v3229 = vpop.f32.mrf.mxu0
      %v3230 = vadd.f32 0.0, %v3229
      %3231 = vmatmul.f32.gmra.mxu0 %v3120
      %v3232 = vpop.f32.mrf.mxu0
      %v3233 = vadd.f32 0.0, %v3232
      %3234 = vmatmul.f32.gmra.mxu0 %v3123
      %v3235 = vpop.f32.mrf.mxu0
      %v3236 = vadd.f32 0.0, %v3235
      %3237 = vmatmul.f32.gmra.mxu0 %v3126
      %v3238 = vpop.f32.mrf.mxu0
      %v3239 = vadd.f32 0.0, %v3238
      %3240 = vmatmul.f32.gmra.mxu0 %v3129
      %v3241 = vpop.f32.mrf.mxu0
      %v3242 = vadd.f32 0.0, %v3241
      %3243 = vmatmul.f32.gmra.mxu0 %v3132
      %v3244 = vpop.f32.mrf.mxu0
      %v3245 = vadd.f32 0.0, %v3244
      %3246 = vmatmul.f32.gmra.mxu0 %v3135
      %v3247 = vpop.f32.mrf.mxu0
      %v3248 = vadd.f32 0.0, %v3247
      %3249 = vmatmul.f32.gmra.mxu0 %v3138
      %v3250 = vpop.f32.mrf.mxu0
      %v3251 = vadd.f32 0.0, %v3250
      %3252 = vmatmul.f32.gmra.mxu0 %v3141
      %v3253 = vpop.f32.mrf.mxu0
      %v3254 = vadd.f32 0.0, %v3253
      %3255 = vmatmul.f32.gmra.mxu0 %v3144
      %v3256 = vpop.f32.mrf.mxu0
      %v3257 = vadd.f32 0.0, %v3256
      %3258 = vmatmul.f32.gmra.mxu0 %v3147
      %v3259 = vpop.f32.mrf.mxu0
      %v3260 = vadd.f32 0.0, %v3259
      %3261 = vmatmul.f32.gmra.mxu0 %v3150
      %v3262 = vpop.f32.mrf.mxu0
      %v3263 = vadd.f32 0.0, %v3262
      %3264 = vmatmul.f32.gmra.mxu0 %v3153
      %v3265 = vpop.f32.mrf.mxu0
      %v3266 = vadd.f32 0.0, %v3265
      %3267 = vmatmul.f32.gmra.mxu0 %v3156
      %v3268 = vpop.f32.mrf.mxu0
      %v3269 = vadd.f32 0.0, %v3268
      %3270 = vmatmul.f32.gmra.mxu0 %v3159
      %v3271 = vpop.f32.mrf.mxu0
      %v3272 = vadd.f32 0.0, %v3271
      %3273 = vmatmul.f32.gmra.mxu0 %v3162
      %v3274 = vpop.f32.mrf.mxu0
      %v3275 = vadd.f32 0.0, %v3274
      %3276 = vmatmul.f32.gmra.mxu0 %v3165
      %v3277 = vpop.f32.mrf.mxu0
      %v3278 = vadd.f32 0.0, %v3277
      %3279 = vmatmul.f32.gmra.mxu0 %v3168
      %v3280 = vpop.f32.mrf.mxu0
      %v3281 = vadd.f32 0.0, %v3280
      %3282 = vmatmul.f32.gmra.mxu0 %v3171
      %v3283 = vpop.f32.mrf.mxu0
      %v3284 = vadd.f32 0.0, %v3283
      %3285 = vmatmul.f32.gmra.mxu0 %v3174
      %v3286 = vpop.f32.mrf.mxu0
      %v3287 = vadd.f32 0.0, %v3286
      %3288 = vmatmul.f32.gmra.mxu0 %v3177
      %v3289 = vpop.f32.mrf.mxu0
      %v3290 = vadd.f32 0.0, %v3289
      %3291 = vmatmul.f32.gmra.mxu0 %v3180
      %v3292 = vpop.f32.mrf.mxu0
      %v3293 = vadd.f32 0.0, %v3292
      %3294 = vmatmul.f32.gmra.mxu0 %v3183
      %v3295 = vpop.f32.mrf.mxu0
      %v3296 = vadd.f32 0.0, %v3295
      %3297 = vmatmul.f32.gmra.mxu0 %v3186
      %v3298 = vpop.f32.mrf.mxu0
      %v3299 = vadd.f32 0.0, %v3298
      %3300 = vdwg.mxu0
      %v3301 = vadd.f32 %v3060, %v3206
      %v3302 = vadd.f32 %v3061, %v3209
      %v3303 = vadd.f32 %v3062, %v3212
      %v3304 = vadd.f32 %v3063, %v3215
      %v3305 = vadd.f32 %v3064, %v3218
      %v3306 = vadd.f32 %v3065, %v3221
      %v3307 = vadd.f32 %v3066, %v3224
      %v3308 = vadd.f32 %v3067, %v3227
      %v3309 = vadd.f32 %v3068, %v3230
      %v3310 = vadd.f32 %v3069, %v3233
      %v3311 = vadd.f32 %v3070, %v3236
      %v3312 = vadd.f32 %v3071, %v3239
      %v3313 = vadd.f32 %v3072, %v3242
      %v3314 = vadd.f32 %v3073, %v3245
      %v3315 = vadd.f32 %v3074, %v3248
      %v3316 = vadd.f32 %v3075, %v3251
      %v3317 = vadd.f32 %v3076, %v3254
      %v3318 = vadd.f32 %v3077, %v3257
      %v3319 = vadd.f32 %v3078, %v3260
      %v3320 = vadd.f32 %v3079, %v3263
      %v3321 = vadd.f32 %v3080, %v3266
      %v3322 = vadd.f32 %v3081, %v3269
      %v3323 = vadd.f32 %v3082, %v3272
      %v3324 = vadd.f32 %v3083, %v3275
      %v3325 = vadd.f32 %v3084, %v3278
      %v3326 = vadd.f32 %v3085, %v3281
      %v3327 = vadd.f32 %v3086, %v3284
      %v3328 = vadd.f32 %v3087, %v3287
      %v3329 = vadd.f32 %v3088, %v3290
      %v3330 = vadd.f32 %v3089, %v3293
      %v3331 = vadd.f32 %v3090, %v3296
      %v3332 = vadd.f32 %v3091, %v3299
      %3333 = vst.msk [vmem:[#allocation3] sm:$0xff] %vm171, %v3301
      %3334 = vst.msk [vmem:[#allocation3 + $0x8] sm:$0xff] %vm171, %v3302
      %3335 = vst.msk [vmem:[#allocation3 + $0x10] sm:$0xff] %vm171, %v3303
      %3336 = vst.msk [vmem:[#allocation3 + $0x18] sm:$0xff] %vm171, %v3304
      %3337 = vst.msk [vmem:[#allocation3 + $0x20] sm:$0xff] %vm171, %v3305
      %3338 = vst.msk [vmem:[#allocation3 + $0x28] sm:$0xff] %vm171, %v3306
      %3339 = vst.msk [vmem:[#allocation3 + $0x30] sm:$0xff] %vm171, %v3307
      %3340 = vst.msk [vmem:[#allocation3 + $0x38] sm:$0xff] %vm171, %v3308
      %3341 = vst.msk [vmem:[#allocation3 + $0x40] sm:$0xff] %vm171, %v3309
      %3342 = vst.msk [vmem:[#allocation3 + $0x48] sm:$0xff] %vm171, %v3310
      %3343 = vst.msk [vmem:[#allocation3 + $0x50] sm:$0xff] %vm171, %v3311
      %3344 = vst.msk [vmem:[#allocation3 + $0x58] sm:$0xff] %vm171, %v3312
      %3345 = vst.msk [vmem:[#allocation3 + $0x60] sm:$0xff] %vm171, %v3313
      %3346 = vst.msk [vmem:[#allocation3 + $0x68] sm:$0xff] %vm171, %v3314
      %3347 = vst.msk [vmem:[#allocation3 + $0x70] sm:$0xff] %vm171, %v3315
      %3348 = vst.msk [vmem:[#allocation3 + $0x78] sm:$0xff] %vm171, %v3316
      %3349 = vst.msk [vmem:[#allocation3 + $0x80] sm:$0xff] %vm171, %v3317
      %3350 = vst.msk [vmem:[#allocation3 + $0x88] sm:$0xff] %vm171, %v3318
      %3351 = vst.msk [vmem:[#allocation3 + $0x90] sm:$0xff] %vm171, %v3319
      %3352 = vst.msk [vmem:[#allocation3 + $0x98] sm:$0xff] %vm171, %v3320
      %3353 = vst.msk [vmem:[#allocation3 + $0xa0] sm:$0xff] %vm171, %v3321
      %3354 = vst.msk [vmem:[#allocation3 + $0xa8] sm:$0xff] %vm171, %v3322
      %3355 = vst.msk [vmem:[#allocation3 + $0xb0] sm:$0xff] %vm171, %v3323
      %3356 = vst.msk [vmem:[#allocation3 + $0xb8] sm:$0xff] %vm171, %v3324
      %3357 = vst.msk [vmem:[#allocation3 + $0xc0] sm:$0xff] %vm171, %v3325
      %3358 = vst.msk [vmem:[#allocation3 + $0xc8] sm:$0xff] %vm171, %v3326
      %3359 = vst.msk [vmem:[#allocation3 + $0xd0] sm:$0xff] %vm171, %v3327
      %3360 = vst.msk [vmem:[#allocation3 + $0xd8] sm:$0xff] %vm171, %v3328
      %3361 = vst.msk [vmem:[#allocation3 + $0xe0] sm:$0xff] %vm171, %v3329
      %3362 = vst.msk [vmem:[#allocation3 + $0xe8] sm:$0xff] %vm171, %v3330
      %3363 = vst.msk [vmem:[#allocation3 + $0xf0] sm:$0xff] %vm171, %v3331
      %3364 = vst.msk [vmem:[#allocation3 + $0xf8] sm:$0xff] %vm171, %v3332
      %v3365 = vld [vmem:[#allocation3] sm:$0xff]
      %v3366 = vld [vmem:[#allocation3 + $0x8] sm:$0xff]
      %v3367 = vld [vmem:[#allocation3 + $0x10] sm:$0xff]
      %v3368 = vld [vmem:[#allocation3 + $0x18] sm:$0xff]
      %v3369 = vld [vmem:[#allocation3 + $0x20] sm:$0xff]
      %v3370 = vld [vmem:[#allocation3 + $0x28] sm:$0xff]
      %v3371 = vld [vmem:[#allocation3 + $0x30] sm:$0xff]
      %v3372 = vld [vmem:[#allocation3 + $0x38] sm:$0xff]
      %v3373 = vld [vmem:[#allocation3 + $0x40] sm:$0xff]
      %v3374 = vld [vmem:[#allocation3 + $0x48] sm:$0xff]
      %v3375 = vld [vmem:[#allocation3 + $0x50] sm:$0xff]
      %v3376 = vld [vmem:[#allocation3 + $0x58] sm:$0xff]
      %v3377 = vld [vmem:[#allocation3 + $0x60] sm:$0xff]
      %v3378 = vld [vmem:[#allocation3 + $0x68] sm:$0xff]
      %v3379 = vld [vmem:[#allocation3 + $0x70] sm:$0xff]
      %v3380 = vld [vmem:[#allocation3 + $0x78] sm:$0xff]
      %v3381 = vld [vmem:[#allocation3 + $0x80] sm:$0xff]
      %v3382 = vld [vmem:[#allocation3 + $0x88] sm:$0xff]
      %v3383 = vld [vmem:[#allocation3 + $0x90] sm:$0xff]
      %v3384 = vld [vmem:[#allocation3 + $0x98] sm:$0xff]
      %v3385 = vld [vmem:[#allocation3 + $0xa0] sm:$0xff]
      %v3386 = vld [vmem:[#allocation3 + $0xa8] sm:$0xff]
      %v3387 = vld [vmem:[#allocation3 + $0xb0] sm:$0xff]
      %v3388 = vld [vmem:[#allocation3 + $0xb8] sm:$0xff]
      %v3389 = vld [vmem:[#allocation3 + $0xc0] sm:$0xff]
      %v3390 = vld [vmem:[#allocation3 + $0xc8] sm:$0xff]
      %v3391 = vld [vmem:[#allocation3 + $0xd0] sm:$0xff]
      %v3392 = vld [vmem:[#allocation3 + $0xd8] sm:$0xff]
      %v3393 = vld [vmem:[#allocation3 + $0xe0] sm:$0xff]
      %v3394 = vld [vmem:[#allocation3 + $0xe8] sm:$0xff]
      %v3395 = vld [vmem:[#allocation3 + $0xf0] sm:$0xff]
      %v3396 = vld [vmem:[#allocation3 + $0xf8] sm:$0xff]
      %v3397 = vld [vmem:[%s2] sm:$0x1]
      %v3399 = vperm.slane %v3397, 0
      %v3401 = vadd.f32 %v3365, %v3399
      %v3402 = vadd.f32 %v3366, %v3399
      %v3403 = vadd.f32 %v3367, %v3399
      %v3404 = vadd.f32 %v3368, %v3399
      %v3405 = vadd.f32 %v3369, %v3399
      %v3406 = vadd.f32 %v3370, %v3399
      %v3407 = vadd.f32 %v3371, %v3399
      %v3408 = vadd.f32 %v3372, %v3399
      %v3409 = vadd.f32 %v3373, %v3399
      %v3410 = vadd.f32 %v3374, %v3399
      %v3411 = vadd.f32 %v3375, %v3399
      %v3412 = vadd.f32 %v3376, %v3399
      %v3413 = vadd.f32 %v3377, %v3399
      %v3414 = vadd.f32 %v3378, %v3399
      %v3415 = vadd.f32 %v3379, %v3399
      %v3416 = vadd.f32 %v3380, %v3399
      %v3417 = vadd.f32 %v3381, %v3399
      %v3418 = vadd.f32 %v3382, %v3399
      %v3419 = vadd.f32 %v3383, %v3399
      %v3420 = vadd.f32 %v3384, %v3399
      %v3421 = vadd.f32 %v3385, %v3399
      %v3422 = vadd.f32 %v3386, %v3399
      %v3423 = vadd.f32 %v3387, %v3399
      %v3424 = vadd.f32 %v3388, %v3399
      %v3425 = vadd.f32 %v3389, %v3399
      %v3426 = vadd.f32 %v3390, %v3399
      %v3427 = vadd.f32 %v3391, %v3399
      %v3428 = vadd.f32 %v3392, %v3399
      %v3429 = vadd.f32 %v3393, %v3399
      %v3430 = vadd.f32 %v3394, %v3399
      %v3431 = vadd.f32 %v3395, %v3399
      %v3432 = vadd.f32 %v3396, %v3399
      %vm3433 = vcmp.ge.f32.partialorder %v3401, 0.0
      %vm3434 = vcmp.ge.f32.partialorder %v3402, 0.0
      %vm3435 = vcmp.ge.f32.partialorder %v3403, 0.0
      %vm3436 = vcmp.ge.f32.partialorder %v3404, 0.0
      %vm3437 = vcmp.ge.f32.partialorder %v3405, 0.0
      %vm3438 = vcmp.ge.f32.partialorder %v3406, 0.0
      %vm3439 = vcmp.ge.f32.partialorder %v3407, 0.0
      %vm3440 = vcmp.ge.f32.partialorder %v3408, 0.0
      %vm3441 = vcmp.ge.f32.partialorder %v3409, 0.0
      %vm3442 = vcmp.ge.f32.partialorder %v3410, 0.0
      %vm3443 = vcmp.ge.f32.partialorder %v3411, 0.0
      %vm3444 = vcmp.ge.f32.partialorder %v3412, 0.0
      %vm3445 = vcmp.ge.f32.partialorder %v3413, 0.0
      %vm3446 = vcmp.ge.f32.partialorder %v3414, 0.0
      %vm3447 = vcmp.ge.f32.partialorder %v3415, 0.0
      %vm3448 = vcmp.ge.f32.partialorder %v3416, 0.0
      %vm3449 = vcmp.ge.f32.partialorder %v3417, 0.0
      %vm3450 = vcmp.ge.f32.partialorder %v3418, 0.0
      %vm3451 = vcmp.ge.f32.partialorder %v3419, 0.0
      %vm3452 = vcmp.ge.f32.partialorder %v3420, 0.0
      %vm3453 = vcmp.ge.f32.partialorder %v3421, 0.0
      %vm3454 = vcmp.ge.f32.partialorder %v3422, 0.0
      %vm3455 = vcmp.ge.f32.partialorder %v3423, 0.0
      %vm3456 = vcmp.ge.f32.partialorder %v3424, 0.0
      %vm3457 = vcmp.ge.f32.partialorder %v3425, 0.0
      %vm3458 = vcmp.ge.f32.partialorder %v3426, 0.0
      %vm3459 = vcmp.ge.f32.partialorder %v3427, 0.0
      %vm3460 = vcmp.ge.f32.partialorder %v3428, 0.0
      %vm3461 = vcmp.ge.f32.partialorder %v3429, 0.0
      %vm3462 = vcmp.ge.f32.partialorder %v3430, 0.0
      %vm3463 = vcmp.ge.f32.partialorder %v3431, 0.0
      %vm3464 = vcmp.ge.f32.partialorder %v3432, 0.0
      %v3465 = vmul.f32 %v3401, 0.2
      %v3466 = vmul.f32 %v3402, 0.2
      %v3467 = vmul.f32 %v3403, 0.2
      %v3468 = vmul.f32 %v3404, 0.2
      %v3469 = vmul.f32 %v3405, 0.2
      %v3470 = vmul.f32 %v3406, 0.2
      %v3471 = vmul.f32 %v3407, 0.2
      %v3472 = vmul.f32 %v3408, 0.2
      %v3473 = vmul.f32 %v3409, 0.2
      %v3474 = vmul.f32 %v3410, 0.2
      %v3475 = vmul.f32 %v3411, 0.2
      %v3476 = vmul.f32 %v3412, 0.2
      %v3477 = vmul.f32 %v3413, 0.2
      %v3478 = vmul.f32 %v3414, 0.2
      %v3479 = vmul.f32 %v3415, 0.2
      %v3480 = vmul.f32 %v3416, 0.2
      %v3481 = vmul.f32 %v3417, 0.2
      %v3482 = vmul.f32 %v3418, 0.2
      %v3483 = vmul.f32 %v3419, 0.2
      %v3484 = vmul.f32 %v3420, 0.2
      %v3485 = vmul.f32 %v3421, 0.2
      %v3486 = vmul.f32 %v3422, 0.2
      %v3487 = vmul.f32 %v3423, 0.2
      %v3488 = vmul.f32 %v3424, 0.2
      %v3489 = vmul.f32 %v3425, 0.2
      %v3490 = vmul.f32 %v3426, 0.2
      %v3491 = vmul.f32 %v3427, 0.2
      %v3492 = vmul.f32 %v3428, 0.2
      %v3493 = vmul.f32 %v3429, 0.2
      %v3494 = vmul.f32 %v3430, 0.2
      %v3495 = vmul.f32 %v3431, 0.2
      %v3496 = vmul.f32 %v3432, 0.2
      %v3497 = vsel %vm3433, %v3401, %v3465
      %v3498 = vsel %vm3434, %v3402, %v3466
      %v3499 = vsel %vm3435, %v3403, %v3467
      %v3500 = vsel %vm3436, %v3404, %v3468
      %v3501 = vsel %vm3437, %v3405, %v3469
      %v3502 = vsel %vm3438, %v3406, %v3470
      %v3503 = vsel %vm3439, %v3407, %v3471
      %v3504 = vsel %vm3440, %v3408, %v3472
      %v3505 = vsel %vm3441, %v3409, %v3473
      %v3506 = vsel %vm3442, %v3410, %v3474
      %v3507 = vsel %vm3443, %v3411, %v3475
      %v3508 = vsel %vm3444, %v3412, %v3476
      %v3509 = vsel %vm3445, %v3413, %v3477
      %v3510 = vsel %vm3446, %v3414, %v3478
      %v3511 = vsel %vm3447, %v3415, %v3479
      %v3512 = vsel %vm3448, %v3416, %v3480
      %v3513 = vsel %vm3449, %v3417, %v3481
      %v3514 = vsel %vm3450, %v3418, %v3482
      %v3515 = vsel %vm3451, %v3419, %v3483
      %v3516 = vsel %vm3452, %v3420, %v3484
      %v3517 = vsel %vm3453, %v3421, %v3485
      %v3518 = vsel %vm3454, %v3422, %v3486
      %v3519 = vsel %vm3455, %v3423, %v3487
      %v3520 = vsel %vm3456, %v3424, %v3488
      %v3521 = vsel %vm3457, %v3425, %v3489
      %v3522 = vsel %vm3458, %v3426, %v3490
      %v3523 = vsel %vm3459, %v3427, %v3491
      %v3524 = vsel %vm3460, %v3428, %v3492
      %v3525 = vsel %vm3461, %v3429, %v3493
      %v3526 = vsel %vm3462, %v3430, %v3494
      %v3527 = vsel %vm3463, %v3431, %v3495
      %v3528 = vsel %vm3464, %v3432, %v3496
      %3529 = vst.msk [vmem:[%s170] sm:$0xff] %vm171, %v3497
      %3530 = vst.msk [vmem:[%s170 + $0x8] sm:$0xff] %vm171, %v3498
      %3531 = vst.msk [vmem:[%s170 + $0x10] sm:$0xff] %vm171, %v3499
      %3532 = vst.msk [vmem:[%s170 + $0x18] sm:$0xff] %vm171, %v3500
      %3533 = vst.msk [vmem:[%s170 + $0x20] sm:$0xff] %vm171, %v3501
      %3534 = vst.msk [vmem:[%s170 + $0x28] sm:$0xff] %vm171, %v3502
      %3535 = vst.msk [vmem:[%s170 + $0x30] sm:$0xff] %vm171, %v3503
      %3536 = vst.msk [vmem:[%s170 + $0x38] sm:$0xff] %vm171, %v3504
      %3537 = vst.msk [vmem:[%s170 + $0x40] sm:$0xff] %vm171, %v3505
      %3538 = vst.msk [vmem:[%s170 + $0x48] sm:$0xff] %vm171, %v3506
      %3539 = vst.msk [vmem:[%s170 + $0x50] sm:$0xff] %vm171, %v3507
      %3540 = vst.msk [vmem:[%s170 + $0x58] sm:$0xff] %vm171, %v3508
      %3541 = vst.msk [vmem:[%s170 + $0x60] sm:$0xff] %vm171, %v3509
      %3542 = vst.msk [vmem:[%s170 + $0x68] sm:$0xff] %vm171, %v3510
      %3543 = vst.msk [vmem:[%s170 + $0x70] sm:$0xff] %vm171, %v3511
      %3544 = vst.msk [vmem:[%s170 + $0x78] sm:$0xff] %vm171, %v3512
      %3545 = vst.msk [vmem:[%s170 + $0x80] sm:$0xff] %vm171, %v3513
      %3546 = vst.msk [vmem:[%s170 + $0x88] sm:$0xff] %vm171, %v3514
      %3547 = vst.msk [vmem:[%s170 + $0x90] sm:$0xff] %vm171, %v3515
      %3548 = vst.msk [vmem:[%s170 + $0x98] sm:$0xff] %vm171, %v3516
      %3549 = vst.msk [vmem:[%s170 + $0xa0] sm:$0xff] %vm171, %v3517
      %3550 = vst.msk [vmem:[%s170 + $0xa8] sm:$0xff] %vm171, %v3518
      %3551 = vst.msk [vmem:[%s170 + $0xb0] sm:$0xff] %vm171, %v3519
      %3552 = vst.msk [vmem:[%s170 + $0xb8] sm:$0xff] %vm171, %v3520
      %3553 = vst.msk [vmem:[%s170 + $0xc0] sm:$0xff] %vm171, %v3521
      %3554 = vst.msk [vmem:[%s170 + $0xc8] sm:$0xff] %vm171, %v3522
      %3555 = vst.msk [vmem:[%s170 + $0xd0] sm:$0xff] %vm171, %v3523
      %3556 = vst.msk [vmem:[%s170 + $0xd8] sm:$0xff] %vm171, %v3524
      %3557 = vst.msk [vmem:[%s170 + $0xe0] sm:$0xff] %vm171, %v3525
      %3558 = vst.msk [vmem:[%s170 + $0xe8] sm:$0xff] %vm171, %v3526
      %3559 = vst.msk [vmem:[%s170 + $0xf0] sm:$0xff] %vm171, %v3527
      %3560 = vst.msk [vmem:[%s170 + $0xf8] sm:$0xff] %vm171, %v3528
      %p3561 = scmp.lt.s32.totalorder %s14, 1
      %s3562 = scalar_select %p3561, %s14, 1
      %s3563 = smul.addr %s3562, 32
      %s3564 = smul.addr %s3563, 8
      %s3565 = scalar_lea.vmem %s3, %s3564
      // Predicated region
      $region33: #{tpu_custom_call.1} parent=31 // pred_check
        %p3566 = pneg %p100
      $region34: #{tpu_custom_call.1} parent=31 // pred_check_branch
        %3568 = sbr.rel (%p3566) target = $region36
      $region35: #{tpu_custom_call.1} parent=31 // pred_region
        _
      $region36: #{tpu_custom_call.1} parent=31 // pred_fallthru
        _
    $region32: #{tpu_custom_call.1} parent=5 // pred_fallthru
      _
    %p3569 = scmp.le.s32.totalorder 2, %s9
    // Predicated region
    $region37: #{tpu_custom_call.1} parent=5 // pred_check
      %p3570 = pneg %p3569
    $region38: #{tpu_custom_call.1} parent=5 // pred_check_branch
      %3572 = sbr.rel (%p3570) target = $region40
    $region39: #{tpu_custom_call.1} parent=5 // pred_region
      %s3573 = ssub.s32 %s9, 2
      // Predicated region
      $region41: #{tpu_custom_call.1} parent=39 // pred_check
        %p3574 = pneg %p106
      $region42: #{tpu_custom_call.1} parent=39 // pred_check_branch
        %3576 = sbr.rel (%p3574) target = $region44
      $region43: #{tpu_custom_call.1} parent=39 // pred_region
        %p3577 = scmp.lt.s32.totalorder %s15, 1
        %s3578 = scalar_select %p3577, %s15, 1
        %s3579 = smul.addr %s3578, 32
        %s3580 = smul.addr %s3579, 8
        %s3581 = scalar_lea.vmem %s3, %s3580
      $region44: #{tpu_custom_call.1} parent=39 // pred_fallthru
        _
    $region40: #{tpu_custom_call.1} parent=5 // pred_fallthru
      _
  $region6: #{tpu_custom_call.1} parent=0 // loop_footer
    %s13 = sadd.s32 1, %s9
  $region7: #{tpu_custom_call.1} parent=0 // loop_footer_branch
    %8 = sbr.rel target = $region3
  $region8: #{tpu_custom_call.1} parent=0 // loop_exit
    _

</llo_original>
